<compile_context>
chip_gen: v7x
topology: tpu7x:2x2x1
jax: 0.10.0
libtpu: 0.0.40
codegen_flags: <defaults>
</compile_context>

<pallas_src>
from functools import partial

import jax
import jax.numpy as jnp
from jax.experimental import pallas as pl
from jax.experimental.pallas import tpu as pltpu

# ----------------------------- config (small, consistent with the module) ----
HIDDEN = 64          # hidden_size
NUM_HEADS = 4        # head_dim = 16
DEPTH = 2
PATCH = 14
INPUT_SIZE = 56      # -> num_patches = (56 // 14)^2 = 16
NUM_PATCHES = (INPUT_SIZE // PATCH) ** 2
NUM_CLASSES = 10
FREQ_DIM = 256       # TimestepEmbedder frequency_embedding_size
MLP_RATIO = 4.0
MLP_HIDDEN = int(HIDDEN * MLP_RATIO)
LN_EPS = 1e-6
HEAD_DIM = HIDDEN // NUM_HEADS
BIAS_PAD = MLP_HIDDEN            # widest bias row (>= 3*HIDDEN since mlp_ratio >= 3)


# ----------------------------- Pallas kernel: the whole DiT block stack ------
def dit_stack_kernel(x_ref, mod_ref,
                     wqkv_ref, wproj_ref, wfc1_ref, wfc2_ref, b_ref,
                     o_ref, *, num_heads, depth):
    T, D = x_ref.shape
    Dh = D // num_heads
    mlp_hidden = wfc1_ref.shape[-1]
    scale = Dh ** -0.5

    x = x_ref[...].astype(jnp.float32)          # (T, D) residual stream, f32

    def layernorm(v):  # elementwise_affine=False, eps=1e-6
        mu = jnp.mean(v, axis=-1, keepdims=True)
        var = jnp.mean((v - mu) ** 2, axis=-1, keepdims=True)
        return (v - mu) * jax.lax.rsqrt(var + LN_EPS)

    # Unrolled depth loop: weights indexed along the leading (DEPTH, ...) axis.
    for d in range(depth):
        shift_msa = mod_ref[d, 0]               # (1, D) each
        scale_msa = mod_ref[d, 1]
        gate_msa = mod_ref[d, 2]
        shift_mlp = mod_ref[d, 3]
        scale_mlp = mod_ref[d, 4]
        gate_mlp = mod_ref[d, 5]

        # Packed biases: rows [qkv | proj | fc1 | fc2], prefix slices only (lane-aligned
        # starts), padded to BIAS_PAD lanes.
        bqkv = b_ref[d, 0][:, :3 * D]           # (1, 3D)
        bproj = b_ref[d, 1][:, :D]              # (1, D)
        bfc1 = b_ref[d, 2][:, :mlp_hidden]      # (1, 4D)
        bfc2 = b_ref[d, 3][:, :D]               # (1, D)

        # --- attention branch: x + gate * Attn(modulate(LN(x))) ---
        h = layernorm(x) * (1.0 + scale_msa) + shift_msa

        # One fused QKV matmul per depth (bf16 operands, f32 accumulate).
        qkv = jnp.dot(h.astype(jnp.bfloat16), wqkv_ref[d],
                      preferred_element_type=jnp.float32) + bqkv        # (T, 3D) f32

        head_outs = []
        for hh in range(num_heads):             # Dh=16 lane slices of the fused result
            qh = qkv[:, hh * Dh:(hh + 1) * Dh]
            kh = qkv[:, D + hh * Dh:D + (hh + 1) * Dh]
            vh = qkv[:, 2 * D + hh * Dh:2 * D + (hh + 1) * Dh]
            logits = jax.lax.dot_general(       # (T, T), contract head_dim
                qh * scale, kh, (((1,), (1,)), ((), ())),
                preferred_element_type=jnp.float32)
            m = jnp.max(logits, axis=-1, keepdims=True)
            p = jnp.exp(logits - m)
            p = p * pl.reciprocal(jnp.sum(p, axis=-1, keepdims=True), approx=True)
            head_outs.append(jnp.dot(p, vh, preferred_element_type=jnp.float32))

        # Lane-concat heads back to (T, D) and run ONE 64-wide output projection.
        attn = jnp.concatenate(head_outs, axis=-1)                      # (T, D) f32
        attn = jnp.dot(attn.astype(jnp.bfloat16), wproj_ref[d],
                       preferred_element_type=jnp.float32) + bproj
        x = x + gate_msa * attn

        # --- MLP branch: x + gate * MLP(modulate(LN(x))), GELU(tanh approx) ---
        h2 = layernorm(x) * (1.0 + scale_mlp) + shift_mlp
        h2 = jnp.dot(h2.astype(jnp.bfloat16), wfc1_ref[d],
                     preferred_element_type=jnp.float32) + bfc1
        h2 = 0.5 * h2 * (1.0 + jnp.tanh(0.7978845608028654 * (h2 + 0.044715 * h2 * h2 * h2)))
        h2 = jnp.dot(h2.astype(jnp.bfloat16), wfc2_ref[d],
                     preferred_element_type=jnp.float32) + bfc2
        x = x + gate_mlp * h2

    o_ref[...] = x.astype(o_ref.dtype)


def dit_stack_pallas(x, mod, p):
    N, T, D = x.shape
    weights = (p["wqkv"], p["wproj"], p["wfc1"], p["wfc2"], p["bias"])

    def full(arr):   # whole array, constant index -> DMA'd once, resident across steps
        nd = arr.ndim
        return pl.BlockSpec(arr.shape, lambda n, _nd=nd: (0,) * _nd)

    kernel = partial(dit_stack_kernel, num_heads=NUM_HEADS, depth=DEPTH)
    in_specs = [
        # one batch row of tokens per grid step; leading dim squeezed away
        pl.BlockSpec((pl.Squeezed(), T, D), lambda n: (n, 0, 0)),
        # per-row adaLN modulation (DEPTH, 6, 1, D)
        pl.BlockSpec((pl.Squeezed(),) + mod.shape[1:], lambda n: (n, 0, 0, 0, 0)),
    ] + [full(a) for a in weights]

    return pl.pallas_call(
        kernel,
        out_shape=jax.ShapeDtypeStruct((N, T, D), x.dtype),
        grid=(N,),
        in_specs=in_specs,
        out_specs=pl.BlockSpec((pl.Squeezed(), T, D), lambda n: (n, 0, 0)),
        compiler_params=pltpu.CompilerParams(dimension_semantics=("parallel",)),
    )(x, mod, *weights)


# ----------------------------- one-time parameter preparation -----------------
def prepare_params(params):
    """Run ONCE, eagerly, outside jit: stack per-depth weights, cast matmul weights to
    bf16, and pack all biases into one prefix-aligned tensor."""
    D = HIDDEN
    blocks = params["blocks"]

    def stack(key):
        return jnp.stack([b[key] for b in blocks])                 # leading (DEPTH, ...)

    def pad_row(v):                                                # (Z, W) -> (Z, BIAS_PAD)
        return jnp.pad(v, ((0, 0), (0, BIAS_PAD - v.shape[-1])))

    bqkv = stack("bqkv")[:, 0, :]                                  # (Z, 3D)
    bproj = stack("bproj")[:, 0, :]                                # (Z, D)
    bfc1 = stack("bfc1")[:, 0, :]                                  # (Z, 4D)
    bfc2 = stack("bfc2")[:, 0, :]                                  # (Z, D)
    bias = jnp.stack([pad_row(bqkv), pad_row(bproj), pad_row(bfc1), pad_row(bfc2)],
                     axis=1)[:, :, None, :]                        # (Z, 4, 1, BIAS_PAD)

    packed = {
        # bf16 matmul weights (halve HBM->VMEM DMA; MXU is bf16 natively)
        "wqkv": stack("wqkv").astype(jnp.bfloat16),                # (Z, D, 3D)
        "wproj": stack("wproj").astype(jnp.bfloat16),              # (Z, D, D)
        "wfc1": stack("wfc1").astype(jnp.bfloat16),                # (Z, D, 4D)
        "wfc2": stack("wfc2").astype(jnp.bfloat16),                # (Z, 4D, D)
        "bias": bias.astype(jnp.float32),                          # (Z, 4, 1, 256)
        # adaLN weights stay f32 and are used in the plain-JAX glue
        "wada": stack("wada"),                                     # (Z, D, 6D)
        "bada": stack("bada")[:, 0, :],                            # (Z, 6D)
        # embedder / pos-embed params used by the JAX glue
        "pos_embed": params["pos_embed"],
        "t_w1": params["t_w1"], "t_b1": params["t_b1"],
        "t_w2": params["t_w2"], "t_b2": params["t_b2"],
        "y_table": params["y_table"],
    }
    # materialize everything on device now (eager), so nothing is re-laid-out per call
    return jax.tree_util.tree_map(jnp.asarray, packed)


# ----------------------------- plain-JAX glue ---------------------------------
def timestep_embedding(t, dim, max_period=10000.0):
    half = dim // 2
    freqs = jnp.exp(-jnp.log(max_period) * jnp.arange(half, dtype=jnp.float32) / half)
    args = t.astype(jnp.float32)[:, None] * freqs[None, :]
    return jnp.concatenate([jnp.cos(args), jnp.sin(args)], axis=-1)


def get_2d_sincos_pos_embed(embed_dim, grid_size):
    def _1d(dim, pos):
        omega = jnp.arange(dim // 2, dtype=jnp.float32) / (dim / 2.0)
        omega = 1.0 / (10000.0 ** omega)
        out = jnp.einsum("m,d->md", pos.reshape(-1), omega)
        return jnp.concatenate([jnp.sin(out), jnp.cos(out)], axis=1)

    grid_h = jnp.arange(grid_size, dtype=jnp.float32)
    grid_w = jnp.arange(grid_size, dtype=jnp.float32)
    gw, gh = jnp.meshgrid(grid_w, grid_h)            # w varies fastest, like np.meshgrid
    emb_h = _1d(embed_dim // 2, gw)
    emb_w = _1d(embed_dim // 2, gh)
    return jnp.concatenate([emb_h, emb_w], axis=1)   # (grid_size**2, embed_dim)


def _conditioning(t, y, params):
    t_freq = timestep_embedding(t, FREQ_DIM)
    h = jax.nn.silu(t_freq @ params["t_w1"] + params["t_b1"])
    t_emb = h @ params["t_w2"] + params["t_b2"]
    # eval-mode LabelEmbedder: plain table lookup (no CFG class-dropout)
    y_emb = params["y_table"][y]
    return t_emb + y_emb


def dit_forward(x, t, y, packed):
    x = x + packed["pos_embed"]
    c = _conditioning(t, y, packed)                  # (N, D)
    # adaLN modulation for ALL depths in plain JAX: (N, DEPTH, 6, 1, D)
    c_act = jax.nn.silu(c)
    mod = jnp.einsum("nd,zdf->nzf", c_act, packed["wada"]) + packed["bada"][None]
    mod = mod.reshape(x.shape[0], DEPTH, 6, 1, HIDDEN)
    return dit_stack_pallas(x, mod, packed)


# ----------------------------- pure-JAX reference (for correctness check) ----
def _block_ref(x, c, p):
    N, T, D = x.shape
    H, Dh = NUM_HEADS, HIDDEN // NUM_HEADS
    mod = jax.nn.silu(c) @ p["wada"] + p["bada"][0]
    sm, scm, gm, sl, scl, gl = jnp.split(mod, 6, axis=-1)

    def ln(v):
        mu = v.mean(-1, keepdims=True)
        var = ((v - mu) ** 2).mean(-1, keepdims=True)
        return (v - mu) / jnp.sqrt(var + LN_EPS)

    h = ln(x) * (1 + scm[:, None, :]) + sm[:, None, :]
    qkv = h @ p["wqkv"] + p["bqkv"][0]
    q, k, v = jnp.split(qkv, 3, axis=-1)
    q = q.reshape(N, T, H, Dh)
    k = k.reshape(N, T, H, Dh)
    v = v.reshape(N, T, H, Dh)
    logits = jnp.einsum("nthd,nshd->nhts", q, k) * (Dh ** -0.5)
    a = jax.nn.softmax(logits, -1)
    o = jnp.einsum("nhts,nshd->nthd", a, v).reshape(N, T, D)
    o = o @ p["wproj"] + p["bproj"][0]
    x = x + gm[:, None, :] * o
    h2 = ln(x) * (1 + scl[:, None, :]) + sl[:, None, :]
    h2 = jax.nn.gelu(h2 @ p["wfc1"] + p["bfc1"][0], approximate=True)
    h2 = h2 @ p["wfc2"] + p["bfc2"][0]
    return x + gl[:, None, :] * h2


def dit_forward_ref(x, t, y, params):
    x = x + params["pos_embed"]
    c = _conditioning(t, y, params)
    for blk in params["blocks"]:
        x = _block_ref(x, c, blk)
    return x


# ----------------------------- deterministic parameter init ------------------
def init_params(key):
    def dense(k, fan_in, fan_out):
        kw, kb = jax.random.split(k)
        w = jax.random.normal(kw, (fan_in, fan_out), jnp.float32) / jnp.sqrt(fan_in)
        b = 0.02 * jax.random.normal(kb, (1, fan_out), jnp.float32)
        return w, b

    keys = jax.random.split(key, 4 + DEPTH)
    params = {}
    params["pos_embed"] = get_2d_sincos_pos_embed(HIDDEN, int(NUM_PATCHES ** 0.5))[None]
    params["t_w1"], params["t_b1"] = dense(keys[0], FREQ_DIM, HIDDEN)
    params["t_w2"], params["t_b2"] = dense(keys[1], HIDDEN, HIDDEN)
    # LabelEmbedder table has num_classes + 1 rows (class_dropout_prob > 0 adds CFG row)
    params["y_table"] = 0.02 * jax.random.normal(keys[2], (NUM_CLASSES + 1, HIDDEN), jnp.float32)

    # NOTE: original initialize_weights() zero-inits adaLN (blocks become identity);
    # here we use nonzero deterministic init so the kernel compute is exercised.
    blocks = []
    for d in range(DEPTH):
        bk = jax.random.split(keys[3 + d], 5)
        blk = {}
        blk["wqkv"], blk["bqkv"] = dense(bk[0], HIDDEN, 3 * HIDDEN)
        blk["wproj"], blk["bproj"] = dense(bk[1], HIDDEN, HIDDEN)
        blk["wfc1"], blk["bfc1"] = dense(bk[2], HIDDEN, MLP_HIDDEN)
        blk["wfc2"], blk["bfc2"] = dense(bk[3], MLP_HIDDEN, HIDDEN)
        blk["wada"], blk["bada"] = dense(bk[4], HIDDEN, 6 * HIDDEN)
        blocks.append(blk)
    params["blocks"] = blocks
    return params


# ----------------------------- main -------------------------------------------
if __name__ == "__main__":
    key = jax.random.PRNGKey(0)
    kp, kx, kt, ky = jax.random.split(key, 4)
    params = init_params(kp)
    packed = prepare_params(params)                  # one-time weight packing (eager)

    N = 2
    x = jax.random.normal(kx, (N, NUM_PATCHES, HIDDEN), jnp.float32)
    t = jax.random.uniform(kt, (N,), jnp.float32, 0.0, 1000.0)
    y = jax.random.randint(ky, (N,), 0, NUM_CLASSES)

    fwd = jax.jit(lambda x, t, y: dit_forward(x, t, y, packed))
    out = jax.block_until_ready(fwd(x, t, y))

    ref = dit_forward_ref(x, t, y, params)
    assert out.shape == (N, NUM_PATCHES, HIDDEN)
    max_err = float(jnp.max(jnp.abs(out - ref)))
    # tolerance accounts for bf16 weight storage + MXU bf16 default-precision dots
    assert jnp.allclose(out, ref, atol=2e-2, rtol=2e-2), f"max abs err {max_err}"
    print("KERNEL_OK")
</pallas_src>

<mosaic_0001>
module attributes {stable_mosaic.version = 11 : i64} {
  func.func @dit_stack_kernel(%arg0: i32, %arg1: memref<1x16x64xf32, #tpu.memory_space<vmem>>, %arg2: memref<1x2x6x1x64xf32, #tpu.memory_space<vmem>>, %arg3: memref<2x64x192xbf16, #tpu.memory_space<vmem>>, %arg4: memref<2x64x64xbf16, #tpu.memory_space<vmem>>, %arg5: memref<2x64x256xbf16, #tpu.memory_space<vmem>>, %arg6: memref<2x256x64xbf16, #tpu.memory_space<vmem>>, %arg7: memref<2x4x1x256xf32, #tpu.memory_space<vmem>>, %arg8: memref<1x16x64xf32, #tpu.memory_space<vmem>>) attributes {dimension_semantics = [#tpu.dimension_semantics<parallel>], iteration_bounds = array<i64: 2>, scalar_prefetch = 0 : i64, scratch_operands = 0 : i64, tpu.core_type = #tpu.core_type<tc>, window_params = [{transform_indices = @transform_0, window_bounds = array<i64: 1, 16, 64>}, {transform_indices = @transform_1, window_bounds = array<i64: 1, 2, 6, 1, 64>}, {pipeline_mode = #tpu.pipeline_mode<synchronous>, transform_indices = @transform_2, window_bounds = array<i64: 2, 64, 192>}, {pipeline_mode = #tpu.pipeline_mode<synchronous>, transform_indices = @transform_3, window_bounds = array<i64: 2, 64, 64>}, {pipeline_mode = #tpu.pipeline_mode<synchronous>, transform_indices = @transform_4, window_bounds = array<i64: 2, 64, 256>}, {pipeline_mode = #tpu.pipeline_mode<synchronous>, transform_indices = @transform_5, window_bounds = array<i64: 2, 256, 64>}, {pipeline_mode = #tpu.pipeline_mode<synchronous>, transform_indices = @transform_6, window_bounds = array<i64: 2, 4, 1, 256>}, {transform_indices = @transform_7, window_bounds = array<i64: 1, 16, 64>}]} {
    %c0 = arith.constant 0 : index
    %c0_0 = arith.constant 0 : index
    %c0_1 = arith.constant 0 : index
    %0 = vector.load %arg1[%c0, %c0_0, %c0_1] : memref<1x16x64xf32, #tpu.memory_space<vmem>>, vector<1x16x64xf32>
    %1 = vector.shape_cast %0 : vector<1x16x64xf32> to vector<16x64xf32>
    %c0_2 = arith.constant 0 : index
    %c0_3 = arith.constant 0 : index
    %c0_4 = arith.constant 0 : index
    %c0_5 = arith.constant 0 : index
    %c0_6 = arith.constant 0 : index
    %2 = vector.load %arg2[%c0_2, %c0_3, %c0_4, %c0_5, %c0_6] : memref<1x2x6x1x64xf32, #tpu.memory_space<vmem>>, vector<1x1x1x1x64xf32>
    %3 = vector.shape_cast %2 : vector<1x1x1x1x64xf32> to vector<1x64xf32>
    %c0_7 = arith.constant 0 : index
    %c0_8 = arith.constant 0 : index
    %c1 = arith.constant 1 : index
    %c0_9 = arith.constant 0 : index
    %c0_10 = arith.constant 0 : index
    %4 = vector.load %arg2[%c0_7, %c0_8, %c1, %c0_9, %c0_10] : memref<1x2x6x1x64xf32, #tpu.memory_space<vmem>>, vector<1x1x1x1x64xf32>
    %5 = vector.shape_cast %4 : vector<1x1x1x1x64xf32> to vector<1x64xf32>
    %c0_11 = arith.constant 0 : index
    %c0_12 = arith.constant 0 : index
    %c2 = arith.constant 2 : index
    %c0_13 = arith.constant 0 : index
    %c0_14 = arith.constant 0 : index
    %6 = vector.load %arg2[%c0_11, %c0_12, %c2, %c0_13, %c0_14] : memref<1x2x6x1x64xf32, #tpu.memory_space<vmem>>, vector<1x1x1x1x64xf32>
    %7 = vector.shape_cast %6 : vector<1x1x1x1x64xf32> to vector<1x64xf32>
    %c0_15 = arith.constant 0 : index
    %c0_16 = arith.constant 0 : index
    %c3 = arith.constant 3 : index
    %c0_17 = arith.constant 0 : index
    %c0_18 = arith.constant 0 : index
    %8 = vector.load %arg2[%c0_15, %c0_16, %c3, %c0_17, %c0_18] : memref<1x2x6x1x64xf32, #tpu.memory_space<vmem>>, vector<1x1x1x1x64xf32>
    %9 = vector.shape_cast %8 : vector<1x1x1x1x64xf32> to vector<1x64xf32>
    %c0_19 = arith.constant 0 : index
    %c0_20 = arith.constant 0 : index
    %c4 = arith.constant 4 : index
    %c0_21 = arith.constant 0 : index
    %c0_22 = arith.constant 0 : index
    %10 = vector.load %arg2[%c0_19, %c0_20, %c4, %c0_21, %c0_22] : memref<1x2x6x1x64xf32, #tpu.memory_space<vmem>>, vector<1x1x1x1x64xf32>
    %11 = vector.shape_cast %10 : vector<1x1x1x1x64xf32> to vector<1x64xf32>
    %c0_23 = arith.constant 0 : index
    %c0_24 = arith.constant 0 : index
    %c5 = arith.constant 5 : index
    %c0_25 = arith.constant 0 : index
    %c0_26 = arith.constant 0 : index
    %12 = vector.load %arg2[%c0_23, %c0_24, %c5, %c0_25, %c0_26] : memref<1x2x6x1x64xf32, #tpu.memory_space<vmem>>, vector<1x1x1x1x64xf32>
    %13 = vector.shape_cast %12 : vector<1x1x1x1x64xf32> to vector<1x64xf32>
    %c0_27 = arith.constant 0 : index
    %c0_28 = arith.constant 0 : index
    %c0_29 = arith.constant 0 : index
    %c0_30 = arith.constant 0 : index
    %14 = vector.load %arg7[%c0_27, %c0_28, %c0_29, %c0_30] : memref<2x4x1x256xf32, #tpu.memory_space<vmem>>, vector<1x1x1x256xf32>
    %15 = vector.shape_cast %14 : vector<1x1x1x256xf32> to vector<1x256xf32>
    %16 = vector.extract_strided_slice %15 {offsets = [0, 0], sizes = [1, 192], strides = [1, 1]} : vector<1x256xf32> to vector<1x192xf32>
    %c0_31 = arith.constant 0 : index
    %c1_32 = arith.constant 1 : index
    %c0_33 = arith.constant 0 : index
    %c0_34 = arith.constant 0 : index
    %17 = vector.load %arg7[%c0_31, %c1_32, %c0_33, %c0_34] : memref<2x4x1x256xf32, #tpu.memory_space<vmem>>, vector<1x1x1x256xf32>
    %18 = vector.shape_cast %17 : vector<1x1x1x256xf32> to vector<1x256xf32>
    %19 = vector.extract_strided_slice %18 {offsets = [0, 0], sizes = [1, 64], strides = [1, 1]} : vector<1x256xf32> to vector<1x64xf32>
    %c0_35 = arith.constant 0 : index
    %c2_36 = arith.constant 2 : index
    %c0_37 = arith.constant 0 : index
    %c0_38 = arith.constant 0 : index
    %20 = vector.load %arg7[%c0_35, %c2_36, %c0_37, %c0_38] : memref<2x4x1x256xf32, #tpu.memory_space<vmem>>, vector<1x1x1x256xf32>
    %21 = vector.shape_cast %20 : vector<1x1x1x256xf32> to vector<1x256xf32>
    %c0_39 = arith.constant 0 : index
    %c3_40 = arith.constant 3 : index
    %c0_41 = arith.constant 0 : index
    %c0_42 = arith.constant 0 : index
    %22 = vector.load %arg7[%c0_39, %c3_40, %c0_41, %c0_42] : memref<2x4x1x256xf32, #tpu.memory_space<vmem>>, vector<1x1x1x256xf32>
    %23 = vector.shape_cast %22 : vector<1x1x1x256xf32> to vector<1x256xf32>
    %24 = vector.extract_strided_slice %23 {offsets = [0, 0], sizes = [1, 64], strides = [1, 1]} : vector<1x256xf32> to vector<1x64xf32>
    %cst = arith.constant dense<0.000000e+00> : vector<16xf32>
    %25 = vector.multi_reduction <add>, %1, %cst [1] : vector<16x64xf32> to vector<16xf32>
    %26 = vector.shape_cast %25 : vector<16xf32> to vector<16x1xf32>
    %cst_43 = arith.constant 6.400000e+01 : f32
    %27 = vector.broadcast %cst_43 : f32 to vector<16x1xf32>
    %28 = arith.divf %26, %27 : vector<16x1xf32>
    %29 = vector.broadcast %28 : vector<16x1xf32> to vector<16x64xf32>
    %30 = arith.subf %1, %29 : vector<16x64xf32>
    %31 = arith.mulf %30, %30 : vector<16x64xf32>
    %cst_44 = arith.constant dense<0.000000e+00> : vector<16xf32>
    %32 = vector.multi_reduction <add>, %31, %cst_44 [1] : vector<16x64xf32> to vector<16xf32>
    %33 = vector.shape_cast %32 : vector<16xf32> to vector<16x1xf32>
    %cst_45 = arith.constant 6.400000e+01 : f32
    %34 = vector.broadcast %cst_45 : f32 to vector<16x1xf32>
    %35 = arith.divf %33, %34 : vector<16x1xf32>
    %36 = vector.broadcast %28 : vector<16x1xf32> to vector<16x64xf32>
    %37 = arith.subf %1, %36 : vector<16x64xf32>
    %cst_46 = arith.constant 9.99999997E-7 : f32
    %38 = vector.broadcast %cst_46 : f32 to vector<16x1xf32>
    %39 = arith.addf %35, %38 : vector<16x1xf32>
    %40 = math.rsqrt %39 : vector<16x1xf32>
    %41 = vector.broadcast %40 : vector<16x1xf32> to vector<16x64xf32>
    %42 = arith.mulf %37, %41 : vector<16x64xf32>
    %cst_47 = arith.constant 1.000000e+00 : f32
    %43 = vector.broadcast %cst_47 : f32 to vector<1x64xf32>
    %44 = arith.addf %43, %5 : vector<1x64xf32>
    %45 = vector.broadcast %44 : vector<1x64xf32> to vector<16x64xf32>
    %46 = arith.mulf %42, %45 : vector<16x64xf32>
    %47 = vector.broadcast %3 : vector<1x64xf32> to vector<16x64xf32>
    %48 = arith.addf %46, %47 : vector<16x64xf32>
    %49 = arith.truncf %48 : vector<16x64xf32> to vector<16x64xbf16>
    %c0_48 = arith.constant 0 : index
    %c0_49 = arith.constant 0 : index
    %c0_50 = arith.constant 0 : index
    %50 = vector.load %arg3[%c0_48, %c0_49, %c0_50] : memref<2x64x192xbf16, #tpu.memory_space<vmem>>, vector<1x64x192xbf16>
    %51 = vector.shape_cast %50 : vector<1x64x192xbf16> to vector<64x192xbf16>
    %cst_51 = arith.constant dense<0.000000e+00> : vector<16x192xf32>
    %52 = tpu.matmul %49, %51, %cst_51 {dimension_numbers = #tpu.dot_dimension_numbers<[1], [0], [0], [1], [0, 0, 1, 1], [], []>} : vector<16x64xbf16>, vector<64x192xbf16>, vector<16x192xf32> -> vector<16x192xf32>
    %53 = vector.broadcast %16 : vector<1x192xf32> to vector<16x192xf32>
    %54 = arith.addf %52, %53 : vector<16x192xf32>
    %55 = vector.extract_strided_slice %54 {offsets = [0, 0], sizes = [16, 16], strides = [1, 1]} : vector<16x192xf32> to vector<16x16xf32>
    %56 = vector.extract_strided_slice %54 {offsets = [0, 64], sizes = [16, 16], strides = [1, 1]} : vector<16x192xf32> to vector<16x16xf32>
    %57 = vector.extract_strided_slice %54 {offsets = [0, 128], sizes = [16, 16], strides = [1, 1]} : vector<16x192xf32> to vector<16x16xf32>
    %cst_52 = arith.constant 2.500000e-01 : f32
    %58 = vector.broadcast %cst_52 : f32 to vector<16x16xf32>
    %59 = arith.mulf %55, %58 : vector<16x16xf32>
    %cst_53 = arith.constant dense<0.000000e+00> : vector<16x16xf32>
    %60 = tpu.matmul %59, %56, %cst_53 {dimension_numbers = #tpu.dot_dimension_numbers<[1], [1], [0], [0], [0, 0, 1, 0], [], []>} : vector<16x16xf32>, vector<16x16xf32>, vector<16x16xf32> -> vector<16x16xf32>
    %cst_54 = arith.constant dense<0xFF800000> : vector<16xf32>
    %61 = vector.multi_reduction <maximumf>, %60, %cst_54 [1] : vector<16x16xf32> to vector<16xf32>
    %62 = vector.shape_cast %61 : vector<16xf32> to vector<16x1xf32>
    %63 = vector.broadcast %62 : vector<16x1xf32> to vector<16x16xf32>
    %64 = arith.subf %60, %63 : vector<16x16xf32>
    %65 = math.exp %64 : vector<16x16xf32>
    %cst_55 = arith.constant dense<0.000000e+00> : vector<16xf32>
    %66 = vector.multi_reduction <add>, %65, %cst_55 [1] : vector<16x16xf32> to vector<16xf32>
    %67 = vector.shape_cast %66 : vector<16xf32> to vector<16x1xf32>
    %68 = tpu.reciprocal %67 {approx = true} : vector<16x1xf32> -> vector<16x1xf32>
    %69 = vector.broadcast %68 : vector<16x1xf32> to vector<16x16xf32>
    %70 = arith.mulf %65, %69 : vector<16x16xf32>
    %cst_56 = arith.constant dense<0.000000e+00> : vector<16x16xf32>
    %71 = tpu.matmul %70, %57, %cst_56 {dimension_numbers = #tpu.dot_dimension_numbers<[1], [0], [0], [1], [0, 0, 1, 1], [], []>} : vector<16x16xf32>, vector<16x16xf32>, vector<16x16xf32> -> vector<16x16xf32>
    %72 = vector.extract_strided_slice %54 {offsets = [0, 16], sizes = [16, 16], strides = [1, 1]} : vector<16x192xf32> to vector<16x16xf32>
    %73 = vector.extract_strided_slice %54 {offsets = [0, 80], sizes = [16, 16], strides = [1, 1]} : vector<16x192xf32> to vector<16x16xf32>
    %74 = vector.extract_strided_slice %54 {offsets = [0, 144], sizes = [16, 16], strides = [1, 1]} : vector<16x192xf32> to vector<16x16xf32>
    %cst_57 = arith.constant 2.500000e-01 : f32
    %75 = vector.broadcast %cst_57 : f32 to vector<16x16xf32>
    %76 = arith.mulf %72, %75 : vector<16x16xf32>
    %cst_58 = arith.constant dense<0.000000e+00> : vector<16x16xf32>
    %77 = tpu.matmul %76, %73, %cst_58 {dimension_numbers = #tpu.dot_dimension_numbers<[1], [1], [0], [0], [0, 0, 1, 0], [], []>} : vector<16x16xf32>, vector<16x16xf32>, vector<16x16xf32> -> vector<16x16xf32>
    %cst_59 = arith.constant dense<0xFF800000> : vector<16xf32>
    %78 = vector.multi_reduction <maximumf>, %77, %cst_59 [1] : vector<16x16xf32> to vector<16xf32>
    %79 = vector.shape_cast %78 : vector<16xf32> to vector<16x1xf32>
    %80 = vector.broadcast %79 : vector<16x1xf32> to vector<16x16xf32>
    %81 = arith.subf %77, %80 : vector<16x16xf32>
    %82 = math.exp %81 : vector<16x16xf32>
    %cst_60 = arith.constant dense<0.000000e+00> : vector<16xf32>
    %83 = vector.multi_reduction <add>, %82, %cst_60 [1] : vector<16x16xf32> to vector<16xf32>
    %84 = vector.shape_cast %83 : vector<16xf32> to vector<16x1xf32>
    %85 = tpu.reciprocal %84 {approx = true} : vector<16x1xf32> -> vector<16x1xf32>
    %86 = vector.broadcast %85 : vector<16x1xf32> to vector<16x16xf32>
    %87 = arith.mulf %82, %86 : vector<16x16xf32>
    %cst_61 = arith.constant dense<0.000000e+00> : vector<16x16xf32>
    %88 = tpu.matmul %87, %74, %cst_61 {dimension_numbers = #tpu.dot_dimension_numbers<[1], [0], [0], [1], [0, 0, 1, 1], [], []>} : vector<16x16xf32>, vector<16x16xf32>, vector<16x16xf32> -> vector<16x16xf32>
    %89 = vector.extract_strided_slice %54 {offsets = [0, 32], sizes = [16, 16], strides = [1, 1]} : vector<16x192xf32> to vector<16x16xf32>
    %90 = vector.extract_strided_slice %54 {offsets = [0, 96], sizes = [16, 16], strides = [1, 1]} : vector<16x192xf32> to vector<16x16xf32>
    %91 = vector.extract_strided_slice %54 {offsets = [0, 160], sizes = [16, 16], strides = [1, 1]} : vector<16x192xf32> to vector<16x16xf32>
    %cst_62 = arith.constant 2.500000e-01 : f32
    %92 = vector.broadcast %cst_62 : f32 to vector<16x16xf32>
    %93 = arith.mulf %89, %92 : vector<16x16xf32>
    %cst_63 = arith.constant dense<0.000000e+00> : vector<16x16xf32>
    %94 = tpu.matmul %93, %90, %cst_63 {dimension_numbers = #tpu.dot_dimension_numbers<[1], [1], [0], [0], [0, 0, 1, 0], [], []>} : vector<16x16xf32>, vector<16x16xf32>, vector<16x16xf32> -> vector<16x16xf32>
    %cst_64 = arith.constant dense<0xFF800000> : vector<16xf32>
    %95 = vector.multi_reduction <maximumf>, %94, %cst_64 [1] : vector<16x16xf32> to vector<16xf32>
    %96 = vector.shape_cast %95 : vector<16xf32> to vector<16x1xf32>
    %97 = vector.broadcast %96 : vector<16x1xf32> to vector<16x16xf32>
    %98 = arith.subf %94, %97 : vector<16x16xf32>
    %99 = math.exp %98 : vector<16x16xf32>
    %cst_65 = arith.constant dense<0.000000e+00> : vector<16xf32>
    %100 = vector.multi_reduction <add>, %99, %cst_65 [1] : vector<16x16xf32> to vector<16xf32>
    %101 = vector.shape_cast %100 : vector<16xf32> to vector<16x1xf32>
    %102 = tpu.reciprocal %101 {approx = true} : vector<16x1xf32> -> vector<16x1xf32>
    %103 = vector.broadcast %102 : vector<16x1xf32> to vector<16x16xf32>
    %104 = arith.mulf %99, %103 : vector<16x16xf32>
    %cst_66 = arith.constant dense<0.000000e+00> : vector<16x16xf32>
    %105 = tpu.matmul %104, %91, %cst_66 {dimension_numbers = #tpu.dot_dimension_numbers<[1], [0], [0], [1], [0, 0, 1, 1], [], []>} : vector<16x16xf32>, vector<16x16xf32>, vector<16x16xf32> -> vector<16x16xf32>
    %106 = vector.extract_strided_slice %54 {offsets = [0, 48], sizes = [16, 16], strides = [1, 1]} : vector<16x192xf32> to vector<16x16xf32>
    %107 = vector.extract_strided_slice %54 {offsets = [0, 112], sizes = [16, 16], strides = [1, 1]} : vector<16x192xf32> to vector<16x16xf32>
    %108 = vector.extract_strided_slice %54 {offsets = [0, 176], sizes = [16, 16], strides = [1, 1]} : vector<16x192xf32> to vector<16x16xf32>
    %cst_67 = arith.constant 2.500000e-01 : f32
    %109 = vector.broadcast %cst_67 : f32 to vector<16x16xf32>
    %110 = arith.mulf %106, %109 : vector<16x16xf32>
    %cst_68 = arith.constant dense<0.000000e+00> : vector<16x16xf32>
    %111 = tpu.matmul %110, %107, %cst_68 {dimension_numbers = #tpu.dot_dimension_numbers<[1], [1], [0], [0], [0, 0, 1, 0], [], []>} : vector<16x16xf32>, vector<16x16xf32>, vector<16x16xf32> -> vector<16x16xf32>
    %cst_69 = arith.constant dense<0xFF800000> : vector<16xf32>
    %112 = vector.multi_reduction <maximumf>, %111, %cst_69 [1] : vector<16x16xf32> to vector<16xf32>
    %113 = vector.shape_cast %112 : vector<16xf32> to vector<16x1xf32>
    %114 = vector.broadcast %113 : vector<16x1xf32> to vector<16x16xf32>
    %115 = arith.subf %111, %114 : vector<16x16xf32>
    %116 = math.exp %115 : vector<16x16xf32>
    %cst_70 = arith.constant dense<0.000000e+00> : vector<16xf32>
    %117 = vector.multi_reduction <add>, %116, %cst_70 [1] : vector<16x16xf32> to vector<16xf32>
    %118 = vector.shape_cast %117 : vector<16xf32> to vector<16x1xf32>
    %119 = tpu.reciprocal %118 {approx = true} : vector<16x1xf32> -> vector<16x1xf32>
    %120 = vector.broadcast %119 : vector<16x1xf32> to vector<16x16xf32>
    %121 = arith.mulf %116, %120 : vector<16x16xf32>
    %cst_71 = arith.constant dense<0.000000e+00> : vector<16x16xf32>
    %122 = tpu.matmul %121, %108, %cst_71 {dimension_numbers = #tpu.dot_dimension_numbers<[1], [0], [0], [1], [0, 0, 1, 1], [], []>} : vector<16x16xf32>, vector<16x16xf32>, vector<16x16xf32> -> vector<16x16xf32>
    %123 = tpu.concatenate %71, %88, %105, %122 in 1 : vector<16x16xf32>, vector<16x16xf32>, vector<16x16xf32>, vector<16x16xf32> -> vector<16x64xf32>
    %124 = arith.truncf %123 : vector<16x64xf32> to vector<16x64xbf16>
    %c0_72 = arith.constant 0 : index
    %c0_73 = arith.constant 0 : index
    %c0_74 = arith.constant 0 : index
    %125 = vector.load %arg4[%c0_72, %c0_73, %c0_74] : memref<2x64x64xbf16, #tpu.memory_space<vmem>>, vector<1x64x64xbf16>
    %126 = vector.shape_cast %125 : vector<1x64x64xbf16> to vector<64x64xbf16>
    %cst_75 = arith.constant dense<0.000000e+00> : vector<16x64xf32>
    %127 = tpu.matmul %124, %126, %cst_75 {dimension_numbers = #tpu.dot_dimension_numbers<[1], [0], [0], [1], [0, 0, 1, 1], [], []>} : vector<16x64xbf16>, vector<64x64xbf16>, vector<16x64xf32> -> vector<16x64xf32>
    %128 = vector.broadcast %19 : vector<1x64xf32> to vector<16x64xf32>
    %129 = arith.addf %127, %128 : vector<16x64xf32>
    %130 = vector.broadcast %7 : vector<1x64xf32> to vector<16x64xf32>
    %131 = arith.mulf %130, %129 : vector<16x64xf32>
    %132 = arith.addf %1, %131 : vector<16x64xf32>
    %cst_76 = arith.constant dense<0.000000e+00> : vector<16xf32>
    %133 = vector.multi_reduction <add>, %132, %cst_76 [1] : vector<16x64xf32> to vector<16xf32>
    %134 = vector.shape_cast %133 : vector<16xf32> to vector<16x1xf32>
    %cst_77 = arith.constant 6.400000e+01 : f32
    %135 = vector.broadcast %cst_77 : f32 to vector<16x1xf32>
    %136 = arith.divf %134, %135 : vector<16x1xf32>
    %137 = vector.broadcast %136 : vector<16x1xf32> to vector<16x64xf32>
    %138 = arith.subf %132, %137 : vector<16x64xf32>
    %139 = arith.mulf %138, %138 : vector<16x64xf32>
    %cst_78 = arith.constant dense<0.000000e+00> : vector<16xf32>
    %140 = vector.multi_reduction <add>, %139, %cst_78 [1] : vector<16x64xf32> to vector<16xf32>
    %141 = vector.shape_cast %140 : vector<16xf32> to vector<16x1xf32>
    %cst_79 = arith.constant 6.400000e+01 : f32
    %142 = vector.broadcast %cst_79 : f32 to vector<16x1xf32>
    %143 = arith.divf %141, %142 : vector<16x1xf32>
    %144 = vector.broadcast %136 : vector<16x1xf32> to vector<16x64xf32>
    %145 = arith.subf %132, %144 : vector<16x64xf32>
    %cst_80 = arith.constant 9.99999997E-7 : f32
    %146 = vector.broadcast %cst_80 : f32 to vector<16x1xf32>
    %147 = arith.addf %143, %146 : vector<16x1xf32>
    %148 = math.rsqrt %147 : vector<16x1xf32>
    %149 = vector.broadcast %148 : vector<16x1xf32> to vector<16x64xf32>
    %150 = arith.mulf %145, %149 : vector<16x64xf32>
    %cst_81 = arith.constant 1.000000e+00 : f32
    %151 = vector.broadcast %cst_81 : f32 to vector<1x64xf32>
    %152 = arith.addf %151, %11 : vector<1x64xf32>
    %153 = vector.broadcast %152 : vector<1x64xf32> to vector<16x64xf32>
    %154 = arith.mulf %150, %153 : vector<16x64xf32>
    %155 = vector.broadcast %9 : vector<1x64xf32> to vector<16x64xf32>
    %156 = arith.addf %154, %155 : vector<16x64xf32>
    %157 = arith.truncf %156 : vector<16x64xf32> to vector<16x64xbf16>
    %c0_82 = arith.constant 0 : index
    %c0_83 = arith.constant 0 : index
    %c0_84 = arith.constant 0 : index
    %158 = vector.load %arg5[%c0_82, %c0_83, %c0_84] : memref<2x64x256xbf16, #tpu.memory_space<vmem>>, vector<1x64x256xbf16>
    %159 = vector.shape_cast %158 : vector<1x64x256xbf16> to vector<64x256xbf16>
    %cst_85 = arith.constant dense<0.000000e+00> : vector<16x256xf32>
    %160 = tpu.matmul %157, %159, %cst_85 {dimension_numbers = #tpu.dot_dimension_numbers<[1], [0], [0], [1], [0, 0, 1, 1], [], []>} : vector<16x64xbf16>, vector<64x256xbf16>, vector<16x256xf32> -> vector<16x256xf32>
    %161 = vector.broadcast %21 : vector<1x256xf32> to vector<16x256xf32>
    %162 = arith.addf %160, %161 : vector<16x256xf32>
    %cst_86 = arith.constant 5.000000e-01 : f32
    %163 = vector.broadcast %cst_86 : f32 to vector<16x256xf32>
    %164 = arith.mulf %163, %162 : vector<16x256xf32>
    %cst_87 = arith.constant 4.471500e-02 : f32
    %165 = vector.broadcast %cst_87 : f32 to vector<16x256xf32>
    %166 = arith.mulf %165, %162 : vector<16x256xf32>
    %167 = arith.mulf %166, %162 : vector<16x256xf32>
    %168 = arith.mulf %167, %162 : vector<16x256xf32>
    %169 = arith.addf %162, %168 : vector<16x256xf32>
    %cst_88 = arith.constant 0.797884583 : f32
    %170 = vector.broadcast %cst_88 : f32 to vector<16x256xf32>
    %171 = arith.mulf %170, %169 : vector<16x256xf32>
    %172 = math.tanh %171 : vector<16x256xf32>
    %cst_89 = arith.constant 1.000000e+00 : f32
    %173 = vector.broadcast %cst_89 : f32 to vector<16x256xf32>
    %174 = arith.addf %173, %172 : vector<16x256xf32>
    %175 = arith.mulf %164, %174 : vector<16x256xf32>
    %176 = arith.truncf %175 : vector<16x256xf32> to vector<16x256xbf16>
    %c0_90 = arith.constant 0 : index
    %c0_91 = arith.constant 0 : index
    %c0_92 = arith.constant 0 : index
    %177 = vector.load %arg6[%c0_90, %c0_91, %c0_92] : memref<2x256x64xbf16, #tpu.memory_space<vmem>>, vector<1x256x64xbf16>
    %178 = vector.shape_cast %177 : vector<1x256x64xbf16> to vector<256x64xbf16>
    %cst_93 = arith.constant dense<0.000000e+00> : vector<16x64xf32>
    %179 = tpu.matmul %176, %178, %cst_93 {dimension_numbers = #tpu.dot_dimension_numbers<[1], [0], [0], [1], [0, 0, 1, 1], [], []>} : vector<16x256xbf16>, vector<256x64xbf16>, vector<16x64xf32> -> vector<16x64xf32>
    %180 = vector.broadcast %24 : vector<1x64xf32> to vector<16x64xf32>
    %181 = arith.addf %179, %180 : vector<16x64xf32>
    %182 = vector.broadcast %13 : vector<1x64xf32> to vector<16x64xf32>
    %183 = arith.mulf %182, %181 : vector<16x64xf32>
    %184 = arith.addf %132, %183 : vector<16x64xf32>
    %c0_94 = arith.constant 0 : index
    %c1_95 = arith.constant 1 : index
    %c0_96 = arith.constant 0 : index
    %c0_97 = arith.constant 0 : index
    %c0_98 = arith.constant 0 : index
    %185 = vector.load %arg2[%c0_94, %c1_95, %c0_96, %c0_97, %c0_98] : memref<1x2x6x1x64xf32, #tpu.memory_space<vmem>>, vector<1x1x1x1x64xf32>
    %186 = vector.shape_cast %185 : vector<1x1x1x1x64xf32> to vector<1x64xf32>
    %c0_99 = arith.constant 0 : index
    %c1_100 = arith.constant 1 : index
    %c1_101 = arith.constant 1 : index
    %c0_102 = arith.constant 0 : index
    %c0_103 = arith.constant 0 : index
    %187 = vector.load %arg2[%c0_99, %c1_100, %c1_101, %c0_102, %c0_103] : memref<1x2x6x1x64xf32, #tpu.memory_space<vmem>>, vector<1x1x1x1x64xf32>
    %188 = vector.shape_cast %187 : vector<1x1x1x1x64xf32> to vector<1x64xf32>
    %c0_104 = arith.constant 0 : index
    %c1_105 = arith.constant 1 : index
    %c2_106 = arith.constant 2 : index
    %c0_107 = arith.constant 0 : index
    %c0_108 = arith.constant 0 : index
    %189 = vector.load %arg2[%c0_104, %c1_105, %c2_106, %c0_107, %c0_108] : memref<1x2x6x1x64xf32, #tpu.memory_space<vmem>>, vector<1x1x1x1x64xf32>
    %190 = vector.shape_cast %189 : vector<1x1x1x1x64xf32> to vector<1x64xf32>
    %c0_109 = arith.constant 0 : index
    %c1_110 = arith.constant 1 : index
    %c3_111 = arith.constant 3 : index
    %c0_112 = arith.constant 0 : index
    %c0_113 = arith.constant 0 : index
    %191 = vector.load %arg2[%c0_109, %c1_110, %c3_111, %c0_112, %c0_113] : memref<1x2x6x1x64xf32, #tpu.memory_space<vmem>>, vector<1x1x1x1x64xf32>
    %192 = vector.shape_cast %191 : vector<1x1x1x1x64xf32> to vector<1x64xf32>
    %c0_114 = arith.constant 0 : index
    %c1_115 = arith.constant 1 : index
    %c4_116 = arith.constant 4 : index
    %c0_117 = arith.constant 0 : index
    %c0_118 = arith.constant 0 : index
    %193 = vector.load %arg2[%c0_114, %c1_115, %c4_116, %c0_117, %c0_118] : memref<1x2x6x1x64xf32, #tpu.memory_space<vmem>>, vector<1x1x1x1x64xf32>
    %194 = vector.shape_cast %193 : vector<1x1x1x1x64xf32> to vector<1x64xf32>
    %c0_119 = arith.constant 0 : index
    %c1_120 = arith.constant 1 : index
    %c5_121 = arith.constant 5 : index
    %c0_122 = arith.constant 0 : index
    %c0_123 = arith.constant 0 : index
    %195 = vector.load %arg2[%c0_119, %c1_120, %c5_121, %c0_122, %c0_123] : memref<1x2x6x1x64xf32, #tpu.memory_space<vmem>>, vector<1x1x1x1x64xf32>
    %196 = vector.shape_cast %195 : vector<1x1x1x1x64xf32> to vector<1x64xf32>
    %c1_124 = arith.constant 1 : index
    %c0_125 = arith.constant 0 : index
    %c0_126 = arith.constant 0 : index
    %c0_127 = arith.constant 0 : index
    %197 = vector.load %arg7[%c1_124, %c0_125, %c0_126, %c0_127] : memref<2x4x1x256xf32, #tpu.memory_space<vmem>>, vector<1x1x1x256xf32>
    %198 = vector.shape_cast %197 : vector<1x1x1x256xf32> to vector<1x256xf32>
    %199 = vector.extract_strided_slice %198 {offsets = [0, 0], sizes = [1, 192], strides = [1, 1]} : vector<1x256xf32> to vector<1x192xf32>
    %c1_128 = arith.constant 1 : index
    %c1_129 = arith.constant 1 : index
    %c0_130 = arith.constant 0 : index
    %c0_131 = arith.constant 0 : index
    %200 = vector.load %arg7[%c1_128, %c1_129, %c0_130, %c0_131] : memref<2x4x1x256xf32, #tpu.memory_space<vmem>>, vector<1x1x1x256xf32>
    %201 = vector.shape_cast %200 : vector<1x1x1x256xf32> to vector<1x256xf32>
    %202 = vector.extract_strided_slice %201 {offsets = [0, 0], sizes = [1, 64], strides = [1, 1]} : vector<1x256xf32> to vector<1x64xf32>
    %c1_132 = arith.constant 1 : index
    %c2_133 = arith.constant 2 : index
    %c0_134 = arith.constant 0 : index
    %c0_135 = arith.constant 0 : index
    %203 = vector.load %arg7[%c1_132, %c2_133, %c0_134, %c0_135] : memref<2x4x1x256xf32, #tpu.memory_space<vmem>>, vector<1x1x1x256xf32>
    %204 = vector.shape_cast %203 : vector<1x1x1x256xf32> to vector<1x256xf32>
    %c1_136 = arith.constant 1 : index
    %c3_137 = arith.constant 3 : index
    %c0_138 = arith.constant 0 : index
    %c0_139 = arith.constant 0 : index
    %205 = vector.load %arg7[%c1_136, %c3_137, %c0_138, %c0_139] : memref<2x4x1x256xf32, #tpu.memory_space<vmem>>, vector<1x1x1x256xf32>
    %206 = vector.shape_cast %205 : vector<1x1x1x256xf32> to vector<1x256xf32>
    %207 = vector.extract_strided_slice %206 {offsets = [0, 0], sizes = [1, 64], strides = [1, 1]} : vector<1x256xf32> to vector<1x64xf32>
    %cst_140 = arith.constant dense<0.000000e+00> : vector<16xf32>
    %208 = vector.multi_reduction <add>, %184, %cst_140 [1] : vector<16x64xf32> to vector<16xf32>
    %209 = vector.shape_cast %208 : vector<16xf32> to vector<16x1xf32>
    %cst_141 = arith.constant 6.400000e+01 : f32
    %210 = vector.broadcast %cst_141 : f32 to vector<16x1xf32>
    %211 = arith.divf %209, %210 : vector<16x1xf32>
    %212 = vector.broadcast %211 : vector<16x1xf32> to vector<16x64xf32>
    %213 = arith.subf %184, %212 : vector<16x64xf32>
    %214 = arith.mulf %213, %213 : vector<16x64xf32>
    %cst_142 = arith.constant dense<0.000000e+00> : vector<16xf32>
    %215 = vector.multi_reduction <add>, %214, %cst_142 [1] : vector<16x64xf32> to vector<16xf32>
    %216 = vector.shape_cast %215 : vector<16xf32> to vector<16x1xf32>
    %cst_143 = arith.constant 6.400000e+01 : f32
    %217 = vector.broadcast %cst_143 : f32 to vector<16x1xf32>
    %218 = arith.divf %216, %217 : vector<16x1xf32>
    %219 = vector.broadcast %211 : vector<16x1xf32> to vector<16x64xf32>
    %220 = arith.subf %184, %219 : vector<16x64xf32>
    %cst_144 = arith.constant 9.99999997E-7 : f32
    %221 = vector.broadcast %cst_144 : f32 to vector<16x1xf32>
    %222 = arith.addf %218, %221 : vector<16x1xf32>
    %223 = math.rsqrt %222 : vector<16x1xf32>
    %224 = vector.broadcast %223 : vector<16x1xf32> to vector<16x64xf32>
    %225 = arith.mulf %220, %224 : vector<16x64xf32>
    %cst_145 = arith.constant 1.000000e+00 : f32
    %226 = vector.broadcast %cst_145 : f32 to vector<1x64xf32>
    %227 = arith.addf %226, %188 : vector<1x64xf32>
    %228 = vector.broadcast %227 : vector<1x64xf32> to vector<16x64xf32>
    %229 = arith.mulf %225, %228 : vector<16x64xf32>
    %230 = vector.broadcast %186 : vector<1x64xf32> to vector<16x64xf32>
    %231 = arith.addf %229, %230 : vector<16x64xf32>
    %232 = arith.truncf %231 : vector<16x64xf32> to vector<16x64xbf16>
    %c1_146 = arith.constant 1 : index
    %c0_147 = arith.constant 0 : index
    %c0_148 = arith.constant 0 : index
    %233 = vector.load %arg3[%c1_146, %c0_147, %c0_148] : memref<2x64x192xbf16, #tpu.memory_space<vmem>>, vector<1x64x192xbf16>
    %234 = vector.shape_cast %233 : vector<1x64x192xbf16> to vector<64x192xbf16>
    %cst_149 = arith.constant dense<0.000000e+00> : vector<16x192xf32>
    %235 = tpu.matmul %232, %234, %cst_149 {dimension_numbers = #tpu.dot_dimension_numbers<[1], [0], [0], [1], [0, 0, 1, 1], [], []>} : vector<16x64xbf16>, vector<64x192xbf16>, vector<16x192xf32> -> vector<16x192xf32>
    %236 = vector.broadcast %199 : vector<1x192xf32> to vector<16x192xf32>
    %237 = arith.addf %235, %236 : vector<16x192xf32>
    %238 = vector.extract_strided_slice %237 {offsets = [0, 0], sizes = [16, 16], strides = [1, 1]} : vector<16x192xf32> to vector<16x16xf32>
    %239 = vector.extract_strided_slice %237 {offsets = [0, 64], sizes = [16, 16], strides = [1, 1]} : vector<16x192xf32> to vector<16x16xf32>
    %240 = vector.extract_strided_slice %237 {offsets = [0, 128], sizes = [16, 16], strides = [1, 1]} : vector<16x192xf32> to vector<16x16xf32>
    %cst_150 = arith.constant 2.500000e-01 : f32
    %241 = vector.broadcast %cst_150 : f32 to vector<16x16xf32>
    %242 = arith.mulf %238, %241 : vector<16x16xf32>
    %cst_151 = arith.constant dense<0.000000e+00> : vector<16x16xf32>
    %243 = tpu.matmul %242, %239, %cst_151 {dimension_numbers = #tpu.dot_dimension_numbers<[1], [1], [0], [0], [0, 0, 1, 0], [], []>} : vector<16x16xf32>, vector<16x16xf32>, vector<16x16xf32> -> vector<16x16xf32>
    %cst_152 = arith.constant dense<0xFF800000> : vector<16xf32>
    %244 = vector.multi_reduction <maximumf>, %243, %cst_152 [1] : vector<16x16xf32> to vector<16xf32>
    %245 = vector.shape_cast %244 : vector<16xf32> to vector<16x1xf32>
    %246 = vector.broadcast %245 : vector<16x1xf32> to vector<16x16xf32>
    %247 = arith.subf %243, %246 : vector<16x16xf32>
    %248 = math.exp %247 : vector<16x16xf32>
    %cst_153 = arith.constant dense<0.000000e+00> : vector<16xf32>
    %249 = vector.multi_reduction <add>, %248, %cst_153 [1] : vector<16x16xf32> to vector<16xf32>
    %250 = vector.shape_cast %249 : vector<16xf32> to vector<16x1xf32>
    %251 = tpu.reciprocal %250 {approx = true} : vector<16x1xf32> -> vector<16x1xf32>
    %252 = vector.broadcast %251 : vector<16x1xf32> to vector<16x16xf32>
    %253 = arith.mulf %248, %252 : vector<16x16xf32>
    %cst_154 = arith.constant dense<0.000000e+00> : vector<16x16xf32>
    %254 = tpu.matmul %253, %240, %cst_154 {dimension_numbers = #tpu.dot_dimension_numbers<[1], [0], [0], [1], [0, 0, 1, 1], [], []>} : vector<16x16xf32>, vector<16x16xf32>, vector<16x16xf32> -> vector<16x16xf32>
    %255 = vector.extract_strided_slice %237 {offsets = [0, 16], sizes = [16, 16], strides = [1, 1]} : vector<16x192xf32> to vector<16x16xf32>
    %256 = vector.extract_strided_slice %237 {offsets = [0, 80], sizes = [16, 16], strides = [1, 1]} : vector<16x192xf32> to vector<16x16xf32>
    %257 = vector.extract_strided_slice %237 {offsets = [0, 144], sizes = [16, 16], strides = [1, 1]} : vector<16x192xf32> to vector<16x16xf32>
    %cst_155 = arith.constant 2.500000e-01 : f32
    %258 = vector.broadcast %cst_155 : f32 to vector<16x16xf32>
    %259 = arith.mulf %255, %258 : vector<16x16xf32>
    %cst_156 = arith.constant dense<0.000000e+00> : vector<16x16xf32>
    %260 = tpu.matmul %259, %256, %cst_156 {dimension_numbers = #tpu.dot_dimension_numbers<[1], [1], [0], [0], [0, 0, 1, 0], [], []>} : vector<16x16xf32>, vector<16x16xf32>, vector<16x16xf32> -> vector<16x16xf32>
    %cst_157 = arith.constant dense<0xFF800000> : vector<16xf32>
    %261 = vector.multi_reduction <maximumf>, %260, %cst_157 [1] : vector<16x16xf32> to vector<16xf32>
    %262 = vector.shape_cast %261 : vector<16xf32> to vector<16x1xf32>
    %263 = vector.broadcast %262 : vector<16x1xf32> to vector<16x16xf32>
    %264 = arith.subf %260, %263 : vector<16x16xf32>
    %265 = math.exp %264 : vector<16x16xf32>
    %cst_158 = arith.constant dense<0.000000e+00> : vector<16xf32>
    %266 = vector.multi_reduction <add>, %265, %cst_158 [1] : vector<16x16xf32> to vector<16xf32>
    %267 = vector.shape_cast %266 : vector<16xf32> to vector<16x1xf32>
    %268 = tpu.reciprocal %267 {approx = true} : vector<16x1xf32> -> vector<16x1xf32>
    %269 = vector.broadcast %268 : vector<16x1xf32> to vector<16x16xf32>
    %270 = arith.mulf %265, %269 : vector<16x16xf32>
    %cst_159 = arith.constant dense<0.000000e+00> : vector<16x16xf32>
    %271 = tpu.matmul %270, %257, %cst_159 {dimension_numbers = #tpu.dot_dimension_numbers<[1], [0], [0], [1], [0, 0, 1, 1], [], []>} : vector<16x16xf32>, vector<16x16xf32>, vector<16x16xf32> -> vector<16x16xf32>
    %272 = vector.extract_strided_slice %237 {offsets = [0, 32], sizes = [16, 16], strides = [1, 1]} : vector<16x192xf32> to vector<16x16xf32>
    %273 = vector.extract_strided_slice %237 {offsets = [0, 96], sizes = [16, 16], strides = [1, 1]} : vector<16x192xf32> to vector<16x16xf32>
    %274 = vector.extract_strided_slice %237 {offsets = [0, 160], sizes = [16, 16], strides = [1, 1]} : vector<16x192xf32> to vector<16x16xf32>
    %cst_160 = arith.constant 2.500000e-01 : f32
    %275 = vector.broadcast %cst_160 : f32 to vector<16x16xf32>
    %276 = arith.mulf %272, %275 : vector<16x16xf32>
    %cst_161 = arith.constant dense<0.000000e+00> : vector<16x16xf32>
    %277 = tpu.matmul %276, %273, %cst_161 {dimension_numbers = #tpu.dot_dimension_numbers<[1], [1], [0], [0], [0, 0, 1, 0], [], []>} : vector<16x16xf32>, vector<16x16xf32>, vector<16x16xf32> -> vector<16x16xf32>
    %cst_162 = arith.constant dense<0xFF800000> : vector<16xf32>
    %278 = vector.multi_reduction <maximumf>, %277, %cst_162 [1] : vector<16x16xf32> to vector<16xf32>
    %279 = vector.shape_cast %278 : vector<16xf32> to vector<16x1xf32>
    %280 = vector.broadcast %279 : vector<16x1xf32> to vector<16x16xf32>
    %281 = arith.subf %277, %280 : vector<16x16xf32>
    %282 = math.exp %281 : vector<16x16xf32>
    %cst_163 = arith.constant dense<0.000000e+00> : vector<16xf32>
    %283 = vector.multi_reduction <add>, %282, %cst_163 [1] : vector<16x16xf32> to vector<16xf32>
    %284 = vector.shape_cast %283 : vector<16xf32> to vector<16x1xf32>
    %285 = tpu.reciprocal %284 {approx = true} : vector<16x1xf32> -> vector<16x1xf32>
    %286 = vector.broadcast %285 : vector<16x1xf32> to vector<16x16xf32>
    %287 = arith.mulf %282, %286 : vector<16x16xf32>
    %cst_164 = arith.constant dense<0.000000e+00> : vector<16x16xf32>
    %288 = tpu.matmul %287, %274, %cst_164 {dimension_numbers = #tpu.dot_dimension_numbers<[1], [0], [0], [1], [0, 0, 1, 1], [], []>} : vector<16x16xf32>, vector<16x16xf32>, vector<16x16xf32> -> vector<16x16xf32>
    %289 = vector.extract_strided_slice %237 {offsets = [0, 48], sizes = [16, 16], strides = [1, 1]} : vector<16x192xf32> to vector<16x16xf32>
    %290 = vector.extract_strided_slice %237 {offsets = [0, 112], sizes = [16, 16], strides = [1, 1]} : vector<16x192xf32> to vector<16x16xf32>
    %291 = vector.extract_strided_slice %237 {offsets = [0, 176], sizes = [16, 16], strides = [1, 1]} : vector<16x192xf32> to vector<16x16xf32>
    %cst_165 = arith.constant 2.500000e-01 : f32
    %292 = vector.broadcast %cst_165 : f32 to vector<16x16xf32>
    %293 = arith.mulf %289, %292 : vector<16x16xf32>
    %cst_166 = arith.constant dense<0.000000e+00> : vector<16x16xf32>
    %294 = tpu.matmul %293, %290, %cst_166 {dimension_numbers = #tpu.dot_dimension_numbers<[1], [1], [0], [0], [0, 0, 1, 0], [], []>} : vector<16x16xf32>, vector<16x16xf32>, vector<16x16xf32> -> vector<16x16xf32>
    %cst_167 = arith.constant dense<0xFF800000> : vector<16xf32>
    %295 = vector.multi_reduction <maximumf>, %294, %cst_167 [1] : vector<16x16xf32> to vector<16xf32>
    %296 = vector.shape_cast %295 : vector<16xf32> to vector<16x1xf32>
    %297 = vector.broadcast %296 : vector<16x1xf32> to vector<16x16xf32>
    %298 = arith.subf %294, %297 : vector<16x16xf32>
    %299 = math.exp %298 : vector<16x16xf32>
    %cst_168 = arith.constant dense<0.000000e+00> : vector<16xf32>
    %300 = vector.multi_reduction <add>, %299, %cst_168 [1] : vector<16x16xf32> to vector<16xf32>
    %301 = vector.shape_cast %300 : vector<16xf32> to vector<16x1xf32>
    %302 = tpu.reciprocal %301 {approx = true} : vector<16x1xf32> -> vector<16x1xf32>
    %303 = vector.broadcast %302 : vector<16x1xf32> to vector<16x16xf32>
    %304 = arith.mulf %299, %303 : vector<16x16xf32>
    %cst_169 = arith.constant dense<0.000000e+00> : vector<16x16xf32>
    %305 = tpu.matmul %304, %291, %cst_169 {dimension_numbers = #tpu.dot_dimension_numbers<[1], [0], [0], [1], [0, 0, 1, 1], [], []>} : vector<16x16xf32>, vector<16x16xf32>, vector<16x16xf32> -> vector<16x16xf32>
    %306 = tpu.concatenate %254, %271, %288, %305 in 1 : vector<16x16xf32>, vector<16x16xf32>, vector<16x16xf32>, vector<16x16xf32> -> vector<16x64xf32>
    %307 = arith.truncf %306 : vector<16x64xf32> to vector<16x64xbf16>
    %c1_170 = arith.constant 1 : index
    %c0_171 = arith.constant 0 : index
    %c0_172 = arith.constant 0 : index
    %308 = vector.load %arg4[%c1_170, %c0_171, %c0_172] : memref<2x64x64xbf16, #tpu.memory_space<vmem>>, vector<1x64x64xbf16>
    %309 = vector.shape_cast %308 : vector<1x64x64xbf16> to vector<64x64xbf16>
    %cst_173 = arith.constant dense<0.000000e+00> : vector<16x64xf32>
    %310 = tpu.matmul %307, %309, %cst_173 {dimension_numbers = #tpu.dot_dimension_numbers<[1], [0], [0], [1], [0, 0, 1, 1], [], []>} : vector<16x64xbf16>, vector<64x64xbf16>, vector<16x64xf32> -> vector<16x64xf32>
    %311 = vector.broadcast %202 : vector<1x64xf32> to vector<16x64xf32>
    %312 = arith.addf %310, %311 : vector<16x64xf32>
    %313 = vector.broadcast %190 : vector<1x64xf32> to vector<16x64xf32>
    %314 = arith.mulf %313, %312 : vector<16x64xf32>
    %315 = arith.addf %184, %314 : vector<16x64xf32>
    %cst_174 = arith.constant dense<0.000000e+00> : vector<16xf32>
    %316 = vector.multi_reduction <add>, %315, %cst_174 [1] : vector<16x64xf32> to vector<16xf32>
    %317 = vector.shape_cast %316 : vector<16xf32> to vector<16x1xf32>
    %cst_175 = arith.constant 6.400000e+01 : f32
    %318 = vector.broadcast %cst_175 : f32 to vector<16x1xf32>
    %319 = arith.divf %317, %318 : vector<16x1xf32>
    %320 = vector.broadcast %319 : vector<16x1xf32> to vector<16x64xf32>
    %321 = arith.subf %315, %320 : vector<16x64xf32>
    %322 = arith.mulf %321, %321 : vector<16x64xf32>
    %cst_176 = arith.constant dense<0.000000e+00> : vector<16xf32>
    %323 = vector.multi_reduction <add>, %322, %cst_176 [1] : vector<16x64xf32> to vector<16xf32>
    %324 = vector.shape_cast %323 : vector<16xf32> to vector<16x1xf32>
    %cst_177 = arith.constant 6.400000e+01 : f32
    %325 = vector.broadcast %cst_177 : f32 to vector<16x1xf32>
    %326 = arith.divf %324, %325 : vector<16x1xf32>
    %327 = vector.broadcast %319 : vector<16x1xf32> to vector<16x64xf32>
    %328 = arith.subf %315, %327 : vector<16x64xf32>
    %cst_178 = arith.constant 9.99999997E-7 : f32
    %329 = vector.broadcast %cst_178 : f32 to vector<16x1xf32>
    %330 = arith.addf %326, %329 : vector<16x1xf32>
    %331 = math.rsqrt %330 : vector<16x1xf32>
    %332 = vector.broadcast %331 : vector<16x1xf32> to vector<16x64xf32>
    %333 = arith.mulf %328, %332 : vector<16x64xf32>
    %cst_179 = arith.constant 1.000000e+00 : f32
    %334 = vector.broadcast %cst_179 : f32 to vector<1x64xf32>
    %335 = arith.addf %334, %194 : vector<1x64xf32>
    %336 = vector.broadcast %335 : vector<1x64xf32> to vector<16x64xf32>
    %337 = arith.mulf %333, %336 : vector<16x64xf32>
    %338 = vector.broadcast %192 : vector<1x64xf32> to vector<16x64xf32>
    %339 = arith.addf %337, %338 : vector<16x64xf32>
    %340 = arith.truncf %339 : vector<16x64xf32> to vector<16x64xbf16>
    %c1_180 = arith.constant 1 : index
    %c0_181 = arith.constant 0 : index
    %c0_182 = arith.constant 0 : index
    %341 = vector.load %arg5[%c1_180, %c0_181, %c0_182] : memref<2x64x256xbf16, #tpu.memory_space<vmem>>, vector<1x64x256xbf16>
    %342 = vector.shape_cast %341 : vector<1x64x256xbf16> to vector<64x256xbf16>
    %cst_183 = arith.constant dense<0.000000e+00> : vector<16x256xf32>
    %343 = tpu.matmul %340, %342, %cst_183 {dimension_numbers = #tpu.dot_dimension_numbers<[1], [0], [0], [1], [0, 0, 1, 1], [], []>} : vector<16x64xbf16>, vector<64x256xbf16>, vector<16x256xf32> -> vector<16x256xf32>
    %344 = vector.broadcast %204 : vector<1x256xf32> to vector<16x256xf32>
    %345 = arith.addf %343, %344 : vector<16x256xf32>
    %cst_184 = arith.constant 5.000000e-01 : f32
    %346 = vector.broadcast %cst_184 : f32 to vector<16x256xf32>
    %347 = arith.mulf %346, %345 : vector<16x256xf32>
    %cst_185 = arith.constant 4.471500e-02 : f32
    %348 = vector.broadcast %cst_185 : f32 to vector<16x256xf32>
    %349 = arith.mulf %348, %345 : vector<16x256xf32>
    %350 = arith.mulf %349, %345 : vector<16x256xf32>
    %351 = arith.mulf %350, %345 : vector<16x256xf32>
    %352 = arith.addf %345, %351 : vector<16x256xf32>
    %cst_186 = arith.constant 0.797884583 : f32
    %353 = vector.broadcast %cst_186 : f32 to vector<16x256xf32>
    %354 = arith.mulf %353, %352 : vector<16x256xf32>
    %355 = math.tanh %354 : vector<16x256xf32>
    %cst_187 = arith.constant 1.000000e+00 : f32
    %356 = vector.broadcast %cst_187 : f32 to vector<16x256xf32>
    %357 = arith.addf %356, %355 : vector<16x256xf32>
    %358 = arith.mulf %347, %357 : vector<16x256xf32>
    %359 = arith.truncf %358 : vector<16x256xf32> to vector<16x256xbf16>
    %c1_188 = arith.constant 1 : index
    %c0_189 = arith.constant 0 : index
    %c0_190 = arith.constant 0 : index
    %360 = vector.load %arg6[%c1_188, %c0_189, %c0_190] : memref<2x256x64xbf16, #tpu.memory_space<vmem>>, vector<1x256x64xbf16>
    %361 = vector.shape_cast %360 : vector<1x256x64xbf16> to vector<256x64xbf16>
    %cst_191 = arith.constant dense<0.000000e+00> : vector<16x64xf32>
    %362 = tpu.matmul %359, %361, %cst_191 {dimension_numbers = #tpu.dot_dimension_numbers<[1], [0], [0], [1], [0, 0, 1, 1], [], []>} : vector<16x256xbf16>, vector<256x64xbf16>, vector<16x64xf32> -> vector<16x64xf32>
    %363 = vector.broadcast %207 : vector<1x64xf32> to vector<16x64xf32>
    %364 = arith.addf %362, %363 : vector<16x64xf32>
    %365 = vector.broadcast %196 : vector<1x64xf32> to vector<16x64xf32>
    %366 = arith.mulf %365, %364 : vector<16x64xf32>
    %367 = arith.addf %315, %366 : vector<16x64xf32>
    %c0_192 = arith.constant 0 : index
    %c0_193 = arith.constant 0 : index
    %c0_194 = arith.constant 0 : index
    %368 = vector.load %arg8[%c0_192, %c0_193, %c0_194] : memref<1x16x64xf32, #tpu.memory_space<vmem>>, vector<1x16x64xf32>
    %369 = vector.shape_cast %368 : vector<1x16x64xf32> to vector<16x64xf32>
    %370 = vector.shape_cast %367 : vector<16x64xf32> to vector<1x16x64xf32>
    tpu.vector_store %arg8[%c0_192, %c0_193, %c0_194], %370 {strides = array<i32>} : memref<1x16x64xf32, #tpu.memory_space<vmem>>, vector<1x16x64xf32>,
    return
  }
  func.func @transform_0(%arg0: i32) -> (i32, i32, i32) {
    %c0_i32 = arith.constant 0 : i32
    %c0_i32_0 = arith.constant 0 : i32
    %c0_i32_1 = arith.constant 0 : i32
    return %arg0, %c0_i32, %c0_i32_0 : i32, i32, i32
  }
  func.func @transform_1(%arg0: i32) -> (i32, i32, i32, i32, i32) {
    %c0_i32 = arith.constant 0 : i32
    %c0_i32_0 = arith.constant 0 : i32
    %c0_i32_1 = arith.constant 0 : i32
    %c0_i32_2 = arith.constant 0 : i32
    %c0_i32_3 = arith.constant 0 : i32
    return %arg0, %c0_i32, %c0_i32_0, %c0_i32_1, %c0_i32_2 : i32, i32, i32, i32, i32
  }
  func.func @transform_2(%arg0: i32) -> (i32, i32, i32) {
    %c0_i32 = arith.constant 0 : i32
    %c0_i32_0 = arith.constant 0 : i32
    %c0_i32_1 = arith.constant 0 : i32
    %c0_i32_2 = arith.constant 0 : i32
    return %c0_i32, %c0_i32_0, %c0_i32_1 : i32, i32, i32
  }
  func.func @transform_3(%arg0: i32) -> (i32, i32, i32) {
    %c0_i32 = arith.constant 0 : i32
    %c0_i32_0 = arith.constant 0 : i32
    %c0_i32_1 = arith.constant 0 : i32
    %c0_i32_2 = arith.constant 0 : i32
    return %c0_i32, %c0_i32_0, %c0_i32_1 : i32, i32, i32
  }
  func.func @transform_4(%arg0: i32) -> (i32, i32, i32) {
    %c0_i32 = arith.constant 0 : i32
    %c0_i32_0 = arith.constant 0 : i32
    %c0_i32_1 = arith.constant 0 : i32
    %c0_i32_2 = arith.constant 0 : i32
    return %c0_i32, %c0_i32_0, %c0_i32_1 : i32, i32, i32
  }
  func.func @transform_5(%arg0: i32) -> (i32, i32, i32) {
    %c0_i32 = arith.constant 0 : i32
    %c0_i32_0 = arith.constant 0 : i32
    %c0_i32_1 = arith.constant 0 : i32
    %c0_i32_2 = arith.constant 0 : i32
    return %c0_i32, %c0_i32_0, %c0_i32_1 : i32, i32, i32
  }
  func.func @transform_6(%arg0: i32) -> (i32, i32, i32, i32) {
    %c0_i32 = arith.constant 0 : i32
    %c0_i32_0 = arith.constant 0 : i32
    %c0_i32_1 = arith.constant 0 : i32
    %c0_i32_2 = arith.constant 0 : i32
    %c0_i32_3 = arith.constant 0 : i32
    return %c0_i32, %c0_i32_0, %c0_i32_1, %c0_i32_2 : i32, i32, i32, i32
  }
  func.func @transform_7(%arg0: i32) -> (i32, i32, i32) {
    %c0_i32 = arith.constant 0 : i32
    %c0_i32_0 = arith.constant 0 : i32
    %c0_i32_1 = arith.constant 0 : i32
    return %arg0, %c0_i32, %c0_i32_0 : i32, i32, i32
  }
}

</mosaic_0001>

<llo_original>
// kernel: _lambda_.1
$region0: #{_lambda_.1}
  #allocation0 [shape = 'u32[]', space=smem, size = 0x4, offset = 0x4, fixed_abs, tag = 'smem constant byte address 0x4 - core index']
  #allocation1 [shape = 'u32[144,128]{1,0:T(1,128)}', space=vmem, size = 0x12000, scoped, tag = 'internal scratch']
  %s0 = inlined_call_operand.vmem [shape: f32[2,16,64], index: 0, kind: input, shape index: {}]
  %s1 = inlined_call_operand.vmem [shape: f32[2,2,6,1,64], index: 1, kind: input, shape index: {}]
  %s2 = inlined_call_operand.vmem [shape: bf16[2,64,192], index: 2, kind: input, shape index: {}]
  %s3 = inlined_call_operand.vmem [shape: bf16[2,64,64], index: 3, kind: input, shape index: {}]
  %s4 = inlined_call_operand.vmem [shape: bf16[2,64,256], index: 4, kind: input, shape index: {}]
  %s5 = inlined_call_operand.vmem [shape: bf16[2,256,64], index: 5, kind: input, shape index: {}]
  %s6 = inlined_call_operand.vmem [shape: f32[2,4,1,256], index: 6, kind: input, shape index: {}]
  %s7 = inlined_call_operand.hbm [shape: f32[2,16,64], index: 7, kind: output, shape index: {}]
  %s8 = sld [smem:[#allocation0]]
  $region61: #{_lambda_.1} parent=0
    _
  %s10 = ssub.s32 1, %s8
  %s11 = scalar_select 0, %s10, %s8
  $region1: #{_lambda_.1} parent=0
    #allocation2 [shape = 'u8[16384]{0}', space=vmem, size = 0x4000, scoped, tag = 'output window, operand 0']
    #allocation3 [shape = 's32[2]{0}', space=sflag, size = 0x8, scoped, tag = 'scoped memory for _lambda_.1']
    %12 = vsyncpa [#allocation3], 0
    %s13 = scalar_lea.sflag [#allocation3], 1
    %14 = vsyncpa %s13, 0
    loop: start=0, step=1, limit=4
    $region2: #{_lambda_.1} parent=1 // loop_pre_header
      _
    $region3: #{_lambda_.1} parent=1 // loop_header
      %s16 = sphi 0, %s20
      %p17 = scmp.ge.s32.totalorder %s16, 4
      %s26 = sphi 0, %s28
      %s29 = sphi 0, %s26
      %s30 = sphi 0, %s29
      %s46 = sphi 0, %s30
      %s52 = sphi 0, %s54
      %s55 = sphi 0, %s52
      %s56 = sphi 0, %s55
      %s72 = sphi 0, %s56
      %s76 = sphi 0, %s76
      %s78 = sphi 0, %s76
      %s79 = sphi 0, %s78
      %s93 = sphi 0, %s79
      %s97 = sphi 0, %s97
      %s99 = sphi 0, %s97
      %s100 = sphi 0, %s99
      %s114 = sphi 0, %s100
      %s118 = sphi 0, %s118
      %s120 = sphi 0, %s118
      %s121 = sphi 0, %s120
      %s135 = sphi 0, %s121
      %s139 = sphi 0, %s139
      %s141 = sphi 0, %s139
      %s142 = sphi 0, %s141
      %s156 = sphi 0, %s142
      %s160 = sphi 0, %s160
      %s162 = sphi 0, %s160
      %s163 = sphi 0, %s162
      %s177 = sphi 0, %s163
      %s183 = sphi 0, %s185
      %s186 = sphi 0, %s183
      %s187 = sphi 0, %s186
      %s203 = sphi 0, %s187
    $region4: #{_lambda_.1} parent=1 // loop_header_branch
      %19 = sbr.rel (%p17) target = $region8
    $region5: #{_lambda_.1} parent=1 // loop_body
      %s21 = ssub.s32 %s16, 1
      %s22 = ssub.s32 %s16, 2
      %s23 = sadd.s32 %s16, 1
      %s24 = ssub.s32 %s16, %s23
      %p25 = scmp.eq.s32.totalorder %s24, 0
      %s27 = sadd.s32 %s26, 1
      %s28 = scalar_select %p25, %s26, %s27
      %p31 = pneg %p25
      %p32 = scmp.eq.s32.totalorder %s16, 1
      %p33 = por %p31, %p32
      %p34 = scmp.ne.s32.totalorder %s26, %s29
      %p35 = scmp.eq.s32.totalorder %s16, 0
      %p36 = por %p34, %p35
      %p37 = scmp.ne.s32.totalorder %s26, %s29
      %p38 = scmp.eq.s32.totalorder %s21, 1
      %p39 = por %p37, %p38
      %p40 = scmp.ne.s32.totalorder %s29, %s30
      %p41 = scmp.eq.s32.totalorder %s21, 0
      %p42 = por %p40, %p41
      %p43 = scmp.ne.s32.totalorder %s29, %s30
      %p44 = scmp.eq.s32.totalorder %s22, 1
      %p45 = por %p43, %p44
      %p47 = scmp.ne.s32.totalorder %s30, %s46
      %p48 = scmp.eq.s32.totalorder %s22, 0
      %p49 = por %p47, %p48
      %s50 = ssub.s32 %s16, %s23
      %p51 = scmp.eq.s32.totalorder %s50, 0
      %s53 = sadd.s32 %s52, 1
      %s54 = scalar_select %p51, %s52, %s53
      %p57 = pneg %p51
      %p58 = scmp.eq.s32.totalorder %s16, 1
      %p59 = por %p57, %p58
      %p60 = scmp.ne.s32.totalorder %s52, %s55
      %p61 = scmp.eq.s32.totalorder %s16, 0
      %p62 = por %p60, %p61
      %p63 = scmp.ne.s32.totalorder %s52, %s55
      %p64 = scmp.eq.s32.totalorder %s21, 1
      %p65 = por %p63, %p64
      %p66 = scmp.ne.s32.totalorder %s55, %s56
      %p67 = scmp.eq.s32.totalorder %s21, 0
      %p68 = por %p66, %p67
      %p69 = scmp.ne.s32.totalorder %s55, %s56
      %p70 = scmp.eq.s32.totalorder %s22, 1
      %p71 = por %p69, %p70
      %p73 = scmp.ne.s32.totalorder %s56, %s72
      %p74 = scmp.eq.s32.totalorder %s22, 0
      %p75 = por %p73, %p74
      %s77 = sadd.s32 %s76, 1
      %p80 = scmp.eq.s32.totalorder %s16, 1
      %p81 = scmp.ne.s32.totalorder %s76, %s78
      %p82 = scmp.eq.s32.totalorder %s16, 0
      %p83 = por %p81, %p82
      %p84 = scmp.ne.s32.totalorder %s76, %s78
      %p85 = scmp.eq.s32.totalorder %s21, 1
      %p86 = por %p84, %p85
      %p87 = scmp.ne.s32.totalorder %s78, %s79
      %p88 = scmp.eq.s32.totalorder %s21, 0
      %p89 = por %p87, %p88
      %p90 = scmp.ne.s32.totalorder %s78, %s79
      %p91 = scmp.eq.s32.totalorder %s22, 1
      %p92 = por %p90, %p91
      %p94 = scmp.ne.s32.totalorder %s79, %s93
      %p95 = scmp.eq.s32.totalorder %s22, 0
      %p96 = por %p94, %p95
      %s98 = sadd.s32 %s97, 1
      %p101 = scmp.eq.s32.totalorder %s16, 1
      %p102 = scmp.ne.s32.totalorder %s97, %s99
      %p103 = scmp.eq.s32.totalorder %s16, 0
      %p104 = por %p102, %p103
      %p105 = scmp.ne.s32.totalorder %s97, %s99
      %p106 = scmp.eq.s32.totalorder %s21, 1
      %p107 = por %p105, %p106
      %p108 = scmp.ne.s32.totalorder %s99, %s100
      %p109 = scmp.eq.s32.totalorder %s21, 0
      %p110 = por %p108, %p109
      %p111 = scmp.ne.s32.totalorder %s99, %s100
      %p112 = scmp.eq.s32.totalorder %s22, 1
      %p113 = por %p111, %p112
      %p115 = scmp.ne.s32.totalorder %s100, %s114
      %p116 = scmp.eq.s32.totalorder %s22, 0
      %p117 = por %p115, %p116
      %s119 = sadd.s32 %s118, 1
      %p122 = scmp.eq.s32.totalorder %s16, 1
      %p123 = scmp.ne.s32.totalorder %s118, %s120
      %p124 = scmp.eq.s32.totalorder %s16, 0
      %p125 = por %p123, %p124
      %p126 = scmp.ne.s32.totalorder %s118, %s120
      %p127 = scmp.eq.s32.totalorder %s21, 1
      %p128 = por %p126, %p127
      %p129 = scmp.ne.s32.totalorder %s120, %s121
      %p130 = scmp.eq.s32.totalorder %s21, 0
      %p131 = por %p129, %p130
      %p132 = scmp.ne.s32.totalorder %s120, %s121
      %p133 = scmp.eq.s32.totalorder %s22, 1
      %p134 = por %p132, %p133
      %p136 = scmp.ne.s32.totalorder %s121, %s135
      %p137 = scmp.eq.s32.totalorder %s22, 0
      %p138 = por %p136, %p137
      %s140 = sadd.s32 %s139, 1
      %p143 = scmp.eq.s32.totalorder %s16, 1
      %p144 = scmp.ne.s32.totalorder %s139, %s141
      %p145 = scmp.eq.s32.totalorder %s16, 0
      %p146 = por %p144, %p145
      %p147 = scmp.ne.s32.totalorder %s139, %s141
      %p148 = scmp.eq.s32.totalorder %s21, 1
      %p149 = por %p147, %p148
      %p150 = scmp.ne.s32.totalorder %s141, %s142
      %p151 = scmp.eq.s32.totalorder %s21, 0
      %p152 = por %p150, %p151
      %p153 = scmp.ne.s32.totalorder %s141, %s142
      %p154 = scmp.eq.s32.totalorder %s22, 1
      %p155 = por %p153, %p154
      %p157 = scmp.ne.s32.totalorder %s142, %s156
      %p158 = scmp.eq.s32.totalorder %s22, 0
      %p159 = por %p157, %p158
      %s161 = sadd.s32 %s160, 1
      %p164 = scmp.eq.s32.totalorder %s16, 1
      %p165 = scmp.ne.s32.totalorder %s160, %s162
      %p166 = scmp.eq.s32.totalorder %s16, 0
      %p167 = por %p165, %p166
      %p168 = scmp.ne.s32.totalorder %s160, %s162
      %p169 = scmp.eq.s32.totalorder %s21, 1
      %p170 = por %p168, %p169
      %p171 = scmp.ne.s32.totalorder %s162, %s163
      %p172 = scmp.eq.s32.totalorder %s21, 0
      %p173 = por %p171, %p172
      %p174 = scmp.ne.s32.totalorder %s162, %s163
      %p175 = scmp.eq.s32.totalorder %s22, 1
      %p176 = por %p174, %p175
      %p178 = scmp.ne.s32.totalorder %s163, %s177
      %p179 = scmp.eq.s32.totalorder %s22, 0
      %p180 = por %p178, %p179
      %s181 = ssub.s32 %s16, %s23
      %p182 = scmp.eq.s32.totalorder %s181, 0
      %s184 = sadd.s32 %s183, 1
      %s185 = scalar_select %p182, %s183, %s184
      %p188 = pneg %p182
      %p189 = scmp.eq.s32.totalorder %s16, 1
      %p190 = por %p188, %p189
      %p191 = scmp.ne.s32.totalorder %s183, %s186
      %p192 = scmp.eq.s32.totalorder %s16, 0
      %p193 = por %p191, %p192
      %p194 = scmp.ne.s32.totalorder %s183, %s186
      %p195 = scmp.eq.s32.totalorder %s21, 1
      %p196 = por %p194, %p195
      %p197 = scmp.ne.s32.totalorder %s186, %s187
      %p198 = scmp.eq.s32.totalorder %s21, 0
      %p199 = por %p197, %p198
      %p200 = scmp.ne.s32.totalorder %s186, %s187
      %p201 = scmp.eq.s32.totalorder %s22, 1
      %p202 = por %p200, %p201
      %p204 = scmp.ne.s32.totalorder %s187, %s203
      %p205 = scmp.eq.s32.totalorder %s22, 0
      %p206 = por %p204, %p205
      %p207 = scmp.le.s32.totalorder 1, %s16
      %p208 = scmp.lt.s32.totalorder %s16, 3
      %p209 = pnand %p207, %p208
      %p210 = pneg %p209
      // Predicated region
      $region9: #{_lambda_.1} parent=5 // pred_check
        _
      $region10: #{_lambda_.1} parent=5 // pred_check_branch
        %212 = sbr.rel (%p209) target = $region12
      $region11: #{_lambda_.1} parent=5 // pred_region
        %s213 = ssub.s32 %s16, 1
        // Predicated region
        $region13: #{_lambda_.1} parent=11 // pred_check
          %p214 = pneg %p89
        $region14: #{_lambda_.1} parent=11 // pred_check_branch
          %216 = sbr.rel (%p214) target = $region16
        $region15: #{_lambda_.1} parent=11 // pred_region
          _
        $region16: #{_lambda_.1} parent=11 // pred_fallthru
          _
        // Predicated region
        $region17: #{_lambda_.1} parent=11 // pred_check
          %p217 = pneg %p110
        $region18: #{_lambda_.1} parent=11 // pred_check_branch
          %219 = sbr.rel (%p217) target = $region20
        $region19: #{_lambda_.1} parent=11 // pred_region
          _
        $region20: #{_lambda_.1} parent=11 // pred_fallthru
          _
        // Predicated region
        $region21: #{_lambda_.1} parent=11 // pred_check
          %p220 = pneg %p131
        $region22: #{_lambda_.1} parent=11 // pred_check_branch
          %222 = sbr.rel (%p220) target = $region24
        $region23: #{_lambda_.1} parent=11 // pred_region
          _
        $region24: #{_lambda_.1} parent=11 // pred_fallthru
          _
        // Predicated region
        $region25: #{_lambda_.1} parent=11 // pred_check
          %p223 = pneg %p152
        $region26: #{_lambda_.1} parent=11 // pred_check_branch
          %225 = sbr.rel (%p223) target = $region28
        $region27: #{_lambda_.1} parent=11 // pred_region
          _
        $region28: #{_lambda_.1} parent=11 // pred_fallthru
          _
        // Predicated region
        $region29: #{_lambda_.1} parent=11 // pred_check
          %p226 = pneg %p173
        $region30: #{_lambda_.1} parent=11 // pred_check_branch
          %228 = sbr.rel (%p226) target = $region32
        $region31: #{_lambda_.1} parent=11 // pred_region
          _
        $region32: #{_lambda_.1} parent=11 // pred_fallthru
          _
      $region12: #{_lambda_.1} parent=5 // pred_fallthru
        _
      %p229 = scmp.lt.s32.totalorder %s16, 2
      // Predicated region
      $region33: #{_lambda_.1} parent=5 // pred_check
        %p230 = pneg %p229
      $region34: #{_lambda_.1} parent=5 // pred_check_branch
        %232 = sbr.rel (%p230) target = $region36
      $region35: #{_lambda_.1} parent=5 // pred_region
        // Predicated region
        $region37: #{_lambda_.1} parent=35 // pred_check
          %p233 = pneg %p36
        $region38: #{_lambda_.1} parent=35 // pred_check_branch
          %235 = sbr.rel (%p233) target = $region40
        $region39: #{_lambda_.1} parent=35 // pred_region
          %p236 = scmp.lt.s32.totalorder %s16, 1
          %s237 = scalar_select %p236, %s16, 1
          %s238 = smul.addr %s237, 2
          %s239 = smul.addr %s238, 8
          %s240 = scalar_lea.vmem %s0, %s239
        $region40: #{_lambda_.1} parent=35 // pred_fallthru
          _
        // Predicated region
        $region41: #{_lambda_.1} parent=35 // pred_check
          %p241 = pneg %p62
        $region42: #{_lambda_.1} parent=35 // pred_check_branch
          %243 = sbr.rel (%p241) target = $region44
        $region43: #{_lambda_.1} parent=35 // pred_region
          %p244 = scmp.lt.s32.totalorder %s16, 1
          %s245 = scalar_select %p244, %s16, 1
          %s246 = smul.addr %s245, 12
          %s247 = scalar_lea.vmem %s1, %s246
        $region44: #{_lambda_.1} parent=35 // pred_fallthru
          _
      $region36: #{_lambda_.1} parent=5 // pred_fallthru
        _
      %p248 = scmp.le.s32.totalorder 1, %s16
      %p249 = scmp.lt.s32.totalorder %s16, 3
      %p250 = pnand %p248, %p249
      %p251 = pneg %p250
      // Predicated region
      $region45: #{_lambda_.1} parent=5 // pred_check
        _
      $region46: #{_lambda_.1} parent=5 // pred_check_branch
        %253 = sbr.rel (%p250) target = $region48
      $region47: #{_lambda_.1} parent=5 // pred_region
        %s254 = ssub.s32 %s16, 1
        %p255 = scmp.lt.s32.totalorder %s21, 1
        %s256 = scalar_select %p255, %s21, 1
        %s257 = smul.addr %s256, 2
        %s258 = smul.addr %s257, 8
        %s259 = scalar_lea.vmem %s0, %s258
        %p260 = pneg %p42
        %p261 = pneg %p39
        %p262 = scmp.lt.s32.totalorder %s21, 1
        %s263 = scalar_select %p262, %s21, 1
        %s264 = smul.addr %s263, 12
        %s265 = scalar_lea.vmem %s1, %s264
        %p266 = pneg %p68
        %p267 = pneg %p65
        %p268 = pneg %p89
        %p269 = pneg %p86
        %p270 = pneg %p110
        %p271 = pneg %p107
        %p272 = pneg %p131
        %p273 = pneg %p128
        %p274 = pneg %p152
        %p275 = pneg %p149
        %p276 = pneg %p173
        %p277 = pneg %p170
        %p278 = pneg %p199
        %p279 = pneg %p196
        %s280 = sand.u32 %s186, 1
        %s281 = scalar_lea.sflag [#allocation3], %s280
        %s282 = sand.u32 %s186, 1
        %s283 = smul.addr %s282, 16
        %s284 = scalar_lea.vmem [#allocation2], %s283
        %p285 = scmp.lt.s32.totalorder %s21, 1
        %s286 = scalar_select %p285, %s21, 1
        %s287 = smul.addr %s286, 2
        %s288 = smul.addr %s287, 8
        %s289 = scalar_lea.vmem %s0, %s288
        %p290 = scmp.lt.s32.totalorder %s21, 1
        %s291 = scalar_select %p290, %s21, 1
        %s292 = smul.addr %s291, 12
        %s293 = scalar_lea.vmem %s1, %s292
        %v295 = vld [vmem:[%s289] sm:$0xff]
        %v296 = vld [vmem:[%s289 + $0x8] sm:$0xff]
        %v297 = vld [vmem:[%s293] sm:$0x1]
        %s298 = scalar_lea.vmem %s293, 1
        %v299 = vld [vmem:[%s298] sm:$0x1]
        %s300 = scalar_lea.vmem %s293, 2
        %v301 = vld [vmem:[%s300] sm:$0x1]
        %s302 = scalar_lea.vmem %s293, 3
        %v303 = vld [vmem:[%s302] sm:$0x1]
        %s304 = scalar_lea.vmem %s293, 4
        %v305 = vld [vmem:[%s304] sm:$0x1]
        %s306 = scalar_lea.vmem %s293, 5
        %v307 = vld [vmem:[%s306] sm:$0x1]
        %v308 = vld [vmem:[%s6] sm:$0x3]
        %s309 = scalar_lea.vmem %s6, 2
        %v310 = vld [vmem:[%s309] sm:$0x3]
        %s311 = scalar_lea.vmem %s6, 4
        %v312 = vld [vmem:[%s311] sm:$0x3]
        %s313 = scalar_lea.vmem %s6, 6
        %v314 = vld [vmem:[%s313] sm:$0x3]
        %vm315 = vcmask 523264
        %v316 = vsel %vm315, %v295, 0.0
        %317 = vadd.xlane.f32.xlu0 %v316
        %v318 = vpop.xlane.xlu0 %317
        %v319 = vsel %vm315, %v296, 0.0
        %320 = vadd.xlane.f32.xlu0 %v319
        %v321 = vpop.xlane.xlu0 %320
        %v322 = vrcp.pop 64.0
        %v323 = vmul.f32 %v318, %v322
        %v324 = vmul.f32 %v321, %v322
        %v325 = vsub.f32 %v295, %v323
        %v326 = vsub.f32 %v296, %v324
        %v327 = vmul.f32 %v325, %v325
        %v328 = vmul.f32 %v326, %v326
        %v329 = vsel %vm315, %v327, 0.0
        %330 = vadd.xlane.f32.xlu0 %v329
        %v331 = vpop.xlane.xlu0 %330
        %v332 = vsel %vm315, %v328, 0.0
        %333 = vadd.xlane.f32.xlu0 %v332
        %v334 = vpop.xlane.xlu0 %333
        %v335 = vmul.f32 %v331, %v322
        %v336 = vmul.f32 %v334, %v322
        %v337 = vadd.f32 %v335, 1e-06
        %v338 = vadd.f32 %v336, 1e-06
        %v339 = vrsqrt.pop %v337
        %v340 = vrsqrt.pop %v338
        %v341 = vmul.f32 %v325, %v339
        %v342 = vmul.f32 %v326, %v340
        %v343 = vadd.f32 %v299, 1.0
        %v345 = vlaneseq
        %v346 = vshrl.u32 %v345, 7
        %v347 = vsub.s32 0, %v346
        %v348 = vrot.slane %v343, %v347
        %v350 = vmul.f32 %v341, %v348
        %v351 = vmul.f32 %v342, %v348
        %v353 = vlaneseq
        %v354 = vshrl.u32 %v353, 7
        %v355 = vsub.s32 0, %v354
        %v356 = vrot.slane %v297, %v355
        %v358 = vadd.f32 %v350, %v356
        %v359 = vadd.f32 %v351, %v356
        %v360 = vpack.c.bf16 %v359, %v358
        %v361 = vld [vmem:[%s2] sm:$0xff]
        %v362 = vld [vmem:[%s2 + $0x8] sm:$0xff]
        %v363 = vld [vmem:[%s2 + $0x10] sm:$0xff]
        %v364 = vld [vmem:[%s2 + $0x18] sm:$0xff]
        %v365 = vld [vmem:[%s2 + $0x20] sm:$0xff]
        %v366 = vld [vmem:[%s2 + $0x28] sm:$0xff]
        %v367 = vld [vmem:[%s2 + $0x30] sm:$0xff]
        %v368 = vld [vmem:[%s2 + $0x38] sm:$0xff]
        %v370 = vlaneseq
        %v371 = vshrl.u32 %v370, 7
        %v372 = vsub.s32 0, %v371
        %v373 = vrot.slane %v308, %v372
        %v374 = vlaneseq
        %v375 = vshrl.u32 %v374, 7
        %v376 = vsub.s32 1, %v375
        %v377 = vrot.slane %v308, %v376
        %v388 = vunpack.c.l.b16 %v361
        %v389 = vunpack.c.h.b16 %v361
        %v390 = vunpack.c.l.b16 %v362
        %v391 = vunpack.c.h.b16 %v362
        %v392 = vunpack.c.l.b16 %v363
        %v393 = vunpack.c.h.b16 %v363
        %v394 = vunpack.c.l.b16 %v364
        %v395 = vunpack.c.h.b16 %v364
        %v396 = vunpack.c.l.b16 %v365
        %v397 = vunpack.c.h.b16 %v365
        %v398 = vunpack.c.l.b16 %v366
        %v399 = vunpack.c.h.b16 %v366
        %v400 = vunpack.c.l.b16 %v367
        %v401 = vunpack.c.h.b16 %v367
        %v402 = vunpack.c.l.b16 %v368
        %v403 = vunpack.c.h.b16 %v368
        %v404 = vpack.c.b16 %v390, %v388
        %v405 = vpack.c.b16 %v391, %v389
        %v406 = vpack.c.b16 %v394, %v392
        %v407 = vpack.c.b16 %v395, %v393
        %v408 = vpack.c.b16 %v398, %v396
        %v409 = vpack.c.b16 %v399, %v397
        %v410 = vpack.c.b16 %v402, %v400
        %v411 = vpack.c.b16 %v403, %v401
        %v421 = vsel %vm315, %v360, 0
        %423 = vmatprep.subr.bf16.mxu0 %v405
        %424 = vmatpush1.bf16.msra.mxu0 %v404
        %425 = vmatprep.subr.bf16.mxu0 %v407
        %426 = vmatpush1.bf16.msra.mxu0 %v406
        %427 = vmatprep.subr.bf16.mxu0 %v409
        %428 = vmatpush1.bf16.msra.mxu0 %v408
        %429 = vmatprep.subr.bf16.mxu0 %v411
        %430 = vmatpush1.bf16.msra.mxu0 %v410
        %431 = vmatprep.subr.bf16.mxu0 0
        %432 = vmatpush1.bf16.msra.mxu0 0
        %433 = vmatprep.subr.bf16.mxu0 0
        %434 = vmatpush1.bf16.msra.mxu0 0
        %435 = vmatprep.subr.bf16.mxu0 0
        %436 = vmatpush1.bf16.msra.mxu0 0
        %437 = vmatprep.subr.bf16.mxu0 0
        %438 = vmatpush1.bf16.msra.mxu0 0
        %439 = vmatprep.subr.bf16.mxu0 0
        %440 = vmatpush1.bf16.msra.mxu0 0
        %441 = vmatprep.subr.bf16.mxu0 0
        %442 = vmatpush1.bf16.msra.mxu0 0
        %443 = vmatprep.subr.bf16.mxu0 0
        %444 = vmatpush1.bf16.msra.mxu0 0
        %445 = vmatprep.subr.bf16.mxu0 0
        %446 = vmatpush1.bf16.msra.mxu0 0
        %447 = vmatprep.subr.bf16.mxu0 0
        %448 = vmatpush1.bf16.msra.mxu0 0
        %449 = vmatprep.subr.bf16.mxu0 0
        %450 = vmatpush1.bf16.msra.mxu0 0
        %451 = vmatprep.subr.bf16.mxu0 0
        %452 = vmatpush1.bf16.msra.mxu0 0
        %453 = vmatprep.subr.bf16.mxu0 0
        %454 = vmatpush1.bf16.msra.mxu0 0
        %455 = vmatprep.mubr.bf16.mxu0 0
        %456 = vmatmul.mubr.bf16.gmra.mrb[0].mxu0 %v421
        %v457 = vpop.f32.mrb[0].mxu0
        %v458 = vadd.f32 %v373, %v457
        %v459 = vpop.f32.mrb[0].mxu0
        %v460 = vadd.f32 %v377, %v459
        %v461 = vpop.f32.mrb[0].mxu0
        %v462 = vadd.f32 %v373, %v461
        %v463 = vpop.f32.mrb[0].mxu0
        %v464 = vadd.f32 %v377, %v463
        %465 = vdwg.mxu0
        %v466 = vmul.f32 %v458, 0.25
        %v467 = vmul.f32 %v462, 0.25
        %470 = vrot.lane.b32.xlu0 %v458, 64
        %v471 = vpop.permute.xlu0 %470
        %472 = vrot.lane.b32.xlu0 %v462, 64
        %v473 = vpop.permute.xlu0 %472
        %vm474 = vcmask 130048
        %v476 = vsel %vm474, %v466, 0
        %v479 = vsel %vm474, %v467, 0
        %v481 = vsel %vm474, %v471, 0
        %v483 = vsel %vm474, %v473, 0
        %485 = vmatprep.subr.mxu0 0.0
        %486 = vmatpush1.xpose.msra.mxu0 %v481
        %487 = vmatprep.subr.mxu0 0.0
        %488 = vmatpush1.xpose.msra.mxu0 %v483
        %489 = vmatprep.subr.mxu0 0.0
        %490 = vmatpush1.xpose.msra.mxu0 0.0
        %491 = vmatprep.subr.mxu0 0.0
        %492 = vmatpush1.xpose.msra.mxu0 0.0
        %493 = vmatprep.subr.mxu0 0.0
        %494 = vmatpush1.xpose.msra.mxu0 0.0
        %495 = vmatprep.subr.mxu0 0.0
        %496 = vmatpush1.xpose.msra.mxu0 0.0
        %497 = vmatprep.subr.mxu0 0.0
        %498 = vmatpush1.xpose.msra.mxu0 0.0
        %499 = vmatprep.subr.mxu0 0.0
        %500 = vmatpush1.xpose.msra.mxu0 0.0
        %501 = vmatprep.subr.mxu0 0.0
        %502 = vmatpush1.xpose.msra.mxu0 0.0
        %503 = vmatprep.subr.mxu0 0.0
        %504 = vmatpush1.xpose.msra.mxu0 0.0
        %505 = vmatprep.subr.mxu0 0.0
        %506 = vmatpush1.xpose.msra.mxu0 0.0
        %507 = vmatprep.subr.mxu0 0.0
        %508 = vmatpush1.xpose.msra.mxu0 0.0
        %509 = vmatprep.subr.mxu0 0.0
        %510 = vmatpush1.xpose.msra.mxu0 0.0
        %511 = vmatprep.subr.mxu0 0.0
        %512 = vmatpush1.xpose.msra.mxu0 0.0
        %513 = vmatprep.subr.mxu0 0.0
        %514 = vmatpush1.xpose.msra.mxu0 0.0
        %515 = vmatprep.subr.mxu0 0.0
        %516 = vmatpush1.xpose.msra.mxu0 0.0
        %517 = vmatprep.subr.mxu0 0.0
        %518 = vmatpush1.xpose.msra.mxu0 0.0
        %519 = vmatprep.subr.mxu0 0.0
        %520 = vmatpush1.xpose.msra.mxu0 0.0
        %521 = vmatprep.subr.mxu0 0.0
        %522 = vmatpush1.xpose.msra.mxu0 0.0
        %523 = vmatprep.subr.mxu0 0.0
        %524 = vmatpush1.xpose.msra.mxu0 0.0
        %525 = vmatprep.subr.mxu0 0.0
        %526 = vmatpush1.xpose.msra.mxu0 0.0
        %527 = vmatprep.subr.mxu0 0.0
        %528 = vmatpush1.xpose.msra.mxu0 0.0
        %529 = vmatprep.subr.mxu0 0.0
        %530 = vmatpush1.xpose.msra.mxu0 0.0
        %531 = vmatprep.subr.mxu0 0.0
        %532 = vmatpush1.xpose.msra.mxu0 0.0
        %533 = vmatprep.subr.mxu0 0.0
        %534 = vmatpush1.xpose.msra.mxu0 0.0
        %535 = vmatprep.subr.mxu0 0.0
        %536 = vmatpush1.xpose.msra.mxu0 0.0
        %537 = vmatprep.subr.mxu0 0.0
        %538 = vmatpush1.xpose.msra.mxu0 0.0
        %539 = vmatprep.subr.mxu0 0.0
        %540 = vmatpush1.xpose.msra.mxu0 0.0
        %541 = vmatprep.subr.mxu0 0.0
        %542 = vmatpush1.xpose.msra.mxu0 0.0
        %543 = vmatprep.subr.mxu0 0.0
        %544 = vmatpush1.xpose.msra.mxu0 0.0
        %545 = vmatprep.subr.mxu0 0.0
        %546 = vmatpush1.xpose.msra.mxu0 0.0
        %547 = vmatprep.subr.mxu0 0.0
        %548 = vmatpush1.xpose.msra.mxu0 0.0
        %549 = vmatprep.mubr.f32.mxu0 0.0
        %550 = vmatmul.mubr.f32.gmra.mrb[0].mxu0 %v476
        %v551 = vpop.f32.mrb[0].mxu0
        %v552 = vadd.f32 0.0, %v551
        %v553 = vpop.f32.mrb[0].mxu0
        %554 = vmatprep.mubr.f32.mxu0 0.0
        %555 = vmatmul.mubr.f32.gmra.mrb[0].mxu0 %v479
        %v556 = vpop.f32.mrb[0].mxu0
        %v557 = vadd.f32 0.0, %v556
        %v558 = vpop.f32.mrb[0].mxu0
        %559 = vdwg.mxu0
        %v560 = vsel %vm474, %v552, -inf
        %561 = vmax.xlane.f32.xlu0 %v560
        %v562 = vpop.xlane.xlu0 %561
        %v563 = vsel %vm474, %v557, -inf
        %564 = vmax.xlane.f32.xlu0 %v563
        %v565 = vpop.xlane.xlu0 %564
        %v566 = vsub.f32 %v552, %v562
        %v567 = vsub.f32 %v557, %v565
        %v568 = vmul.f32 %v566, 1.442695
        %v569 = vpow.pop %v568
        %v570 = vmul.f32 %v567, 1.442695
        %v571 = vpow.pop %v570
        %v572 = vsel %vm474, %v569, 0.0
        %573 = vadd.xlane.f32.xlu0 %v572
        %v574 = vpop.xlane.xlu0 %573
        %v575 = vsel %vm474, %v571, 0.0
        %576 = vadd.xlane.f32.xlu0 %v575
        %v577 = vpop.xlane.xlu0 %576
        %v578 = vrcp.pop %v574
        %v579 = vrcp.pop %v577
        %v580 = vmul.f32 %v569, %v578
        %v581 = vmul.f32 %v571, %v579
        %v583 = vsel %vm474, %v580, 0
        %v586 = vsel %vm474, %v581, 0
        %588 = vmatprep.subr.mxu0 0.0
        %589 = vmatpush1.msra.mxu0 %v460
        %590 = vmatprep.subr.mxu0 0.0
        %591 = vmatpush1.msra.mxu0 %v464
        %592 = vmatprep.subr.mxu0 0.0
        %593 = vmatpush1.msra.mxu0 0.0
        %594 = vmatprep.subr.mxu0 0.0
        %595 = vmatpush1.msra.mxu0 0.0
        %596 = vmatprep.subr.mxu0 0.0
        %597 = vmatpush1.msra.mxu0 0.0
        %598 = vmatprep.subr.mxu0 0.0
        %599 = vmatpush1.msra.mxu0 0.0
        %600 = vmatprep.subr.mxu0 0.0
        %601 = vmatpush1.msra.mxu0 0.0
        %602 = vmatprep.subr.mxu0 0.0
        %603 = vmatpush1.msra.mxu0 0.0
        %604 = vmatprep.subr.mxu0 0.0
        %605 = vmatpush1.msra.mxu0 0.0
        %606 = vmatprep.subr.mxu0 0.0
        %607 = vmatpush1.msra.mxu0 0.0
        %608 = vmatprep.subr.mxu0 0.0
        %609 = vmatpush1.msra.mxu0 0.0
        %610 = vmatprep.subr.mxu0 0.0
        %611 = vmatpush1.msra.mxu0 0.0
        %612 = vmatprep.subr.mxu0 0.0
        %613 = vmatpush1.msra.mxu0 0.0
        %614 = vmatprep.subr.mxu0 0.0
        %615 = vmatpush1.msra.mxu0 0.0
        %616 = vmatprep.subr.mxu0 0.0
        %617 = vmatpush1.msra.mxu0 0.0
        %618 = vmatprep.subr.mxu0 0.0
        %619 = vmatpush1.msra.mxu0 0.0
        %620 = vmatprep.subr.mxu0 0.0
        %621 = vmatpush1.msra.mxu0 0.0
        %622 = vmatprep.subr.mxu0 0.0
        %623 = vmatpush1.msra.mxu0 0.0
        %624 = vmatprep.subr.mxu0 0.0
        %625 = vmatpush1.msra.mxu0 0.0
        %626 = vmatprep.subr.mxu0 0.0
        %627 = vmatpush1.msra.mxu0 0.0
        %628 = vmatprep.subr.mxu0 0.0
        %629 = vmatpush1.msra.mxu0 0.0
        %630 = vmatprep.subr.mxu0 0.0
        %631 = vmatpush1.msra.mxu0 0.0
        %632 = vmatprep.subr.mxu0 0.0
        %633 = vmatpush1.msra.mxu0 0.0
        %634 = vmatprep.subr.mxu0 0.0
        %635 = vmatpush1.msra.mxu0 0.0
        %636 = vmatprep.subr.mxu0 0.0
        %637 = vmatpush1.msra.mxu0 0.0
        %638 = vmatprep.subr.mxu0 0.0
        %639 = vmatpush1.msra.mxu0 0.0
        %640 = vmatprep.subr.mxu0 0.0
        %641 = vmatpush1.msra.mxu0 0.0
        %642 = vmatprep.subr.mxu0 0.0
        %643 = vmatpush1.msra.mxu0 0.0
        %644 = vmatprep.subr.mxu0 0.0
        %645 = vmatpush1.msra.mxu0 0.0
        %646 = vmatprep.subr.mxu0 0.0
        %647 = vmatpush1.msra.mxu0 0.0
        %648 = vmatprep.subr.mxu0 0.0
        %649 = vmatpush1.msra.mxu0 0.0
        %650 = vmatprep.subr.mxu0 0.0
        %651 = vmatpush1.msra.mxu0 0.0
        %652 = vmatprep.mubr.f32.mxu0 0.0
        %653 = vmatmul.mubr.f32.gmra.mrb[0].mxu0 %v583
        %v654 = vpop.f32.mrb[0].mxu0
        %v655 = vadd.f32 0.0, %v654
        %v656 = vpop.f32.mrb[0].mxu0
        %657 = vmatprep.mubr.f32.mxu0 0.0
        %658 = vmatmul.mubr.f32.gmra.mrb[0].mxu0 %v586
        %v659 = vpop.f32.mrb[0].mxu0
        %v660 = vadd.f32 0.0, %v659
        %v661 = vpop.f32.mrb[0].mxu0
        %662 = vdwg.mxu0
        %663 = vrot.lane.b32.xlu0 %v466, 112
        %v664 = vpop.permute.xlu0 %663
        %665 = vrot.lane.b32.xlu0 %v467, 112
        %v666 = vpop.permute.xlu0 %665
        %667 = vrot.lane.b32.xlu0 %v458, 48
        %v668 = vpop.permute.xlu0 %667
        %669 = vrot.lane.b32.xlu0 %v462, 48
        %v670 = vpop.permute.xlu0 %669
        %v671 = vsel %vm474, %v664, 0
        %v673 = vsel %vm474, %v666, 0
        %v675 = vsel %vm474, %v668, 0
        %v677 = vsel %vm474, %v670, 0
        %679 = vmatprep.subr.mxu0 0.0
        %680 = vmatpush1.xpose.msra.mxu0 %v675
        %681 = vmatprep.subr.mxu0 0.0
        %682 = vmatpush1.xpose.msra.mxu0 %v677
        %683 = vmatprep.subr.mxu0 0.0
        %684 = vmatpush1.xpose.msra.mxu0 0.0
        %685 = vmatprep.subr.mxu0 0.0
        %686 = vmatpush1.xpose.msra.mxu0 0.0
        %687 = vmatprep.subr.mxu0 0.0
        %688 = vmatpush1.xpose.msra.mxu0 0.0
        %689 = vmatprep.subr.mxu0 0.0
        %690 = vmatpush1.xpose.msra.mxu0 0.0
        %691 = vmatprep.subr.mxu0 0.0
        %692 = vmatpush1.xpose.msra.mxu0 0.0
        %693 = vmatprep.subr.mxu0 0.0
        %694 = vmatpush1.xpose.msra.mxu0 0.0
        %695 = vmatprep.subr.mxu0 0.0
        %696 = vmatpush1.xpose.msra.mxu0 0.0
        %697 = vmatprep.subr.mxu0 0.0
        %698 = vmatpush1.xpose.msra.mxu0 0.0
        %699 = vmatprep.subr.mxu0 0.0
        %700 = vmatpush1.xpose.msra.mxu0 0.0
        %701 = vmatprep.subr.mxu0 0.0
        %702 = vmatpush1.xpose.msra.mxu0 0.0
        %703 = vmatprep.subr.mxu0 0.0
        %704 = vmatpush1.xpose.msra.mxu0 0.0
        %705 = vmatprep.subr.mxu0 0.0
        %706 = vmatpush1.xpose.msra.mxu0 0.0
        %707 = vmatprep.subr.mxu0 0.0
        %708 = vmatpush1.xpose.msra.mxu0 0.0
        %709 = vmatprep.subr.mxu0 0.0
        %710 = vmatpush1.xpose.msra.mxu0 0.0
        %711 = vmatprep.subr.mxu0 0.0
        %712 = vmatpush1.xpose.msra.mxu0 0.0
        %713 = vmatprep.subr.mxu0 0.0
        %714 = vmatpush1.xpose.msra.mxu0 0.0
        %715 = vmatprep.subr.mxu0 0.0
        %716 = vmatpush1.xpose.msra.mxu0 0.0
        %717 = vmatprep.subr.mxu0 0.0
        %718 = vmatpush1.xpose.msra.mxu0 0.0
        %719 = vmatprep.subr.mxu0 0.0
        %720 = vmatpush1.xpose.msra.mxu0 0.0
        %721 = vmatprep.subr.mxu0 0.0
        %722 = vmatpush1.xpose.msra.mxu0 0.0
        %723 = vmatprep.subr.mxu0 0.0
        %724 = vmatpush1.xpose.msra.mxu0 0.0
        %725 = vmatprep.subr.mxu0 0.0
        %726 = vmatpush1.xpose.msra.mxu0 0.0
        %727 = vmatprep.subr.mxu0 0.0
        %728 = vmatpush1.xpose.msra.mxu0 0.0
        %729 = vmatprep.subr.mxu0 0.0
        %730 = vmatpush1.xpose.msra.mxu0 0.0
        %731 = vmatprep.subr.mxu0 0.0
        %732 = vmatpush1.xpose.msra.mxu0 0.0
        %733 = vmatprep.subr.mxu0 0.0
        %734 = vmatpush1.xpose.msra.mxu0 0.0
        %735 = vmatprep.subr.mxu0 0.0
        %736 = vmatpush1.xpose.msra.mxu0 0.0
        %737 = vmatprep.subr.mxu0 0.0
        %738 = vmatpush1.xpose.msra.mxu0 0.0
        %739 = vmatprep.subr.mxu0 0.0
        %740 = vmatpush1.xpose.msra.mxu0 0.0
        %741 = vmatprep.subr.mxu0 0.0
        %742 = vmatpush1.xpose.msra.mxu0 0.0
        %743 = vmatprep.mubr.f32.mxu0 0.0
        %744 = vmatmul.mubr.f32.gmra.mrb[0].mxu0 %v671
        %v745 = vpop.f32.mrb[0].mxu0
        %v746 = vadd.f32 0.0, %v745
        %v747 = vpop.f32.mrb[0].mxu0
        %748 = vmatprep.mubr.f32.mxu0 0.0
        %749 = vmatmul.mubr.f32.gmra.mrb[0].mxu0 %v673
        %v750 = vpop.f32.mrb[0].mxu0
        %v751 = vadd.f32 0.0, %v750
        %v752 = vpop.f32.mrb[0].mxu0
        %753 = vdwg.mxu0
        %v754 = vsel %vm474, %v746, -inf
        %755 = vmax.xlane.f32.xlu0 %v754
        %v756 = vpop.xlane.xlu0 %755
        %v757 = vsel %vm474, %v751, -inf
        %758 = vmax.xlane.f32.xlu0 %v757
        %v759 = vpop.xlane.xlu0 %758
        %v760 = vsub.f32 %v746, %v756
        %v761 = vsub.f32 %v751, %v759
        %v762 = vmul.f32 %v760, 1.442695
        %v763 = vpow.pop %v762
        %v764 = vmul.f32 %v761, 1.442695
        %v765 = vpow.pop %v764
        %v766 = vsel %vm474, %v763, 0.0
        %767 = vadd.xlane.f32.xlu0 %v766
        %v768 = vpop.xlane.xlu0 %767
        %v769 = vsel %vm474, %v765, 0.0
        %770 = vadd.xlane.f32.xlu0 %v769
        %v771 = vpop.xlane.xlu0 %770
        %v772 = vrcp.pop %v768
        %v773 = vrcp.pop %v771
        %v774 = vmul.f32 %v763, %v772
        %v775 = vmul.f32 %v765, %v773
        %778 = vrot.lane.b32.xlu0 %v460, 112
        %v779 = vpop.permute.xlu0 %778
        %780 = vrot.lane.b32.xlu0 %v464, 112
        %v781 = vpop.permute.xlu0 %780
        %v785 = vsel %vm474, %v774, 0
        %v788 = vsel %vm474, %v775, 0
        %790 = vmatprep.subr.mxu0 0.0
        %791 = vmatpush1.msra.mxu0 %v779
        %792 = vmatprep.subr.mxu0 0.0
        %793 = vmatpush1.msra.mxu0 %v781
        %794 = vmatprep.subr.mxu0 0.0
        %795 = vmatpush1.msra.mxu0 0.0
        %796 = vmatprep.subr.mxu0 0.0
        %797 = vmatpush1.msra.mxu0 0.0
        %798 = vmatprep.subr.mxu0 0.0
        %799 = vmatpush1.msra.mxu0 0.0
        %800 = vmatprep.subr.mxu0 0.0
        %801 = vmatpush1.msra.mxu0 0.0
        %802 = vmatprep.subr.mxu0 0.0
        %803 = vmatpush1.msra.mxu0 0.0
        %804 = vmatprep.subr.mxu0 0.0
        %805 = vmatpush1.msra.mxu0 0.0
        %806 = vmatprep.subr.mxu0 0.0
        %807 = vmatpush1.msra.mxu0 0.0
        %808 = vmatprep.subr.mxu0 0.0
        %809 = vmatpush1.msra.mxu0 0.0
        %810 = vmatprep.subr.mxu0 0.0
        %811 = vmatpush1.msra.mxu0 0.0
        %812 = vmatprep.subr.mxu0 0.0
        %813 = vmatpush1.msra.mxu0 0.0
        %814 = vmatprep.subr.mxu0 0.0
        %815 = vmatpush1.msra.mxu0 0.0
        %816 = vmatprep.subr.mxu0 0.0
        %817 = vmatpush1.msra.mxu0 0.0
        %818 = vmatprep.subr.mxu0 0.0
        %819 = vmatpush1.msra.mxu0 0.0
        %820 = vmatprep.subr.mxu0 0.0
        %821 = vmatpush1.msra.mxu0 0.0
        %822 = vmatprep.subr.mxu0 0.0
        %823 = vmatpush1.msra.mxu0 0.0
        %824 = vmatprep.subr.mxu0 0.0
        %825 = vmatpush1.msra.mxu0 0.0
        %826 = vmatprep.subr.mxu0 0.0
        %827 = vmatpush1.msra.mxu0 0.0
        %828 = vmatprep.subr.mxu0 0.0
        %829 = vmatpush1.msra.mxu0 0.0
        %830 = vmatprep.subr.mxu0 0.0
        %831 = vmatpush1.msra.mxu0 0.0
        %832 = vmatprep.subr.mxu0 0.0
        %833 = vmatpush1.msra.mxu0 0.0
        %834 = vmatprep.subr.mxu0 0.0
        %835 = vmatpush1.msra.mxu0 0.0
        %836 = vmatprep.subr.mxu0 0.0
        %837 = vmatpush1.msra.mxu0 0.0
        %838 = vmatprep.subr.mxu0 0.0
        %839 = vmatpush1.msra.mxu0 0.0
        %840 = vmatprep.subr.mxu0 0.0
        %841 = vmatpush1.msra.mxu0 0.0
        %842 = vmatprep.subr.mxu0 0.0
        %843 = vmatpush1.msra.mxu0 0.0
        %844 = vmatprep.subr.mxu0 0.0
        %845 = vmatpush1.msra.mxu0 0.0
        %846 = vmatprep.subr.mxu0 0.0
        %847 = vmatpush1.msra.mxu0 0.0
        %848 = vmatprep.subr.mxu0 0.0
        %849 = vmatpush1.msra.mxu0 0.0
        %850 = vmatprep.subr.mxu0 0.0
        %851 = vmatpush1.msra.mxu0 0.0
        %852 = vmatprep.subr.mxu0 0.0
        %853 = vmatpush1.msra.mxu0 0.0
        %854 = vmatprep.mubr.f32.mxu0 0.0
        %855 = vmatmul.mubr.f32.gmra.mrb[0].mxu0 %v785
        %v856 = vpop.f32.mrb[0].mxu0
        %v857 = vadd.f32 0.0, %v856
        %v858 = vpop.f32.mrb[0].mxu0
        %859 = vmatprep.mubr.f32.mxu0 0.0
        %860 = vmatmul.mubr.f32.gmra.mrb[0].mxu0 %v788
        %v861 = vpop.f32.mrb[0].mxu0
        %v862 = vadd.f32 0.0, %v861
        %v863 = vpop.f32.mrb[0].mxu0
        %864 = vdwg.mxu0
        %865 = vrot.lane.b32.xlu0 %v466, 96
        %v866 = vpop.permute.xlu0 %865
        %867 = vrot.lane.b32.xlu0 %v467, 96
        %v868 = vpop.permute.xlu0 %867
        %869 = vrot.lane.b32.xlu0 %v458, 32
        %v870 = vpop.permute.xlu0 %869
        %871 = vrot.lane.b32.xlu0 %v462, 32
        %v872 = vpop.permute.xlu0 %871
        %v873 = vsel %vm474, %v866, 0
        %v875 = vsel %vm474, %v868, 0
        %v877 = vsel %vm474, %v870, 0
        %v879 = vsel %vm474, %v872, 0
        %881 = vmatprep.subr.mxu0 0.0
        %882 = vmatpush1.xpose.msra.mxu0 %v877
        %883 = vmatprep.subr.mxu0 0.0
        %884 = vmatpush1.xpose.msra.mxu0 %v879
        %885 = vmatprep.subr.mxu0 0.0
        %886 = vmatpush1.xpose.msra.mxu0 0.0
        %887 = vmatprep.subr.mxu0 0.0
        %888 = vmatpush1.xpose.msra.mxu0 0.0
        %889 = vmatprep.subr.mxu0 0.0
        %890 = vmatpush1.xpose.msra.mxu0 0.0
        %891 = vmatprep.subr.mxu0 0.0
        %892 = vmatpush1.xpose.msra.mxu0 0.0
        %893 = vmatprep.subr.mxu0 0.0
        %894 = vmatpush1.xpose.msra.mxu0 0.0
        %895 = vmatprep.subr.mxu0 0.0
        %896 = vmatpush1.xpose.msra.mxu0 0.0
        %897 = vmatprep.subr.mxu0 0.0
        %898 = vmatpush1.xpose.msra.mxu0 0.0
        %899 = vmatprep.subr.mxu0 0.0
        %900 = vmatpush1.xpose.msra.mxu0 0.0
        %901 = vmatprep.subr.mxu0 0.0
        %902 = vmatpush1.xpose.msra.mxu0 0.0
        %903 = vmatprep.subr.mxu0 0.0
        %904 = vmatpush1.xpose.msra.mxu0 0.0
        %905 = vmatprep.subr.mxu0 0.0
        %906 = vmatpush1.xpose.msra.mxu0 0.0
        %907 = vmatprep.subr.mxu0 0.0
        %908 = vmatpush1.xpose.msra.mxu0 0.0
        %909 = vmatprep.subr.mxu0 0.0
        %910 = vmatpush1.xpose.msra.mxu0 0.0
        %911 = vmatprep.subr.mxu0 0.0
        %912 = vmatpush1.xpose.msra.mxu0 0.0
        %913 = vmatprep.subr.mxu0 0.0
        %914 = vmatpush1.xpose.msra.mxu0 0.0
        %915 = vmatprep.subr.mxu0 0.0
        %916 = vmatpush1.xpose.msra.mxu0 0.0
        %917 = vmatprep.subr.mxu0 0.0
        %918 = vmatpush1.xpose.msra.mxu0 0.0
        %919 = vmatprep.subr.mxu0 0.0
        %920 = vmatpush1.xpose.msra.mxu0 0.0
        %921 = vmatprep.subr.mxu0 0.0
        %922 = vmatpush1.xpose.msra.mxu0 0.0
        %923 = vmatprep.subr.mxu0 0.0
        %924 = vmatpush1.xpose.msra.mxu0 0.0
        %925 = vmatprep.subr.mxu0 0.0
        %926 = vmatpush1.xpose.msra.mxu0 0.0
        %927 = vmatprep.subr.mxu0 0.0
        %928 = vmatpush1.xpose.msra.mxu0 0.0
        %929 = vmatprep.subr.mxu0 0.0
        %930 = vmatpush1.xpose.msra.mxu0 0.0
        %931 = vmatprep.subr.mxu0 0.0
        %932 = vmatpush1.xpose.msra.mxu0 0.0
        %933 = vmatprep.subr.mxu0 0.0
        %934 = vmatpush1.xpose.msra.mxu0 0.0
        %935 = vmatprep.subr.mxu0 0.0
        %936 = vmatpush1.xpose.msra.mxu0 0.0
        %937 = vmatprep.subr.mxu0 0.0
        %938 = vmatpush1.xpose.msra.mxu0 0.0
        %939 = vmatprep.subr.mxu0 0.0
        %940 = vmatpush1.xpose.msra.mxu0 0.0
        %941 = vmatprep.subr.mxu0 0.0
        %942 = vmatpush1.xpose.msra.mxu0 0.0
        %943 = vmatprep.subr.mxu0 0.0
        %944 = vmatpush1.xpose.msra.mxu0 0.0
        %945 = vmatprep.mubr.f32.mxu0 0.0
        %946 = vmatmul.mubr.f32.gmra.mrb[0].mxu0 %v873
        %v947 = vpop.f32.mrb[0].mxu0
        %v948 = vadd.f32 0.0, %v947
        %v949 = vpop.f32.mrb[0].mxu0
        %950 = vmatprep.mubr.f32.mxu0 0.0
        %951 = vmatmul.mubr.f32.gmra.mrb[0].mxu0 %v875
        %v952 = vpop.f32.mrb[0].mxu0
        %v953 = vadd.f32 0.0, %v952
        %v954 = vpop.f32.mrb[0].mxu0
        %955 = vdwg.mxu0
        %v956 = vsel %vm474, %v948, -inf
        %957 = vmax.xlane.f32.xlu0 %v956
        %v958 = vpop.xlane.xlu0 %957
        %v959 = vsel %vm474, %v953, -inf
        %960 = vmax.xlane.f32.xlu0 %v959
        %v961 = vpop.xlane.xlu0 %960
        %v962 = vsub.f32 %v948, %v958
        %v963 = vsub.f32 %v953, %v961
        %v964 = vmul.f32 %v962, 1.442695
        %v965 = vpow.pop %v964
        %v966 = vmul.f32 %v963, 1.442695
        %v967 = vpow.pop %v966
        %v968 = vsel %vm474, %v965, 0.0
        %969 = vadd.xlane.f32.xlu0 %v968
        %v970 = vpop.xlane.xlu0 %969
        %v971 = vsel %vm474, %v967, 0.0
        %972 = vadd.xlane.f32.xlu0 %v971
        %v973 = vpop.xlane.xlu0 %972
        %v974 = vrcp.pop %v970
        %v975 = vrcp.pop %v973
        %v976 = vmul.f32 %v965, %v974
        %v977 = vmul.f32 %v967, %v975
        %978 = vrot.lane.b32.xlu0 %v460, 96
        %v979 = vpop.permute.xlu0 %978
        %980 = vrot.lane.b32.xlu0 %v464, 96
        %v981 = vpop.permute.xlu0 %980
        %v985 = vsel %vm474, %v976, 0
        %v988 = vsel %vm474, %v977, 0
        %990 = vmatprep.subr.mxu0 0.0
        %991 = vmatpush1.msra.mxu0 %v979
        %992 = vmatprep.subr.mxu0 0.0
        %993 = vmatpush1.msra.mxu0 %v981
        %994 = vmatprep.subr.mxu0 0.0
        %995 = vmatpush1.msra.mxu0 0.0
        %996 = vmatprep.subr.mxu0 0.0
        %997 = vmatpush1.msra.mxu0 0.0
        %998 = vmatprep.subr.mxu0 0.0
        %999 = vmatpush1.msra.mxu0 0.0
        %1000 = vmatprep.subr.mxu0 0.0
        %1001 = vmatpush1.msra.mxu0 0.0
        %1002 = vmatprep.subr.mxu0 0.0
        %1003 = vmatpush1.msra.mxu0 0.0
        %1004 = vmatprep.subr.mxu0 0.0
        %1005 = vmatpush1.msra.mxu0 0.0
        %1006 = vmatprep.subr.mxu0 0.0
        %1007 = vmatpush1.msra.mxu0 0.0
        %1008 = vmatprep.subr.mxu0 0.0
        %1009 = vmatpush1.msra.mxu0 0.0
        %1010 = vmatprep.subr.mxu0 0.0
        %1011 = vmatpush1.msra.mxu0 0.0
        %1012 = vmatprep.subr.mxu0 0.0
        %1013 = vmatpush1.msra.mxu0 0.0
        %1014 = vmatprep.subr.mxu0 0.0
        %1015 = vmatpush1.msra.mxu0 0.0
        %1016 = vmatprep.subr.mxu0 0.0
        %1017 = vmatpush1.msra.mxu0 0.0
        %1018 = vmatprep.subr.mxu0 0.0
        %1019 = vmatpush1.msra.mxu0 0.0
        %1020 = vmatprep.subr.mxu0 0.0
        %1021 = vmatpush1.msra.mxu0 0.0
        %1022 = vmatprep.subr.mxu0 0.0
        %1023 = vmatpush1.msra.mxu0 0.0
        %1024 = vmatprep.subr.mxu0 0.0
        %1025 = vmatpush1.msra.mxu0 0.0
        %1026 = vmatprep.subr.mxu0 0.0
        %1027 = vmatpush1.msra.mxu0 0.0
        %1028 = vmatprep.subr.mxu0 0.0
        %1029 = vmatpush1.msra.mxu0 0.0
        %1030 = vmatprep.subr.mxu0 0.0
        %1031 = vmatpush1.msra.mxu0 0.0
        %1032 = vmatprep.subr.mxu0 0.0
        %1033 = vmatpush1.msra.mxu0 0.0
        %1034 = vmatprep.subr.mxu0 0.0
        %1035 = vmatpush1.msra.mxu0 0.0
        %1036 = vmatprep.subr.mxu0 0.0
        %1037 = vmatpush1.msra.mxu0 0.0
        %1038 = vmatprep.subr.mxu0 0.0
        %1039 = vmatpush1.msra.mxu0 0.0
        %1040 = vmatprep.subr.mxu0 0.0
        %1041 = vmatpush1.msra.mxu0 0.0
        %1042 = vmatprep.subr.mxu0 0.0
        %1043 = vmatpush1.msra.mxu0 0.0
        %1044 = vmatprep.subr.mxu0 0.0
        %1045 = vmatpush1.msra.mxu0 0.0
        %1046 = vmatprep.subr.mxu0 0.0
        %1047 = vmatpush1.msra.mxu0 0.0
        %1048 = vmatprep.subr.mxu0 0.0
        %1049 = vmatpush1.msra.mxu0 0.0
        %1050 = vmatprep.subr.mxu0 0.0
        %1051 = vmatpush1.msra.mxu0 0.0
        %1052 = vmatprep.subr.mxu0 0.0
        %1053 = vmatpush1.msra.mxu0 0.0
        %1054 = vmatprep.mubr.f32.mxu0 0.0
        %1055 = vmatmul.mubr.f32.gmra.mrb[0].mxu0 %v985
        %v1056 = vpop.f32.mrb[0].mxu0
        %v1057 = vadd.f32 0.0, %v1056
        %v1058 = vpop.f32.mrb[0].mxu0
        %1059 = vmatprep.mubr.f32.mxu0 0.0
        %1060 = vmatmul.mubr.f32.gmra.mrb[0].mxu0 %v988
        %v1061 = vpop.f32.mrb[0].mxu0
        %v1062 = vadd.f32 0.0, %v1061
        %v1063 = vpop.f32.mrb[0].mxu0
        %1064 = vdwg.mxu0
        %1065 = vrot.lane.b32.xlu0 %v466, 80
        %v1066 = vpop.permute.xlu0 %1065
        %1067 = vrot.lane.b32.xlu0 %v467, 80
        %v1068 = vpop.permute.xlu0 %1067
        %1069 = vrot.lane.b32.xlu0 %v458, 16
        %v1070 = vpop.permute.xlu0 %1069
        %1071 = vrot.lane.b32.xlu0 %v462, 16
        %v1072 = vpop.permute.xlu0 %1071
        %v1073 = vsel %vm474, %v1066, 0
        %v1075 = vsel %vm474, %v1068, 0
        %v1077 = vsel %vm474, %v1070, 0
        %v1079 = vsel %vm474, %v1072, 0
        %1081 = vmatprep.subr.mxu0 0.0
        %1082 = vmatpush1.xpose.msra.mxu0 %v1077
        %1083 = vmatprep.subr.mxu0 0.0
        %1084 = vmatpush1.xpose.msra.mxu0 %v1079
        %1085 = vmatprep.subr.mxu0 0.0
        %1086 = vmatpush1.xpose.msra.mxu0 0.0
        %1087 = vmatprep.subr.mxu0 0.0
        %1088 = vmatpush1.xpose.msra.mxu0 0.0
        %1089 = vmatprep.subr.mxu0 0.0
        %1090 = vmatpush1.xpose.msra.mxu0 0.0
        %1091 = vmatprep.subr.mxu0 0.0
        %1092 = vmatpush1.xpose.msra.mxu0 0.0
        %1093 = vmatprep.subr.mxu0 0.0
        %1094 = vmatpush1.xpose.msra.mxu0 0.0
        %1095 = vmatprep.subr.mxu0 0.0
        %1096 = vmatpush1.xpose.msra.mxu0 0.0
        %1097 = vmatprep.subr.mxu0 0.0
        %1098 = vmatpush1.xpose.msra.mxu0 0.0
        %1099 = vmatprep.subr.mxu0 0.0
        %1100 = vmatpush1.xpose.msra.mxu0 0.0
        %1101 = vmatprep.subr.mxu0 0.0
        %1102 = vmatpush1.xpose.msra.mxu0 0.0
        %1103 = vmatprep.subr.mxu0 0.0
        %1104 = vmatpush1.xpose.msra.mxu0 0.0
        %1105 = vmatprep.subr.mxu0 0.0
        %1106 = vmatpush1.xpose.msra.mxu0 0.0
        %1107 = vmatprep.subr.mxu0 0.0
        %1108 = vmatpush1.xpose.msra.mxu0 0.0
        %1109 = vmatprep.subr.mxu0 0.0
        %1110 = vmatpush1.xpose.msra.mxu0 0.0
        %1111 = vmatprep.subr.mxu0 0.0
        %1112 = vmatpush1.xpose.msra.mxu0 0.0
        %1113 = vmatprep.subr.mxu0 0.0
        %1114 = vmatpush1.xpose.msra.mxu0 0.0
        %1115 = vmatprep.subr.mxu0 0.0
        %1116 = vmatpush1.xpose.msra.mxu0 0.0
        %1117 = vmatprep.subr.mxu0 0.0
        %1118 = vmatpush1.xpose.msra.mxu0 0.0
        %1119 = vmatprep.subr.mxu0 0.0
        %1120 = vmatpush1.xpose.msra.mxu0 0.0
        %1121 = vmatprep.subr.mxu0 0.0
        %1122 = vmatpush1.xpose.msra.mxu0 0.0
        %1123 = vmatprep.subr.mxu0 0.0
        %1124 = vmatpush1.xpose.msra.mxu0 0.0
        %1125 = vmatprep.subr.mxu0 0.0
        %1126 = vmatpush1.xpose.msra.mxu0 0.0
        %1127 = vmatprep.subr.mxu0 0.0
        %1128 = vmatpush1.xpose.msra.mxu0 0.0
        %1129 = vmatprep.subr.mxu0 0.0
        %1130 = vmatpush1.xpose.msra.mxu0 0.0
        %1131 = vmatprep.subr.mxu0 0.0
        %1132 = vmatpush1.xpose.msra.mxu0 0.0
        %1133 = vmatprep.subr.mxu0 0.0
        %1134 = vmatpush1.xpose.msra.mxu0 0.0
        %1135 = vmatprep.subr.mxu0 0.0
        %1136 = vmatpush1.xpose.msra.mxu0 0.0
        %1137 = vmatprep.subr.mxu0 0.0
        %1138 = vmatpush1.xpose.msra.mxu0 0.0
        %1139 = vmatprep.subr.mxu0 0.0
        %1140 = vmatpush1.xpose.msra.mxu0 0.0
        %1141 = vmatprep.subr.mxu0 0.0
        %1142 = vmatpush1.xpose.msra.mxu0 0.0
        %1143 = vmatprep.subr.mxu0 0.0
        %1144 = vmatpush1.xpose.msra.mxu0 0.0
        %1145 = vmatprep.mubr.f32.mxu0 0.0
        %1146 = vmatmul.mubr.f32.gmra.mrb[0].mxu0 %v1073
        %v1147 = vpop.f32.mrb[0].mxu0
        %v1148 = vadd.f32 0.0, %v1147
        %v1149 = vpop.f32.mrb[0].mxu0
        %1150 = vmatprep.mubr.f32.mxu0 0.0
        %1151 = vmatmul.mubr.f32.gmra.mrb[0].mxu0 %v1075
        %v1152 = vpop.f32.mrb[0].mxu0
        %v1153 = vadd.f32 0.0, %v1152
        %v1154 = vpop.f32.mrb[0].mxu0
        %1155 = vdwg.mxu0
        %v1156 = vsel %vm474, %v1148, -inf
        %1157 = vmax.xlane.f32.xlu0 %v1156
        %v1158 = vpop.xlane.xlu0 %1157
        %v1159 = vsel %vm474, %v1153, -inf
        %1160 = vmax.xlane.f32.xlu0 %v1159
        %v1161 = vpop.xlane.xlu0 %1160
        %v1162 = vsub.f32 %v1148, %v1158
        %v1163 = vsub.f32 %v1153, %v1161
        %v1164 = vmul.f32 %v1162, 1.442695
        %v1165 = vpow.pop %v1164
        %v1166 = vmul.f32 %v1163, 1.442695
        %v1167 = vpow.pop %v1166
        %v1168 = vsel %vm474, %v1165, 0.0
        %1169 = vadd.xlane.f32.xlu0 %v1168
        %v1170 = vpop.xlane.xlu0 %1169
        %v1171 = vsel %vm474, %v1167, 0.0
        %1172 = vadd.xlane.f32.xlu0 %v1171
        %v1173 = vpop.xlane.xlu0 %1172
        %v1174 = vrcp.pop %v1170
        %v1175 = vrcp.pop %v1173
        %v1176 = vmul.f32 %v1165, %v1174
        %v1177 = vmul.f32 %v1167, %v1175
        %1178 = vrot.lane.b32.xlu0 %v460, 80
        %v1179 = vpop.permute.xlu0 %1178
        %1180 = vrot.lane.b32.xlu0 %v464, 80
        %v1181 = vpop.permute.xlu0 %1180
        %v1185 = vsel %vm474, %v1176, 0
        %v1188 = vsel %vm474, %v1177, 0
        %1190 = vmatprep.subr.mxu0 0.0
        %1191 = vmatpush1.msra.mxu0 %v1179
        %1192 = vmatprep.subr.mxu0 0.0
        %1193 = vmatpush1.msra.mxu0 %v1181
        %1194 = vmatprep.subr.mxu0 0.0
        %1195 = vmatpush1.msra.mxu0 0.0
        %1196 = vmatprep.subr.mxu0 0.0
        %1197 = vmatpush1.msra.mxu0 0.0
        %1198 = vmatprep.subr.mxu0 0.0
        %1199 = vmatpush1.msra.mxu0 0.0
        %1200 = vmatprep.subr.mxu0 0.0
        %1201 = vmatpush1.msra.mxu0 0.0
        %1202 = vmatprep.subr.mxu0 0.0
        %1203 = vmatpush1.msra.mxu0 0.0
        %1204 = vmatprep.subr.mxu0 0.0
        %1205 = vmatpush1.msra.mxu0 0.0
        %1206 = vmatprep.subr.mxu0 0.0
        %1207 = vmatpush1.msra.mxu0 0.0
        %1208 = vmatprep.subr.mxu0 0.0
        %1209 = vmatpush1.msra.mxu0 0.0
        %1210 = vmatprep.subr.mxu0 0.0
        %1211 = vmatpush1.msra.mxu0 0.0
        %1212 = vmatprep.subr.mxu0 0.0
        %1213 = vmatpush1.msra.mxu0 0.0
        %1214 = vmatprep.subr.mxu0 0.0
        %1215 = vmatpush1.msra.mxu0 0.0
        %1216 = vmatprep.subr.mxu0 0.0
        %1217 = vmatpush1.msra.mxu0 0.0
        %1218 = vmatprep.subr.mxu0 0.0
        %1219 = vmatpush1.msra.mxu0 0.0
        %1220 = vmatprep.subr.mxu0 0.0
        %1221 = vmatpush1.msra.mxu0 0.0
        %1222 = vmatprep.subr.mxu0 0.0
        %1223 = vmatpush1.msra.mxu0 0.0
        %1224 = vmatprep.subr.mxu0 0.0
        %1225 = vmatpush1.msra.mxu0 0.0
        %1226 = vmatprep.subr.mxu0 0.0
        %1227 = vmatpush1.msra.mxu0 0.0
        %1228 = vmatprep.subr.mxu0 0.0
        %1229 = vmatpush1.msra.mxu0 0.0
        %1230 = vmatprep.subr.mxu0 0.0
        %1231 = vmatpush1.msra.mxu0 0.0
        %1232 = vmatprep.subr.mxu0 0.0
        %1233 = vmatpush1.msra.mxu0 0.0
        %1234 = vmatprep.subr.mxu0 0.0
        %1235 = vmatpush1.msra.mxu0 0.0
        %1236 = vmatprep.subr.mxu0 0.0
        %1237 = vmatpush1.msra.mxu0 0.0
        %1238 = vmatprep.subr.mxu0 0.0
        %1239 = vmatpush1.msra.mxu0 0.0
        %1240 = vmatprep.subr.mxu0 0.0
        %1241 = vmatpush1.msra.mxu0 0.0
        %1242 = vmatprep.subr.mxu0 0.0
        %1243 = vmatpush1.msra.mxu0 0.0
        %1244 = vmatprep.subr.mxu0 0.0
        %1245 = vmatpush1.msra.mxu0 0.0
        %1246 = vmatprep.subr.mxu0 0.0
        %1247 = vmatpush1.msra.mxu0 0.0
        %1248 = vmatprep.subr.mxu0 0.0
        %1249 = vmatpush1.msra.mxu0 0.0
        %1250 = vmatprep.subr.mxu0 0.0
        %1251 = vmatpush1.msra.mxu0 0.0
        %1252 = vmatprep.subr.mxu0 0.0
        %1253 = vmatpush1.msra.mxu0 0.0
        %1254 = vmatprep.mubr.f32.mxu0 0.0
        %1255 = vmatmul.mubr.f32.gmra.mrb[0].mxu0 %v1185
        %v1256 = vpop.f32.mrb[0].mxu0
        %v1257 = vadd.f32 0.0, %v1256
        %v1258 = vpop.f32.mrb[0].mxu0
        %1259 = vmatprep.mubr.f32.mxu0 0.0
        %1260 = vmatmul.mubr.f32.gmra.mrb[0].mxu0 %v1188
        %v1261 = vpop.f32.mrb[0].mxu0
        %v1262 = vadd.f32 0.0, %v1261
        %v1263 = vpop.f32.mrb[0].mxu0
        %1264 = vdwg.mxu0
        %1267 = vrot.lane.b32.xlu0 %v857, 16
        %v1268 = vpop.permute.xlu0 %1267
        %1269 = vrot.lane.b32.xlu0 %v862, 16
        %v1270 = vpop.permute.xlu0 %1269
        %1275 = vrot.lane.b32.xlu0 %v1057, 32
        %v1276 = vpop.permute.xlu0 %1275
        %1277 = vrot.lane.b32.xlu0 %v1062, 32
        %v1278 = vpop.permute.xlu0 %1277
        %1283 = vrot.lane.b32.xlu0 %v1257, 48
        %v1284 = vpop.permute.xlu0 %1283
        %1285 = vrot.lane.b32.xlu0 %v1262, 48
        %v1286 = vpop.permute.xlu0 %1285
        %v1289 = vsel %vm474, %v655, %v1268
        %v1290 = vsel %vm474, %v660, %v1270
        %vm1291 = vcmask 261120
        %v1292 = vsel %vm1291, %v1289, %v1276
        %v1293 = vsel %vm1291, %v1290, %v1278
        %vm1294 = vcmask 392192
        %v1295 = vsel %vm1294, %v1292, %v1284
        %v1296 = vsel %vm1294, %v1293, %v1286
        %v1297 = vpack.c.bf16 %v1296, %v1295
        %v1298 = vld [vmem:[%s3] sm:$0xf]
        %v1299 = vld [vmem:[%s3 + $0x4] sm:$0xf]
        %v1300 = vld [vmem:[%s3 + $0x8] sm:$0xf]
        %v1301 = vld [vmem:[%s3 + $0xc] sm:$0xf]
        %v1302 = vld [vmem:[%s3 + $0x10] sm:$0xf]
        %v1303 = vld [vmem:[%s3 + $0x14] sm:$0xf]
        %v1304 = vld [vmem:[%s3 + $0x18] sm:$0xf]
        %v1305 = vld [vmem:[%s3 + $0x1c] sm:$0xf]
        %v1307 = vlaneseq
        %v1308 = vshrl.u32 %v1307, 7
        %v1309 = vsub.s32 0, %v1308
        %v1310 = vrot.slane %v310, %v1309
        %v1320 = vunpack.c.l.b16 %v1298
        %v1321 = vunpack.c.l.b16 %v1299
        %v1322 = vunpack.c.l.b16 %v1300
        %v1323 = vunpack.c.l.b16 %v1301
        %v1324 = vunpack.c.l.b16 %v1302
        %v1325 = vunpack.c.l.b16 %v1303
        %v1326 = vunpack.c.l.b16 %v1304
        %v1327 = vunpack.c.l.b16 %v1305
        %v1328 = vpack.c.b16 %v1321, %v1320
        %v1329 = vpack.c.b16 %v1323, %v1322
        %v1330 = vpack.c.b16 %v1325, %v1324
        %v1331 = vpack.c.b16 %v1327, %v1326
        %v1337 = vsel %vm315, %v1297, 0
        %1339 = vmatprep.subr.bf16.mxu0 0
        %1340 = vmatpush1.bf16.msra.mxu0 %v1328
        %1341 = vmatprep.subr.bf16.mxu0 0
        %1342 = vmatpush1.bf16.msra.mxu0 %v1329
        %1343 = vmatprep.subr.bf16.mxu0 0
        %1344 = vmatpush1.bf16.msra.mxu0 %v1330
        %1345 = vmatprep.subr.bf16.mxu0 0
        %1346 = vmatpush1.bf16.msra.mxu0 %v1331
        %1347 = vmatprep.subr.bf16.mxu0 0
        %1348 = vmatpush1.bf16.msra.mxu0 0
        %1349 = vmatprep.subr.bf16.mxu0 0
        %1350 = vmatpush1.bf16.msra.mxu0 0
        %1351 = vmatprep.subr.bf16.mxu0 0
        %1352 = vmatpush1.bf16.msra.mxu0 0
        %1353 = vmatprep.subr.bf16.mxu0 0
        %1354 = vmatpush1.bf16.msra.mxu0 0
        %1355 = vmatprep.subr.bf16.mxu0 0
        %1356 = vmatpush1.bf16.msra.mxu0 0
        %1357 = vmatprep.subr.bf16.mxu0 0
        %1358 = vmatpush1.bf16.msra.mxu0 0
        %1359 = vmatprep.subr.bf16.mxu0 0
        %1360 = vmatpush1.bf16.msra.mxu0 0
        %1361 = vmatprep.subr.bf16.mxu0 0
        %1362 = vmatpush1.bf16.msra.mxu0 0
        %1363 = vmatprep.subr.bf16.mxu0 0
        %1364 = vmatpush1.bf16.msra.mxu0 0
        %1365 = vmatprep.subr.bf16.mxu0 0
        %1366 = vmatpush1.bf16.msra.mxu0 0
        %1367 = vmatprep.subr.bf16.mxu0 0
        %1368 = vmatpush1.bf16.msra.mxu0 0
        %1369 = vmatprep.subr.bf16.mxu0 0
        %1370 = vmatpush1.bf16.msra.mxu0 0
        %1371 = vmatprep.mubr.bf16.mxu0 0
        %1372 = vmatmul.mubr.bf16.gmra.mrb[0].mxu0 %v1337
        %v1373 = vpop.f32.mrb[0].mxu0
        %v1374 = vadd.f32 %v1310, %v1373
        %v1375 = vpop.f32.mrb[0].mxu0
        %v1376 = vpop.f32.mrb[0].mxu0
        %v1377 = vadd.f32 %v1310, %v1376
        %v1378 = vpop.f32.mrb[0].mxu0
        %1379 = vdwg.mxu0
        %v1381 = vlaneseq
        %v1382 = vshrl.u32 %v1381, 7
        %v1383 = vsub.s32 0, %v1382
        %v1384 = vrot.slane %v301, %v1383
        %v1386 = vmul.f32 %v1384, %v1374
        %v1387 = vmul.f32 %v1384, %v1377
        %v1388 = vadd.f32 %v295, %v1386
        %v1389 = vadd.f32 %v296, %v1387
        %v1390 = vsel %vm315, %v1388, 0.0
        %1391 = vadd.xlane.f32.xlu0 %v1390
        %v1392 = vpop.xlane.xlu0 %1391
        %v1393 = vsel %vm315, %v1389, 0.0
        %1394 = vadd.xlane.f32.xlu0 %v1393
        %v1395 = vpop.xlane.xlu0 %1394
        %v1396 = vmul.f32 %v1392, %v322
        %v1397 = vmul.f32 %v1395, %v322
        %v1398 = vsub.f32 %v1388, %v1396
        %v1399 = vsub.f32 %v1389, %v1397
        %v1400 = vmul.f32 %v1398, %v1398
        %v1401 = vmul.f32 %v1399, %v1399
        %v1402 = vsel %vm315, %v1400, 0.0
        %1403 = vadd.xlane.f32.xlu0 %v1402
        %v1404 = vpop.xlane.xlu0 %1403
        %v1405 = vsel %vm315, %v1401, 0.0
        %1406 = vadd.xlane.f32.xlu0 %v1405
        %v1407 = vpop.xlane.xlu0 %1406
        %v1408 = vmul.f32 %v1404, %v322
        %v1409 = vmul.f32 %v1407, %v322
        %v1410 = vadd.f32 %v1408, 1e-06
        %v1411 = vadd.f32 %v1409, 1e-06
        %v1412 = vrsqrt.pop %v1410
        %v1413 = vrsqrt.pop %v1411
        %v1414 = vmul.f32 %v1398, %v1412
        %v1415 = vmul.f32 %v1399, %v1413
        %v1416 = vadd.f32 %v305, 1.0
        %v1418 = vlaneseq
        %v1419 = vshrl.u32 %v1418, 7
        %v1420 = vsub.s32 0, %v1419
        %v1421 = vrot.slane %v1416, %v1420
        %v1423 = vmul.f32 %v1414, %v1421
        %v1424 = vmul.f32 %v1415, %v1421
        %v1426 = vlaneseq
        %v1427 = vshrl.u32 %v1426, 7
        %v1428 = vsub.s32 0, %v1427
        %v1429 = vrot.slane %v303, %v1428
        %v1431 = vadd.f32 %v1423, %v1429
        %v1432 = vadd.f32 %v1424, %v1429
        %v1433 = vpack.c.bf16 %v1432, %v1431
        %v1434 = vld [vmem:[%s4] sm:$0xff]
        %v1435 = vld [vmem:[%s4 + $0x8] sm:$0xff]
        %v1436 = vld [vmem:[%s4 + $0x10] sm:$0xff]
        %v1437 = vld [vmem:[%s4 + $0x18] sm:$0xff]
        %v1438 = vld [vmem:[%s4 + $0x20] sm:$0xff]
        %v1439 = vld [vmem:[%s4 + $0x28] sm:$0xff]
        %v1440 = vld [vmem:[%s4 + $0x30] sm:$0xff]
        %v1441 = vld [vmem:[%s4 + $0x38] sm:$0xff]
        %v1443 = vlaneseq
        %v1444 = vshrl.u32 %v1443, 7
        %v1445 = vsub.s32 0, %v1444
        %v1446 = vrot.slane %v312, %v1445
        %v1447 = vlaneseq
        %v1448 = vshrl.u32 %v1447, 7
        %v1449 = vsub.s32 1, %v1448
        %v1450 = vrot.slane %v312, %v1449
        %v1461 = vunpack.c.l.b16 %v1434
        %v1462 = vunpack.c.h.b16 %v1434
        %v1463 = vunpack.c.l.b16 %v1435
        %v1464 = vunpack.c.h.b16 %v1435
        %v1465 = vunpack.c.l.b16 %v1436
        %v1466 = vunpack.c.h.b16 %v1436
        %v1467 = vunpack.c.l.b16 %v1437
        %v1468 = vunpack.c.h.b16 %v1437
        %v1469 = vunpack.c.l.b16 %v1438
        %v1470 = vunpack.c.h.b16 %v1438
        %v1471 = vunpack.c.l.b16 %v1439
        %v1472 = vunpack.c.h.b16 %v1439
        %v1473 = vunpack.c.l.b16 %v1440
        %v1474 = vunpack.c.h.b16 %v1440
        %v1475 = vunpack.c.l.b16 %v1441
        %v1476 = vunpack.c.h.b16 %v1441
        %v1477 = vpack.c.b16 %v1463, %v1461
        %v1478 = vpack.c.b16 %v1464, %v1462
        %v1479 = vpack.c.b16 %v1467, %v1465
        %v1480 = vpack.c.b16 %v1468, %v1466
        %v1481 = vpack.c.b16 %v1471, %v1469
        %v1482 = vpack.c.b16 %v1472, %v1470
        %v1483 = vpack.c.b16 %v1475, %v1473
        %v1484 = vpack.c.b16 %v1476, %v1474
        %v1494 = vsel %vm315, %v1433, 0
        %1496 = vmatprep.subr.bf16.mxu0 %v1478
        %1497 = vmatpush1.bf16.msra.mxu0 %v1477
        %1498 = vmatprep.subr.bf16.mxu0 %v1480
        %1499 = vmatpush1.bf16.msra.mxu0 %v1479
        %1500 = vmatprep.subr.bf16.mxu0 %v1482
        %1501 = vmatpush1.bf16.msra.mxu0 %v1481
        %1502 = vmatprep.subr.bf16.mxu0 %v1484
        %1503 = vmatpush1.bf16.msra.mxu0 %v1483
        %1504 = vmatprep.subr.bf16.mxu0 0
        %1505 = vmatpush1.bf16.msra.mxu0 0
        %1506 = vmatprep.subr.bf16.mxu0 0
        %1507 = vmatpush1.bf16.msra.mxu0 0
        %1508 = vmatprep.subr.bf16.mxu0 0
        %1509 = vmatpush1.bf16.msra.mxu0 0
        %1510 = vmatprep.subr.bf16.mxu0 0
        %1511 = vmatpush1.bf16.msra.mxu0 0
        %1512 = vmatprep.subr.bf16.mxu0 0
        %1513 = vmatpush1.bf16.msra.mxu0 0
        %1514 = vmatprep.subr.bf16.mxu0 0
        %1515 = vmatpush1.bf16.msra.mxu0 0
        %1516 = vmatprep.subr.bf16.mxu0 0
        %1517 = vmatpush1.bf16.msra.mxu0 0
        %1518 = vmatprep.subr.bf16.mxu0 0
        %1519 = vmatpush1.bf16.msra.mxu0 0
        %1520 = vmatprep.subr.bf16.mxu0 0
        %1521 = vmatpush1.bf16.msra.mxu0 0
        %1522 = vmatprep.subr.bf16.mxu0 0
        %1523 = vmatpush1.bf16.msra.mxu0 0
        %1524 = vmatprep.subr.bf16.mxu0 0
        %1525 = vmatpush1.bf16.msra.mxu0 0
        %1526 = vmatprep.subr.bf16.mxu0 0
        %1527 = vmatpush1.bf16.msra.mxu0 0
        %1528 = vmatprep.mubr.bf16.mxu0 0
        %1529 = vmatmul.mubr.bf16.gmra.mrb[0].mxu0 %v1494
        %v1530 = vpop.f32.mrb[0].mxu0
        %v1531 = vadd.f32 %v1446, %v1530
        %v1532 = vpop.f32.mrb[0].mxu0
        %v1533 = vadd.f32 %v1450, %v1532
        %v1534 = vpop.f32.mrb[0].mxu0
        %v1535 = vadd.f32 %v1446, %v1534
        %v1536 = vpop.f32.mrb[0].mxu0
        %v1537 = vadd.f32 %v1450, %v1536
        %1538 = vdwg.mxu0
        %v1539 = vmul.f32 %v1531, 0.5
        %v1540 = vmul.f32 %v1533, 0.5
        %v1541 = vmul.f32 %v1535, 0.5
        %v1542 = vmul.f32 %v1537, 0.5
        %v1543 = vmul.f32 %v1531, 0.044715
        %v1544 = vmul.f32 %v1533, 0.044715
        %v1545 = vmul.f32 %v1535, 0.044715
        %v1546 = vmul.f32 %v1537, 0.044715
        %v1547 = vmul.f32 %v1543, %v1531
        %v1548 = vmul.f32 %v1544, %v1533
        %v1549 = vmul.f32 %v1545, %v1535
        %v1550 = vmul.f32 %v1546, %v1537
        %v1551 = vmul.f32 %v1547, %v1531
        %v1552 = vmul.f32 %v1548, %v1533
        %v1553 = vmul.f32 %v1549, %v1535
        %v1554 = vmul.f32 %v1550, %v1537
        %v1555 = vadd.f32 %v1531, %v1551
        %v1556 = vadd.f32 %v1533, %v1552
        %v1557 = vadd.f32 %v1535, %v1553
        %v1558 = vadd.f32 %v1537, %v1554
        %v1559 = vmul.f32 %v1555, 0.7978846
        %v1560 = vmul.f32 %v1556, 0.7978846
        %v1561 = vmul.f32 %v1557, 0.7978846
        %v1562 = vmul.f32 %v1558, 0.7978846
        %v1563 = vtanh.pop %v1559
        %v1564 = vtanh.pop %v1560
        %v1565 = vtanh.pop %v1561
        %v1566 = vtanh.pop %v1562
        %v1567 = vadd.f32 %v1563, 1.0
        %v1568 = vadd.f32 %v1564, 1.0
        %v1569 = vadd.f32 %v1565, 1.0
        %v1570 = vadd.f32 %v1566, 1.0
        %v1571 = vmul.f32 %v1539, %v1567
        %v1572 = vmul.f32 %v1540, %v1568
        %v1573 = vmul.f32 %v1541, %v1569
        %v1574 = vmul.f32 %v1542, %v1570
        %v1575 = vpack.c.bf16 %v1573, %v1571
        %v1576 = vpack.c.bf16 %v1574, %v1572
        %v1577 = vld [vmem:[%s5] sm:$0xf]
        %v1578 = vld [vmem:[%s5 + $0x4] sm:$0xf]
        %v1579 = vld [vmem:[%s5 + $0x8] sm:$0xf]
        %v1580 = vld [vmem:[%s5 + $0xc] sm:$0xf]
        %v1581 = vld [vmem:[%s5 + $0x10] sm:$0xf]
        %v1582 = vld [vmem:[%s5 + $0x14] sm:$0xf]
        %v1583 = vld [vmem:[%s5 + $0x18] sm:$0xf]
        %v1584 = vld [vmem:[%s5 + $0x1c] sm:$0xf]
        %v1585 = vld [vmem:[%s5 + $0x20] sm:$0xf]
        %v1586 = vld [vmem:[%s5 + $0x24] sm:$0xf]
        %v1587 = vld [vmem:[%s5 + $0x28] sm:$0xf]
        %v1588 = vld [vmem:[%s5 + $0x2c] sm:$0xf]
        %v1589 = vld [vmem:[%s5 + $0x30] sm:$0xf]
        %v1590 = vld [vmem:[%s5 + $0x34] sm:$0xf]
        %v1591 = vld [vmem:[%s5 + $0x38] sm:$0xf]
        %v1592 = vld [vmem:[%s5 + $0x3c] sm:$0xf]
        %v1593 = vld [vmem:[%s5 + $0x40] sm:$0xf]
        %v1594 = vld [vmem:[%s5 + $0x44] sm:$0xf]
        %v1595 = vld [vmem:[%s5 + $0x48] sm:$0xf]
        %v1596 = vld [vmem:[%s5 + $0x4c] sm:$0xf]
        %v1597 = vld [vmem:[%s5 + $0x50] sm:$0xf]
        %v1598 = vld [vmem:[%s5 + $0x54] sm:$0xf]
        %v1599 = vld [vmem:[%s5 + $0x58] sm:$0xf]
        %v1600 = vld [vmem:[%s5 + $0x5c] sm:$0xf]
        %v1601 = vld [vmem:[%s5 + $0x60] sm:$0xf]
        %v1602 = vld [vmem:[%s5 + $0x64] sm:$0xf]
        %v1603 = vld [vmem:[%s5 + $0x68] sm:$0xf]
        %v1604 = vld [vmem:[%s5 + $0x6c] sm:$0xf]
        %v1605 = vld [vmem:[%s5 + $0x70] sm:$0xf]
        %v1606 = vld [vmem:[%s5 + $0x74] sm:$0xf]
        %v1607 = vld [vmem:[%s5 + $0x78] sm:$0xf]
        %v1608 = vld [vmem:[%s5 + $0x7c] sm:$0xf]
        %v1610 = vlaneseq
        %v1611 = vshrl.u32 %v1610, 7
        %v1612 = vsub.s32 0, %v1611
        %v1613 = vrot.slane %v314, %v1612
        %v1647 = vunpack.c.l.b16 %v1577
        %v1648 = vunpack.c.l.b16 %v1578
        %v1649 = vunpack.c.l.b16 %v1579
        %v1650 = vunpack.c.l.b16 %v1580
        %v1651 = vunpack.c.l.b16 %v1581
        %v1652 = vunpack.c.l.b16 %v1582
        %v1653 = vunpack.c.l.b16 %v1583
        %v1654 = vunpack.c.l.b16 %v1584
        %v1655 = vunpack.c.l.b16 %v1585
        %v1656 = vunpack.c.l.b16 %v1586
        %v1657 = vunpack.c.l.b16 %v1587
        %v1658 = vunpack.c.l.b16 %v1588
        %v1659 = vunpack.c.l.b16 %v1589
        %v1660 = vunpack.c.l.b16 %v1590
        %v1661 = vunpack.c.l.b16 %v1591
        %v1662 = vunpack.c.l.b16 %v1592
        %v1663 = vunpack.c.l.b16 %v1593
        %v1664 = vunpack.c.l.b16 %v1594
        %v1665 = vunpack.c.l.b16 %v1595
        %v1666 = vunpack.c.l.b16 %v1596
        %v1667 = vunpack.c.l.b16 %v1597
        %v1668 = vunpack.c.l.b16 %v1598
        %v1669 = vunpack.c.l.b16 %v1599
        %v1670 = vunpack.c.l.b16 %v1600
        %v1671 = vunpack.c.l.b16 %v1601
        %v1672 = vunpack.c.l.b16 %v1602
        %v1673 = vunpack.c.l.b16 %v1603
        %v1674 = vunpack.c.l.b16 %v1604
        %v1675 = vunpack.c.l.b16 %v1605
        %v1676 = vunpack.c.l.b16 %v1606
        %v1677 = vunpack.c.l.b16 %v1607
        %v1678 = vunpack.c.l.b16 %v1608
        %v1679 = vpack.c.b16 %v1648, %v1647
        %v1680 = vpack.c.b16 %v1650, %v1649
        %v1681 = vpack.c.b16 %v1652, %v1651
        %v1682 = vpack.c.b16 %v1654, %v1653
        %v1683 = vpack.c.b16 %v1656, %v1655
        %v1684 = vpack.c.b16 %v1658, %v1657
        %v1685 = vpack.c.b16 %v1660, %v1659
        %v1686 = vpack.c.b16 %v1662, %v1661
        %v1687 = vpack.c.b16 %v1664, %v1663
        %v1688 = vpack.c.b16 %v1666, %v1665
        %v1689 = vpack.c.b16 %v1668, %v1667
        %v1690 = vpack.c.b16 %v1670, %v1669
        %v1691 = vpack.c.b16 %v1672, %v1671
        %v1692 = vpack.c.b16 %v1674, %v1673
        %v1693 = vpack.c.b16 %v1676, %v1675
        %v1694 = vpack.c.b16 %v1678, %v1677
        %1711 = vmatprep.subr.bf16.mxu0 0
        %1712 = vmatpush1.bf16.msra.mxu0 %v1679
        %1713 = vmatprep.subr.bf16.mxu0 0
        %1714 = vmatpush1.bf16.msra.mxu0 %v1680
        %1715 = vmatprep.subr.bf16.mxu0 0
        %1716 = vmatpush1.bf16.msra.mxu0 %v1681
        %1717 = vmatprep.subr.bf16.mxu0 0
        %1718 = vmatpush1.bf16.msra.mxu0 %v1682
        %1719 = vmatprep.subr.bf16.mxu0 0
        %1720 = vmatpush1.bf16.msra.mxu0 %v1683
        %1721 = vmatprep.subr.bf16.mxu0 0
        %1722 = vmatpush1.bf16.msra.mxu0 %v1684
        %1723 = vmatprep.subr.bf16.mxu0 0
        %1724 = vmatpush1.bf16.msra.mxu0 %v1685
        %1725 = vmatprep.subr.bf16.mxu0 0
        %1726 = vmatpush1.bf16.msra.mxu0 %v1686
        %1727 = vmatprep.subr.bf16.mxu0 0
        %1728 = vmatpush1.bf16.msra.mxu0 %v1687
        %1729 = vmatprep.subr.bf16.mxu0 0
        %1730 = vmatpush1.bf16.msra.mxu0 %v1688
        %1731 = vmatprep.subr.bf16.mxu0 0
        %1732 = vmatpush1.bf16.msra.mxu0 %v1689
        %1733 = vmatprep.subr.bf16.mxu0 0
        %1734 = vmatpush1.bf16.msra.mxu0 %v1690
        %1735 = vmatprep.subr.bf16.mxu0 0
        %1736 = vmatpush1.bf16.msra.mxu0 %v1691
        %1737 = vmatprep.subr.bf16.mxu0 0
        %1738 = vmatpush1.bf16.msra.mxu0 %v1692
        %1739 = vmatprep.subr.bf16.mxu0 0
        %1740 = vmatpush1.bf16.msra.mxu0 %v1693
        %1741 = vmatprep.subr.bf16.mxu0 0
        %1742 = vmatpush1.bf16.msra.mxu0 %v1694
        %1743 = vmatprep.mubr.bf16.mxu0 %v1576
        %1744 = vmatmul.mubr.bf16.gmra.mrb[0].mxu0 %v1575
        %v1745 = vpop.f32.mrb[0].mxu0
        %v1746 = vadd.f32 %v1613, %v1745
        %v1747 = vpop.f32.mrb[0].mxu0
        %v1748 = vpop.f32.mrb[0].mxu0
        %v1749 = vadd.f32 %v1613, %v1748
        %v1750 = vpop.f32.mrb[0].mxu0
        %1751 = vdwg.mxu0
        %v1753 = vlaneseq
        %v1754 = vshrl.u32 %v1753, 7
        %v1755 = vsub.s32 0, %v1754
        %v1756 = vrot.slane %v307, %v1755
        %v1758 = vmul.f32 %v1756, %v1746
        %v1759 = vmul.f32 %v1756, %v1749
        %v1760 = vadd.f32 %v1388, %v1758
        %v1761 = vadd.f32 %v1389, %v1759
        %s1762 = scalar_lea.vmem %s293, 6
        %v1763 = vld [vmem:[%s1762] sm:$0x1]
        %s1764 = scalar_lea.vmem %s293, 7
        %v1765 = vld [vmem:[%s1764] sm:$0x1]
        %s1766 = scalar_lea.vmem %s293, 8
        %v1767 = vld [vmem:[%s1766] sm:$0x1]
        %s1768 = scalar_lea.vmem %s293, 9
        %v1769 = vld [vmem:[%s1768] sm:$0x1]
        %s1770 = scalar_lea.vmem %s293, 10
        %v1771 = vld [vmem:[%s1770] sm:$0x1]
        %s1772 = scalar_lea.vmem %s293, 11
        %v1773 = vld [vmem:[%s1772] sm:$0x1]
        %s1774 = scalar_lea.vmem %s6, 8
        %v1775 = vld [vmem:[%s1774] sm:$0x3]
        %s1776 = scalar_lea.vmem %s6, 10
        %v1777 = vld [vmem:[%s1776] sm:$0x3]
        %s1778 = scalar_lea.vmem %s6, 12
        %v1779 = vld [vmem:[%s1778] sm:$0x3]
        %s1780 = scalar_lea.vmem %s6, 14
        %v1781 = vld [vmem:[%s1780] sm:$0x3]
        %v1782 = vsel %vm315, %v1760, 0.0
        %1783 = vadd.xlane.f32.xlu0 %v1782
        %v1784 = vpop.xlane.xlu0 %1783
        %v1785 = vsel %vm315, %v1761, 0.0
        %1786 = vadd.xlane.f32.xlu0 %v1785
        %v1787 = vpop.xlane.xlu0 %1786
        %v1788 = vmul.f32 %v1784, %v322
        %v1789 = vmul.f32 %v1787, %v322
        %v1790 = vsub.f32 %v1760, %v1788
        %v1791 = vsub.f32 %v1761, %v1789
        %v1792 = vmul.f32 %v1790, %v1790
        %v1793 = vmul.f32 %v1791, %v1791
        %v1794 = vsel %vm315, %v1792, 0.0
        %1795 = vadd.xlane.f32.xlu0 %v1794
        %v1796 = vpop.xlane.xlu0 %1795
        %v1797 = vsel %vm315, %v1793, 0.0
        %1798 = vadd.xlane.f32.xlu0 %v1797
        %v1799 = vpop.xlane.xlu0 %1798
        %v1800 = vmul.f32 %v1796, %v322
        %v1801 = vmul.f32 %v1799, %v322
        %v1802 = vadd.f32 %v1800, 1e-06
        %v1803 = vadd.f32 %v1801, 1e-06
        %v1804 = vrsqrt.pop %v1802
        %v1805 = vrsqrt.pop %v1803
        %v1806 = vmul.f32 %v1790, %v1804
        %v1807 = vmul.f32 %v1791, %v1805
        %v1808 = vadd.f32 %v1765, 1.0
        %v1810 = vlaneseq
        %v1811 = vshrl.u32 %v1810, 7
        %v1812 = vsub.s32 0, %v1811
        %v1813 = vrot.slane %v1808, %v1812
        %v1815 = vmul.f32 %v1806, %v1813
        %v1816 = vmul.f32 %v1807, %v1813
        %v1818 = vlaneseq
        %v1819 = vshrl.u32 %v1818, 7
        %v1820 = vsub.s32 0, %v1819
        %v1821 = vrot.slane %v1763, %v1820
        %v1823 = vadd.f32 %v1815, %v1821
        %v1824 = vadd.f32 %v1816, %v1821
        %v1825 = vpack.c.bf16 %v1824, %v1823
        %s1826 = scalar_lea.vmem %s2, 64
        %v1827 = vld [vmem:[%s1826] sm:$0xff]
        %v1828 = vld [vmem:[%s1826 + $0x8] sm:$0xff]
        %v1829 = vld [vmem:[%s1826 + $0x10] sm:$0xff]
        %v1830 = vld [vmem:[%s1826 + $0x18] sm:$0xff]
        %v1831 = vld [vmem:[%s1826 + $0x20] sm:$0xff]
        %v1832 = vld [vmem:[%s1826 + $0x28] sm:$0xff]
        %v1833 = vld [vmem:[%s1826 + $0x30] sm:$0xff]
        %v1834 = vld [vmem:[%s1826 + $0x38] sm:$0xff]
        %v1836 = vlaneseq
        %v1837 = vshrl.u32 %v1836, 7
        %v1838 = vsub.s32 0, %v1837
        %v1839 = vrot.slane %v1775, %v1838
        %v1840 = vlaneseq
        %v1841 = vshrl.u32 %v1840, 7
        %v1842 = vsub.s32 1, %v1841
        %v1843 = vrot.slane %v1775, %v1842
        %v1854 = vunpack.c.l.b16 %v1827
        %v1855 = vunpack.c.h.b16 %v1827
        %v1856 = vunpack.c.l.b16 %v1828
        %v1857 = vunpack.c.h.b16 %v1828
        %v1858 = vunpack.c.l.b16 %v1829
        %v1859 = vunpack.c.h.b16 %v1829
        %v1860 = vunpack.c.l.b16 %v1830
        %v1861 = vunpack.c.h.b16 %v1830
        %v1862 = vunpack.c.l.b16 %v1831
        %v1863 = vunpack.c.h.b16 %v1831
        %v1864 = vunpack.c.l.b16 %v1832
        %v1865 = vunpack.c.h.b16 %v1832
        %v1866 = vunpack.c.l.b16 %v1833
        %v1867 = vunpack.c.h.b16 %v1833
        %v1868 = vunpack.c.l.b16 %v1834
        %v1869 = vunpack.c.h.b16 %v1834
        %v1870 = vpack.c.b16 %v1856, %v1854
        %v1871 = vpack.c.b16 %v1857, %v1855
        %v1872 = vpack.c.b16 %v1860, %v1858
        %v1873 = vpack.c.b16 %v1861, %v1859
        %v1874 = vpack.c.b16 %v1864, %v1862
        %v1875 = vpack.c.b16 %v1865, %v1863
        %v1876 = vpack.c.b16 %v1868, %v1866
        %v1877 = vpack.c.b16 %v1869, %v1867
        %v1887 = vsel %vm315, %v1825, 0
        %1889 = vmatprep.subr.bf16.mxu0 %v1871
        %1890 = vmatpush1.bf16.msra.mxu0 %v1870
        %1891 = vmatprep.subr.bf16.mxu0 %v1873
        %1892 = vmatpush1.bf16.msra.mxu0 %v1872
        %1893 = vmatprep.subr.bf16.mxu0 %v1875
        %1894 = vmatpush1.bf16.msra.mxu0 %v1874
        %1895 = vmatprep.subr.bf16.mxu0 %v1877
        %1896 = vmatpush1.bf16.msra.mxu0 %v1876
        %1897 = vmatprep.subr.bf16.mxu0 0
        %1898 = vmatpush1.bf16.msra.mxu0 0
        %1899 = vmatprep.subr.bf16.mxu0 0
        %1900 = vmatpush1.bf16.msra.mxu0 0
        %1901 = vmatprep.subr.bf16.mxu0 0
        %1902 = vmatpush1.bf16.msra.mxu0 0
        %1903 = vmatprep.subr.bf16.mxu0 0
        %1904 = vmatpush1.bf16.msra.mxu0 0
        %1905 = vmatprep.subr.bf16.mxu0 0
        %1906 = vmatpush1.bf16.msra.mxu0 0
        %1907 = vmatprep.subr.bf16.mxu0 0
        %1908 = vmatpush1.bf16.msra.mxu0 0
        %1909 = vmatprep.subr.bf16.mxu0 0
        %1910 = vmatpush1.bf16.msra.mxu0 0
        %1911 = vmatprep.subr.bf16.mxu0 0
        %1912 = vmatpush1.bf16.msra.mxu0 0
        %1913 = vmatprep.subr.bf16.mxu0 0
        %1914 = vmatpush1.bf16.msra.mxu0 0
        %1915 = vmatprep.subr.bf16.mxu0 0
        %1916 = vmatpush1.bf16.msra.mxu0 0
        %1917 = vmatprep.subr.bf16.mxu0 0
        %1918 = vmatpush1.bf16.msra.mxu0 0
        %1919 = vmatprep.subr.bf16.mxu0 0
        %1920 = vmatpush1.bf16.msra.mxu0 0
        %1921 = vmatprep.mubr.bf16.mxu0 0
        %1922 = vmatmul.mubr.bf16.gmra.mrb[0].mxu0 %v1887
        %v1923 = vpop.f32.mrb[0].mxu0
        %v1924 = vadd.f32 %v1839, %v1923
        %v1925 = vpop.f32.mrb[0].mxu0
        %v1926 = vadd.f32 %v1843, %v1925
        %v1927 = vpop.f32.mrb[0].mxu0
        %v1928 = vadd.f32 %v1839, %v1927
        %v1929 = vpop.f32.mrb[0].mxu0
        %v1930 = vadd.f32 %v1843, %v1929
        %1931 = vdwg.mxu0
        %v1932 = vmul.f32 %v1924, 0.25
        %v1933 = vmul.f32 %v1928, 0.25
        %1936 = vrot.lane.b32.xlu0 %v1924, 64
        %v1937 = vpop.permute.xlu0 %1936
        %1938 = vrot.lane.b32.xlu0 %v1928, 64
        %v1939 = vpop.permute.xlu0 %1938
        %v1941 = vsel %vm474, %v1932, 0
        %v1944 = vsel %vm474, %v1933, 0
        %v1946 = vsel %vm474, %v1937, 0
        %v1948 = vsel %vm474, %v1939, 0
        %1950 = vmatprep.subr.mxu0 0.0
        %1951 = vmatpush1.xpose.msra.mxu0 %v1946
        %1952 = vmatprep.subr.mxu0 0.0
        %1953 = vmatpush1.xpose.msra.mxu0 %v1948
        %1954 = vmatprep.subr.mxu0 0.0
        %1955 = vmatpush1.xpose.msra.mxu0 0.0
        %1956 = vmatprep.subr.mxu0 0.0
        %1957 = vmatpush1.xpose.msra.mxu0 0.0
        %1958 = vmatprep.subr.mxu0 0.0
        %1959 = vmatpush1.xpose.msra.mxu0 0.0
        %1960 = vmatprep.subr.mxu0 0.0
        %1961 = vmatpush1.xpose.msra.mxu0 0.0
        %1962 = vmatprep.subr.mxu0 0.0
        %1963 = vmatpush1.xpose.msra.mxu0 0.0
        %1964 = vmatprep.subr.mxu0 0.0
        %1965 = vmatpush1.xpose.msra.mxu0 0.0
        %1966 = vmatprep.subr.mxu0 0.0
        %1967 = vmatpush1.xpose.msra.mxu0 0.0
        %1968 = vmatprep.subr.mxu0 0.0
        %1969 = vmatpush1.xpose.msra.mxu0 0.0
        %1970 = vmatprep.subr.mxu0 0.0
        %1971 = vmatpush1.xpose.msra.mxu0 0.0
        %1972 = vmatprep.subr.mxu0 0.0
        %1973 = vmatpush1.xpose.msra.mxu0 0.0
        %1974 = vmatprep.subr.mxu0 0.0
        %1975 = vmatpush1.xpose.msra.mxu0 0.0
        %1976 = vmatprep.subr.mxu0 0.0
        %1977 = vmatpush1.xpose.msra.mxu0 0.0
        %1978 = vmatprep.subr.mxu0 0.0
        %1979 = vmatpush1.xpose.msra.mxu0 0.0
        %1980 = vmatprep.subr.mxu0 0.0
        %1981 = vmatpush1.xpose.msra.mxu0 0.0
        %1982 = vmatprep.subr.mxu0 0.0
        %1983 = vmatpush1.xpose.msra.mxu0 0.0
        %1984 = vmatprep.subr.mxu0 0.0
        %1985 = vmatpush1.xpose.msra.mxu0 0.0
        %1986 = vmatprep.subr.mxu0 0.0
        %1987 = vmatpush1.xpose.msra.mxu0 0.0
        %1988 = vmatprep.subr.mxu0 0.0
        %1989 = vmatpush1.xpose.msra.mxu0 0.0
        %1990 = vmatprep.subr.mxu0 0.0
        %1991 = vmatpush1.xpose.msra.mxu0 0.0
        %1992 = vmatprep.subr.mxu0 0.0
        %1993 = vmatpush1.xpose.msra.mxu0 0.0
        %1994 = vmatprep.subr.mxu0 0.0
        %1995 = vmatpush1.xpose.msra.mxu0 0.0
        %1996 = vmatprep.subr.mxu0 0.0
        %1997 = vmatpush1.xpose.msra.mxu0 0.0
        %1998 = vmatprep.subr.mxu0 0.0
        %1999 = vmatpush1.xpose.msra.mxu0 0.0
        %2000 = vmatprep.subr.mxu0 0.0
        %2001 = vmatpush1.xpose.msra.mxu0 0.0
        %2002 = vmatprep.subr.mxu0 0.0
        %2003 = vmatpush1.xpose.msra.mxu0 0.0
        %2004 = vmatprep.subr.mxu0 0.0
        %2005 = vmatpush1.xpose.msra.mxu0 0.0
        %2006 = vmatprep.subr.mxu0 0.0
        %2007 = vmatpush1.xpose.msra.mxu0 0.0
        %2008 = vmatprep.subr.mxu0 0.0
        %2009 = vmatpush1.xpose.msra.mxu0 0.0
        %2010 = vmatprep.subr.mxu0 0.0
        %2011 = vmatpush1.xpose.msra.mxu0 0.0
        %2012 = vmatprep.subr.mxu0 0.0
        %2013 = vmatpush1.xpose.msra.mxu0 0.0
        %2014 = vmatprep.mubr.f32.mxu0 0.0
        %2015 = vmatmul.mubr.f32.gmra.mrb[0].mxu0 %v1941
        %v2016 = vpop.f32.mrb[0].mxu0
        %v2017 = vadd.f32 0.0, %v2016
        %v2018 = vpop.f32.mrb[0].mxu0
        %2019 = vmatprep.mubr.f32.mxu0 0.0
        %2020 = vmatmul.mubr.f32.gmra.mrb[0].mxu0 %v1944
        %v2021 = vpop.f32.mrb[0].mxu0
        %v2022 = vadd.f32 0.0, %v2021
        %v2023 = vpop.f32.mrb[0].mxu0
        %2024 = vdwg.mxu0
        %v2025 = vsel %vm474, %v2017, -inf
        %2026 = vmax.xlane.f32.xlu0 %v2025
        %v2027 = vpop.xlane.xlu0 %2026
        %v2028 = vsel %vm474, %v2022, -inf
        %2029 = vmax.xlane.f32.xlu0 %v2028
        %v2030 = vpop.xlane.xlu0 %2029
        %v2031 = vsub.f32 %v2017, %v2027
        %v2032 = vsub.f32 %v2022, %v2030
        %v2033 = vmul.f32 %v2031, 1.442695
        %v2034 = vpow.pop %v2033
        %v2035 = vmul.f32 %v2032, 1.442695
        %v2036 = vpow.pop %v2035
        %v2037 = vsel %vm474, %v2034, 0.0
        %2038 = vadd.xlane.f32.xlu0 %v2037
        %v2039 = vpop.xlane.xlu0 %2038
        %v2040 = vsel %vm474, %v2036, 0.0
        %2041 = vadd.xlane.f32.xlu0 %v2040
        %v2042 = vpop.xlane.xlu0 %2041
        %v2043 = vrcp.pop %v2039
        %v2044 = vrcp.pop %v2042
        %v2045 = vmul.f32 %v2034, %v2043
        %v2046 = vmul.f32 %v2036, %v2044
        %v2048 = vsel %vm474, %v2045, 0
        %v2051 = vsel %vm474, %v2046, 0
        %2053 = vmatprep.subr.mxu0 0.0
        %2054 = vmatpush1.msra.mxu0 %v1926
        %2055 = vmatprep.subr.mxu0 0.0
        %2056 = vmatpush1.msra.mxu0 %v1930
        %2057 = vmatprep.subr.mxu0 0.0
        %2058 = vmatpush1.msra.mxu0 0.0
        %2059 = vmatprep.subr.mxu0 0.0
        %2060 = vmatpush1.msra.mxu0 0.0
        %2061 = vmatprep.subr.mxu0 0.0
        %2062 = vmatpush1.msra.mxu0 0.0
        %2063 = vmatprep.subr.mxu0 0.0
        %2064 = vmatpush1.msra.mxu0 0.0
        %2065 = vmatprep.subr.mxu0 0.0
        %2066 = vmatpush1.msra.mxu0 0.0
        %2067 = vmatprep.subr.mxu0 0.0
        %2068 = vmatpush1.msra.mxu0 0.0
        %2069 = vmatprep.subr.mxu0 0.0
        %2070 = vmatpush1.msra.mxu0 0.0
        %2071 = vmatprep.subr.mxu0 0.0
        %2072 = vmatpush1.msra.mxu0 0.0
        %2073 = vmatprep.subr.mxu0 0.0
        %2074 = vmatpush1.msra.mxu0 0.0
        %2075 = vmatprep.subr.mxu0 0.0
        %2076 = vmatpush1.msra.mxu0 0.0
        %2077 = vmatprep.subr.mxu0 0.0
        %2078 = vmatpush1.msra.mxu0 0.0
        %2079 = vmatprep.subr.mxu0 0.0
        %2080 = vmatpush1.msra.mxu0 0.0
        %2081 = vmatprep.subr.mxu0 0.0
        %2082 = vmatpush1.msra.mxu0 0.0
        %2083 = vmatprep.subr.mxu0 0.0
        %2084 = vmatpush1.msra.mxu0 0.0
        %2085 = vmatprep.subr.mxu0 0.0
        %2086 = vmatpush1.msra.mxu0 0.0
        %2087 = vmatprep.subr.mxu0 0.0
        %2088 = vmatpush1.msra.mxu0 0.0
        %2089 = vmatprep.subr.mxu0 0.0
        %2090 = vmatpush1.msra.mxu0 0.0
        %2091 = vmatprep.subr.mxu0 0.0
        %2092 = vmatpush1.msra.mxu0 0.0
        %2093 = vmatprep.subr.mxu0 0.0
        %2094 = vmatpush1.msra.mxu0 0.0
        %2095 = vmatprep.subr.mxu0 0.0
        %2096 = vmatpush1.msra.mxu0 0.0
        %2097 = vmatprep.subr.mxu0 0.0
        %2098 = vmatpush1.msra.mxu0 0.0
        %2099 = vmatprep.subr.mxu0 0.0
        %2100 = vmatpush1.msra.mxu0 0.0
        %2101 = vmatprep.subr.mxu0 0.0
        %2102 = vmatpush1.msra.mxu0 0.0
        %2103 = vmatprep.subr.mxu0 0.0
        %2104 = vmatpush1.msra.mxu0 0.0
        %2105 = vmatprep.subr.mxu0 0.0
        %2106 = vmatpush1.msra.mxu0 0.0
        %2107 = vmatprep.subr.mxu0 0.0
        %2108 = vmatpush1.msra.mxu0 0.0
        %2109 = vmatprep.subr.mxu0 0.0
        %2110 = vmatpush1.msra.mxu0 0.0
        %2111 = vmatprep.subr.mxu0 0.0
        %2112 = vmatpush1.msra.mxu0 0.0
        %2113 = vmatprep.subr.mxu0 0.0
        %2114 = vmatpush1.msra.mxu0 0.0
        %2115 = vmatprep.subr.mxu0 0.0
        %2116 = vmatpush1.msra.mxu0 0.0
        %2117 = vmatprep.mubr.f32.mxu0 0.0
        %2118 = vmatmul.mubr.f32.gmra.mrb[0].mxu0 %v2048
        %v2119 = vpop.f32.mrb[0].mxu0
        %v2120 = vadd.f32 0.0, %v2119
        %v2121 = vpop.f32.mrb[0].mxu0
        %2122 = vmatprep.mubr.f32.mxu0 0.0
        %2123 = vmatmul.mubr.f32.gmra.mrb[0].mxu0 %v2051
        %v2124 = vpop.f32.mrb[0].mxu0
        %v2125 = vadd.f32 0.0, %v2124
        %v2126 = vpop.f32.mrb[0].mxu0
        %2127 = vdwg.mxu0
        %2128 = vrot.lane.b32.xlu0 %v1932, 112
        %v2129 = vpop.permute.xlu0 %2128
        %2130 = vrot.lane.b32.xlu0 %v1933, 112
        %v2131 = vpop.permute.xlu0 %2130
        %2132 = vrot.lane.b32.xlu0 %v1924, 48
        %v2133 = vpop.permute.xlu0 %2132
        %2134 = vrot.lane.b32.xlu0 %v1928, 48
        %v2135 = vpop.permute.xlu0 %2134
        %v2136 = vsel %vm474, %v2129, 0
        %v2138 = vsel %vm474, %v2131, 0
        %v2140 = vsel %vm474, %v2133, 0
        %v2142 = vsel %vm474, %v2135, 0
        %2144 = vmatprep.subr.mxu0 0.0
        %2145 = vmatpush1.xpose.msra.mxu0 %v2140
        %2146 = vmatprep.subr.mxu0 0.0
        %2147 = vmatpush1.xpose.msra.mxu0 %v2142
        %2148 = vmatprep.subr.mxu0 0.0
        %2149 = vmatpush1.xpose.msra.mxu0 0.0
        %2150 = vmatprep.subr.mxu0 0.0
        %2151 = vmatpush1.xpose.msra.mxu0 0.0
        %2152 = vmatprep.subr.mxu0 0.0
        %2153 = vmatpush1.xpose.msra.mxu0 0.0
        %2154 = vmatprep.subr.mxu0 0.0
        %2155 = vmatpush1.xpose.msra.mxu0 0.0
        %2156 = vmatprep.subr.mxu0 0.0
        %2157 = vmatpush1.xpose.msra.mxu0 0.0
        %2158 = vmatprep.subr.mxu0 0.0
        %2159 = vmatpush1.xpose.msra.mxu0 0.0
        %2160 = vmatprep.subr.mxu0 0.0
        %2161 = vmatpush1.xpose.msra.mxu0 0.0
        %2162 = vmatprep.subr.mxu0 0.0
        %2163 = vmatpush1.xpose.msra.mxu0 0.0
        %2164 = vmatprep.subr.mxu0 0.0
        %2165 = vmatpush1.xpose.msra.mxu0 0.0
        %2166 = vmatprep.subr.mxu0 0.0
        %2167 = vmatpush1.xpose.msra.mxu0 0.0
        %2168 = vmatprep.subr.mxu0 0.0
        %2169 = vmatpush1.xpose.msra.mxu0 0.0
        %2170 = vmatprep.subr.mxu0 0.0
        %2171 = vmatpush1.xpose.msra.mxu0 0.0
        %2172 = vmatprep.subr.mxu0 0.0
        %2173 = vmatpush1.xpose.msra.mxu0 0.0
        %2174 = vmatprep.subr.mxu0 0.0
        %2175 = vmatpush1.xpose.msra.mxu0 0.0
        %2176 = vmatprep.subr.mxu0 0.0
        %2177 = vmatpush1.xpose.msra.mxu0 0.0
        %2178 = vmatprep.subr.mxu0 0.0
        %2179 = vmatpush1.xpose.msra.mxu0 0.0
        %2180 = vmatprep.subr.mxu0 0.0
        %2181 = vmatpush1.xpose.msra.mxu0 0.0
        %2182 = vmatprep.subr.mxu0 0.0
        %2183 = vmatpush1.xpose.msra.mxu0 0.0
        %2184 = vmatprep.subr.mxu0 0.0
        %2185 = vmatpush1.xpose.msra.mxu0 0.0
        %2186 = vmatprep.subr.mxu0 0.0
        %2187 = vmatpush1.xpose.msra.mxu0 0.0
        %2188 = vmatprep.subr.mxu0 0.0
        %2189 = vmatpush1.xpose.msra.mxu0 0.0
        %2190 = vmatprep.subr.mxu0 0.0
        %2191 = vmatpush1.xpose.msra.mxu0 0.0
        %2192 = vmatprep.subr.mxu0 0.0
        %2193 = vmatpush1.xpose.msra.mxu0 0.0
        %2194 = vmatprep.subr.mxu0 0.0
        %2195 = vmatpush1.xpose.msra.mxu0 0.0
        %2196 = vmatprep.subr.mxu0 0.0
        %2197 = vmatpush1.xpose.msra.mxu0 0.0
        %2198 = vmatprep.subr.mxu0 0.0
        %2199 = vmatpush1.xpose.msra.mxu0 0.0
        %2200 = vmatprep.subr.mxu0 0.0
        %2201 = vmatpush1.xpose.msra.mxu0 0.0
        %2202 = vmatprep.subr.mxu0 0.0
        %2203 = vmatpush1.xpose.msra.mxu0 0.0
        %2204 = vmatprep.subr.mxu0 0.0
        %2205 = vmatpush1.xpose.msra.mxu0 0.0
        %2206 = vmatprep.subr.mxu0 0.0
        %2207 = vmatpush1.xpose.msra.mxu0 0.0
        %2208 = vmatprep.mubr.f32.mxu0 0.0
        %2209 = vmatmul.mubr.f32.gmra.mrb[0].mxu0 %v2136
        %v2210 = vpop.f32.mrb[0].mxu0
        %v2211 = vadd.f32 0.0, %v2210
        %v2212 = vpop.f32.mrb[0].mxu0
        %2213 = vmatprep.mubr.f32.mxu0 0.0
        %2214 = vmatmul.mubr.f32.gmra.mrb[0].mxu0 %v2138
        %v2215 = vpop.f32.mrb[0].mxu0
        %v2216 = vadd.f32 0.0, %v2215
        %v2217 = vpop.f32.mrb[0].mxu0
        %2218 = vdwg.mxu0
        %v2219 = vsel %vm474, %v2211, -inf
        %2220 = vmax.xlane.f32.xlu0 %v2219
        %v2221 = vpop.xlane.xlu0 %2220
        %v2222 = vsel %vm474, %v2216, -inf
        %2223 = vmax.xlane.f32.xlu0 %v2222
        %v2224 = vpop.xlane.xlu0 %2223
        %v2225 = vsub.f32 %v2211, %v2221
        %v2226 = vsub.f32 %v2216, %v2224
        %v2227 = vmul.f32 %v2225, 1.442695
        %v2228 = vpow.pop %v2227
        %v2229 = vmul.f32 %v2226, 1.442695
        %v2230 = vpow.pop %v2229
        %v2231 = vsel %vm474, %v2228, 0.0
        %2232 = vadd.xlane.f32.xlu0 %v2231
        %v2233 = vpop.xlane.xlu0 %2232
        %v2234 = vsel %vm474, %v2230, 0.0
        %2235 = vadd.xlane.f32.xlu0 %v2234
        %v2236 = vpop.xlane.xlu0 %2235
        %v2237 = vrcp.pop %v2233
        %v2238 = vrcp.pop %v2236
        %v2239 = vmul.f32 %v2228, %v2237
        %v2240 = vmul.f32 %v2230, %v2238
        %2243 = vrot.lane.b32.xlu0 %v1926, 112
        %v2244 = vpop.permute.xlu0 %2243
        %2245 = vrot.lane.b32.xlu0 %v1930, 112
        %v2246 = vpop.permute.xlu0 %2245
        %v2250 = vsel %vm474, %v2239, 0
        %v2253 = vsel %vm474, %v2240, 0
        %2255 = vmatprep.subr.mxu0 0.0
        %2256 = vmatpush1.msra.mxu0 %v2244
        %2257 = vmatprep.subr.mxu0 0.0
        %2258 = vmatpush1.msra.mxu0 %v2246
        %2259 = vmatprep.subr.mxu0 0.0
        %2260 = vmatpush1.msra.mxu0 0.0
        %2261 = vmatprep.subr.mxu0 0.0
        %2262 = vmatpush1.msra.mxu0 0.0
        %2263 = vmatprep.subr.mxu0 0.0
        %2264 = vmatpush1.msra.mxu0 0.0
        %2265 = vmatprep.subr.mxu0 0.0
        %2266 = vmatpush1.msra.mxu0 0.0
        %2267 = vmatprep.subr.mxu0 0.0
        %2268 = vmatpush1.msra.mxu0 0.0
        %2269 = vmatprep.subr.mxu0 0.0
        %2270 = vmatpush1.msra.mxu0 0.0
        %2271 = vmatprep.subr.mxu0 0.0
        %2272 = vmatpush1.msra.mxu0 0.0
        %2273 = vmatprep.subr.mxu0 0.0
        %2274 = vmatpush1.msra.mxu0 0.0
        %2275 = vmatprep.subr.mxu0 0.0
        %2276 = vmatpush1.msra.mxu0 0.0
        %2277 = vmatprep.subr.mxu0 0.0
        %2278 = vmatpush1.msra.mxu0 0.0
        %2279 = vmatprep.subr.mxu0 0.0
        %2280 = vmatpush1.msra.mxu0 0.0
        %2281 = vmatprep.subr.mxu0 0.0
        %2282 = vmatpush1.msra.mxu0 0.0
        %2283 = vmatprep.subr.mxu0 0.0
        %2284 = vmatpush1.msra.mxu0 0.0
        %2285 = vmatprep.subr.mxu0 0.0
        %2286 = vmatpush1.msra.mxu0 0.0
        %2287 = vmatprep.subr.mxu0 0.0
        %2288 = vmatpush1.msra.mxu0 0.0
        %2289 = vmatprep.subr.mxu0 0.0
        %2290 = vmatpush1.msra.mxu0 0.0
        %2291 = vmatprep.subr.mxu0 0.0
        %2292 = vmatpush1.msra.mxu0 0.0
        %2293 = vmatprep.subr.mxu0 0.0
        %2294 = vmatpush1.msra.mxu0 0.0
        %2295 = vmatprep.subr.mxu0 0.0
        %2296 = vmatpush1.msra.mxu0 0.0
        %2297 = vmatprep.subr.mxu0 0.0
        %2298 = vmatpush1.msra.mxu0 0.0
        %2299 = vmatprep.subr.mxu0 0.0
        %2300 = vmatpush1.msra.mxu0 0.0
        %2301 = vmatprep.subr.mxu0 0.0
        %2302 = vmatpush1.msra.mxu0 0.0
        %2303 = vmatprep.subr.mxu0 0.0
        %2304 = vmatpush1.msra.mxu0 0.0
        %2305 = vmatprep.subr.mxu0 0.0
        %2306 = vmatpush1.msra.mxu0 0.0
        %2307 = vmatprep.subr.mxu0 0.0
        %2308 = vmatpush1.msra.mxu0 0.0
        %2309 = vmatprep.subr.mxu0 0.0
        %2310 = vmatpush1.msra.mxu0 0.0
        %2311 = vmatprep.subr.mxu0 0.0
        %2312 = vmatpush1.msra.mxu0 0.0
        %2313 = vmatprep.subr.mxu0 0.0
        %2314 = vmatpush1.msra.mxu0 0.0
        %2315 = vmatprep.subr.mxu0 0.0
        %2316 = vmatpush1.msra.mxu0 0.0
        %2317 = vmatprep.subr.mxu0 0.0
        %2318 = vmatpush1.msra.mxu0 0.0
        %2319 = vmatprep.mubr.f32.mxu0 0.0
        %2320 = vmatmul.mubr.f32.gmra.mrb[0].mxu0 %v2250
        %v2321 = vpop.f32.mrb[0].mxu0
        %v2322 = vadd.f32 0.0, %v2321
        %v2323 = vpop.f32.mrb[0].mxu0
        %2324 = vmatprep.mubr.f32.mxu0 0.0
        %2325 = vmatmul.mubr.f32.gmra.mrb[0].mxu0 %v2253
        %v2326 = vpop.f32.mrb[0].mxu0
        %v2327 = vadd.f32 0.0, %v2326
        %v2328 = vpop.f32.mrb[0].mxu0
        %2329 = vdwg.mxu0
        %2330 = vrot.lane.b32.xlu0 %v1932, 96
        %v2331 = vpop.permute.xlu0 %2330
        %2332 = vrot.lane.b32.xlu0 %v1933, 96
        %v2333 = vpop.permute.xlu0 %2332
        %2334 = vrot.lane.b32.xlu0 %v1924, 32
        %v2335 = vpop.permute.xlu0 %2334
        %2336 = vrot.lane.b32.xlu0 %v1928, 32
        %v2337 = vpop.permute.xlu0 %2336
        %v2338 = vsel %vm474, %v2331, 0
        %v2340 = vsel %vm474, %v2333, 0
        %v2342 = vsel %vm474, %v2335, 0
        %v2344 = vsel %vm474, %v2337, 0
        %2346 = vmatprep.subr.mxu0 0.0
        %2347 = vmatpush1.xpose.msra.mxu0 %v2342
        %2348 = vmatprep.subr.mxu0 0.0
        %2349 = vmatpush1.xpose.msra.mxu0 %v2344
        %2350 = vmatprep.subr.mxu0 0.0
        %2351 = vmatpush1.xpose.msra.mxu0 0.0
        %2352 = vmatprep.subr.mxu0 0.0
        %2353 = vmatpush1.xpose.msra.mxu0 0.0
        %2354 = vmatprep.subr.mxu0 0.0
        %2355 = vmatpush1.xpose.msra.mxu0 0.0
        %2356 = vmatprep.subr.mxu0 0.0
        %2357 = vmatpush1.xpose.msra.mxu0 0.0
        %2358 = vmatprep.subr.mxu0 0.0
        %2359 = vmatpush1.xpose.msra.mxu0 0.0
        %2360 = vmatprep.subr.mxu0 0.0
        %2361 = vmatpush1.xpose.msra.mxu0 0.0
        %2362 = vmatprep.subr.mxu0 0.0
        %2363 = vmatpush1.xpose.msra.mxu0 0.0
        %2364 = vmatprep.subr.mxu0 0.0
        %2365 = vmatpush1.xpose.msra.mxu0 0.0
        %2366 = vmatprep.subr.mxu0 0.0
        %2367 = vmatpush1.xpose.msra.mxu0 0.0
        %2368 = vmatprep.subr.mxu0 0.0
        %2369 = vmatpush1.xpose.msra.mxu0 0.0
        %2370 = vmatprep.subr.mxu0 0.0
        %2371 = vmatpush1.xpose.msra.mxu0 0.0
        %2372 = vmatprep.subr.mxu0 0.0
        %2373 = vmatpush1.xpose.msra.mxu0 0.0
        %2374 = vmatprep.subr.mxu0 0.0
        %2375 = vmatpush1.xpose.msra.mxu0 0.0
        %2376 = vmatprep.subr.mxu0 0.0
        %2377 = vmatpush1.xpose.msra.mxu0 0.0
        %2378 = vmatprep.subr.mxu0 0.0
        %2379 = vmatpush1.xpose.msra.mxu0 0.0
        %2380 = vmatprep.subr.mxu0 0.0
        %2381 = vmatpush1.xpose.msra.mxu0 0.0
        %2382 = vmatprep.subr.mxu0 0.0
        %2383 = vmatpush1.xpose.msra.mxu0 0.0
        %2384 = vmatprep.subr.mxu0 0.0
        %2385 = vmatpush1.xpose.msra.mxu0 0.0
        %2386 = vmatprep.subr.mxu0 0.0
        %2387 = vmatpush1.xpose.msra.mxu0 0.0
        %2388 = vmatprep.subr.mxu0 0.0
        %2389 = vmatpush1.xpose.msra.mxu0 0.0
        %2390 = vmatprep.subr.mxu0 0.0
        %2391 = vmatpush1.xpose.msra.mxu0 0.0
        %2392 = vmatprep.subr.mxu0 0.0
        %2393 = vmatpush1.xpose.msra.mxu0 0.0
        %2394 = vmatprep.subr.mxu0 0.0
        %2395 = vmatpush1.xpose.msra.mxu0 0.0
        %2396 = vmatprep.subr.mxu0 0.0
        %2397 = vmatpush1.xpose.msra.mxu0 0.0
        %2398 = vmatprep.subr.mxu0 0.0
        %2399 = vmatpush1.xpose.msra.mxu0 0.0
        %2400 = vmatprep.subr.mxu0 0.0
        %2401 = vmatpush1.xpose.msra.mxu0 0.0
        %2402 = vmatprep.subr.mxu0 0.0
        %2403 = vmatpush1.xpose.msra.mxu0 0.0
        %2404 = vmatprep.subr.mxu0 0.0
        %2405 = vmatpush1.xpose.msra.mxu0 0.0
        %2406 = vmatprep.subr.mxu0 0.0
        %2407 = vmatpush1.xpose.msra.mxu0 0.0
        %2408 = vmatprep.subr.mxu0 0.0
        %2409 = vmatpush1.xpose.msra.mxu0 0.0
        %2410 = vmatprep.mubr.f32.mxu0 0.0
        %2411 = vmatmul.mubr.f32.gmra.mrb[0].mxu0 %v2338
        %v2412 = vpop.f32.mrb[0].mxu0
        %v2413 = vadd.f32 0.0, %v2412
        %v2414 = vpop.f32.mrb[0].mxu0
        %2415 = vmatprep.mubr.f32.mxu0 0.0
        %2416 = vmatmul.mubr.f32.gmra.mrb[0].mxu0 %v2340
        %v2417 = vpop.f32.mrb[0].mxu0
        %v2418 = vadd.f32 0.0, %v2417
        %v2419 = vpop.f32.mrb[0].mxu0
        %2420 = vdwg.mxu0
        %v2421 = vsel %vm474, %v2413, -inf
        %2422 = vmax.xlane.f32.xlu0 %v2421
        %v2423 = vpop.xlane.xlu0 %2422
        %v2424 = vsel %vm474, %v2418, -inf
        %2425 = vmax.xlane.f32.xlu0 %v2424
        %v2426 = vpop.xlane.xlu0 %2425
        %v2427 = vsub.f32 %v2413, %v2423
        %v2428 = vsub.f32 %v2418, %v2426
        %v2429 = vmul.f32 %v2427, 1.442695
        %v2430 = vpow.pop %v2429
        %v2431 = vmul.f32 %v2428, 1.442695
        %v2432 = vpow.pop %v2431
        %v2433 = vsel %vm474, %v2430, 0.0
        %2434 = vadd.xlane.f32.xlu0 %v2433
        %v2435 = vpop.xlane.xlu0 %2434
        %v2436 = vsel %vm474, %v2432, 0.0
        %2437 = vadd.xlane.f32.xlu0 %v2436
        %v2438 = vpop.xlane.xlu0 %2437
        %v2439 = vrcp.pop %v2435
        %v2440 = vrcp.pop %v2438
        %v2441 = vmul.f32 %v2430, %v2439
        %v2442 = vmul.f32 %v2432, %v2440
        %2443 = vrot.lane.b32.xlu0 %v1926, 96
        %v2444 = vpop.permute.xlu0 %2443
        %2445 = vrot.lane.b32.xlu0 %v1930, 96
        %v2446 = vpop.permute.xlu0 %2445
        %v2450 = vsel %vm474, %v2441, 0
        %v2453 = vsel %vm474, %v2442, 0
        %2455 = vmatprep.subr.mxu0 0.0
        %2456 = vmatpush1.msra.mxu0 %v2444
        %2457 = vmatprep.subr.mxu0 0.0
        %2458 = vmatpush1.msra.mxu0 %v2446
        %2459 = vmatprep.subr.mxu0 0.0
        %2460 = vmatpush1.msra.mxu0 0.0
        %2461 = vmatprep.subr.mxu0 0.0
        %2462 = vmatpush1.msra.mxu0 0.0
        %2463 = vmatprep.subr.mxu0 0.0
        %2464 = vmatpush1.msra.mxu0 0.0
        %2465 = vmatprep.subr.mxu0 0.0
        %2466 = vmatpush1.msra.mxu0 0.0
        %2467 = vmatprep.subr.mxu0 0.0
        %2468 = vmatpush1.msra.mxu0 0.0
        %2469 = vmatprep.subr.mxu0 0.0
        %2470 = vmatpush1.msra.mxu0 0.0
        %2471 = vmatprep.subr.mxu0 0.0
        %2472 = vmatpush1.msra.mxu0 0.0
        %2473 = vmatprep.subr.mxu0 0.0
        %2474 = vmatpush1.msra.mxu0 0.0
        %2475 = vmatprep.subr.mxu0 0.0
        %2476 = vmatpush1.msra.mxu0 0.0
        %2477 = vmatprep.subr.mxu0 0.0
        %2478 = vmatpush1.msra.mxu0 0.0
        %2479 = vmatprep.subr.mxu0 0.0
        %2480 = vmatpush1.msra.mxu0 0.0
        %2481 = vmatprep.subr.mxu0 0.0
        %2482 = vmatpush1.msra.mxu0 0.0
        %2483 = vmatprep.subr.mxu0 0.0
        %2484 = vmatpush1.msra.mxu0 0.0
        %2485 = vmatprep.subr.mxu0 0.0
        %2486 = vmatpush1.msra.mxu0 0.0
        %2487 = vmatprep.subr.mxu0 0.0
        %2488 = vmatpush1.msra.mxu0 0.0
        %2489 = vmatprep.subr.mxu0 0.0
        %2490 = vmatpush1.msra.mxu0 0.0
        %2491 = vmatprep.subr.mxu0 0.0
        %2492 = vmatpush1.msra.mxu0 0.0
        %2493 = vmatprep.subr.mxu0 0.0
        %2494 = vmatpush1.msra.mxu0 0.0
        %2495 = vmatprep.subr.mxu0 0.0
        %2496 = vmatpush1.msra.mxu0 0.0
        %2497 = vmatprep.subr.mxu0 0.0
        %2498 = vmatpush1.msra.mxu0 0.0
        %2499 = vmatprep.subr.mxu0 0.0
        %2500 = vmatpush1.msra.mxu0 0.0
        %2501 = vmatprep.subr.mxu0 0.0
        %2502 = vmatpush1.msra.mxu0 0.0
        %2503 = vmatprep.subr.mxu0 0.0
        %2504 = vmatpush1.msra.mxu0 0.0
        %2505 = vmatprep.subr.mxu0 0.0
        %2506 = vmatpush1.msra.mxu0 0.0
        %2507 = vmatprep.subr.mxu0 0.0
        %2508 = vmatpush1.msra.mxu0 0.0
        %2509 = vmatprep.subr.mxu0 0.0
        %2510 = vmatpush1.msra.mxu0 0.0
        %2511 = vmatprep.subr.mxu0 0.0
        %2512 = vmatpush1.msra.mxu0 0.0
        %2513 = vmatprep.subr.mxu0 0.0
        %2514 = vmatpush1.msra.mxu0 0.0
        %2515 = vmatprep.subr.mxu0 0.0
        %2516 = vmatpush1.msra.mxu0 0.0
        %2517 = vmatprep.subr.mxu0 0.0
        %2518 = vmatpush1.msra.mxu0 0.0
        %2519 = vmatprep.mubr.f32.mxu0 0.0
        %2520 = vmatmul.mubr.f32.gmra.mrb[0].mxu0 %v2450
        %v2521 = vpop.f32.mrb[0].mxu0
        %v2522 = vadd.f32 0.0, %v2521
        %v2523 = vpop.f32.mrb[0].mxu0
        %2524 = vmatprep.mubr.f32.mxu0 0.0
        %2525 = vmatmul.mubr.f32.gmra.mrb[0].mxu0 %v2453
        %v2526 = vpop.f32.mrb[0].mxu0
        %v2527 = vadd.f32 0.0, %v2526
        %v2528 = vpop.f32.mrb[0].mxu0
        %2529 = vdwg.mxu0
        %2530 = vrot.lane.b32.xlu0 %v1932, 80
        %v2531 = vpop.permute.xlu0 %2530
        %2532 = vrot.lane.b32.xlu0 %v1933, 80
        %v2533 = vpop.permute.xlu0 %2532
        %2534 = vrot.lane.b32.xlu0 %v1924, 16
        %v2535 = vpop.permute.xlu0 %2534
        %2536 = vrot.lane.b32.xlu0 %v1928, 16
        %v2537 = vpop.permute.xlu0 %2536
        %v2538 = vsel %vm474, %v2531, 0
        %v2540 = vsel %vm474, %v2533, 0
        %v2542 = vsel %vm474, %v2535, 0
        %v2544 = vsel %vm474, %v2537, 0
        %2546 = vmatprep.subr.mxu0 0.0
        %2547 = vmatpush1.xpose.msra.mxu0 %v2542
        %2548 = vmatprep.subr.mxu0 0.0
        %2549 = vmatpush1.xpose.msra.mxu0 %v2544
        %2550 = vmatprep.subr.mxu0 0.0
        %2551 = vmatpush1.xpose.msra.mxu0 0.0
        %2552 = vmatprep.subr.mxu0 0.0
        %2553 = vmatpush1.xpose.msra.mxu0 0.0
        %2554 = vmatprep.subr.mxu0 0.0
        %2555 = vmatpush1.xpose.msra.mxu0 0.0
        %2556 = vmatprep.subr.mxu0 0.0
        %2557 = vmatpush1.xpose.msra.mxu0 0.0
        %2558 = vmatprep.subr.mxu0 0.0
        %2559 = vmatpush1.xpose.msra.mxu0 0.0
        %2560 = vmatprep.subr.mxu0 0.0
        %2561 = vmatpush1.xpose.msra.mxu0 0.0
        %2562 = vmatprep.subr.mxu0 0.0
        %2563 = vmatpush1.xpose.msra.mxu0 0.0
        %2564 = vmatprep.subr.mxu0 0.0
        %2565 = vmatpush1.xpose.msra.mxu0 0.0
        %2566 = vmatprep.subr.mxu0 0.0
        %2567 = vmatpush1.xpose.msra.mxu0 0.0
        %2568 = vmatprep.subr.mxu0 0.0
        %2569 = vmatpush1.xpose.msra.mxu0 0.0
        %2570 = vmatprep.subr.mxu0 0.0
        %2571 = vmatpush1.xpose.msra.mxu0 0.0
        %2572 = vmatprep.subr.mxu0 0.0
        %2573 = vmatpush1.xpose.msra.mxu0 0.0
        %2574 = vmatprep.subr.mxu0 0.0
        %2575 = vmatpush1.xpose.msra.mxu0 0.0
        %2576 = vmatprep.subr.mxu0 0.0
        %2577 = vmatpush1.xpose.msra.mxu0 0.0
        %2578 = vmatprep.subr.mxu0 0.0
        %2579 = vmatpush1.xpose.msra.mxu0 0.0
        %2580 = vmatprep.subr.mxu0 0.0
        %2581 = vmatpush1.xpose.msra.mxu0 0.0
        %2582 = vmatprep.subr.mxu0 0.0
        %2583 = vmatpush1.xpose.msra.mxu0 0.0
        %2584 = vmatprep.subr.mxu0 0.0
        %2585 = vmatpush1.xpose.msra.mxu0 0.0
        %2586 = vmatprep.subr.mxu0 0.0
        %2587 = vmatpush1.xpose.msra.mxu0 0.0
        %2588 = vmatprep.subr.mxu0 0.0
        %2589 = vmatpush1.xpose.msra.mxu0 0.0
        %2590 = vmatprep.subr.mxu0 0.0
        %2591 = vmatpush1.xpose.msra.mxu0 0.0
        %2592 = vmatprep.subr.mxu0 0.0
        %2593 = vmatpush1.xpose.msra.mxu0 0.0
        %2594 = vmatprep.subr.mxu0 0.0
        %2595 = vmatpush1.xpose.msra.mxu0 0.0
        %2596 = vmatprep.subr.mxu0 0.0
        %2597 = vmatpush1.xpose.msra.mxu0 0.0
        %2598 = vmatprep.subr.mxu0 0.0
        %2599 = vmatpush1.xpose.msra.mxu0 0.0
        %2600 = vmatprep.subr.mxu0 0.0
        %2601 = vmatpush1.xpose.msra.mxu0 0.0
        %2602 = vmatprep.subr.mxu0 0.0
        %2603 = vmatpush1.xpose.msra.mxu0 0.0
        %2604 = vmatprep.subr.mxu0 0.0
        %2605 = vmatpush1.xpose.msra.mxu0 0.0
        %2606 = vmatprep.subr.mxu0 0.0
        %2607 = vmatpush1.xpose.msra.mxu0 0.0
        %2608 = vmatprep.subr.mxu0 0.0
        %2609 = vmatpush1.xpose.msra.mxu0 0.0
        %2610 = vmatprep.mubr.f32.mxu0 0.0
        %2611 = vmatmul.mubr.f32.gmra.mrb[0].mxu0 %v2538
        %v2612 = vpop.f32.mrb[0].mxu0
        %v2613 = vadd.f32 0.0, %v2612
        %v2614 = vpop.f32.mrb[0].mxu0
        %2615 = vmatprep.mubr.f32.mxu0 0.0
        %2616 = vmatmul.mubr.f32.gmra.mrb[0].mxu0 %v2540
        %v2617 = vpop.f32.mrb[0].mxu0
        %v2618 = vadd.f32 0.0, %v2617
        %v2619 = vpop.f32.mrb[0].mxu0
        %2620 = vdwg.mxu0
        %v2621 = vsel %vm474, %v2613, -inf
        %2622 = vmax.xlane.f32.xlu0 %v2621
        %v2623 = vpop.xlane.xlu0 %2622
        %v2624 = vsel %vm474, %v2618, -inf
        %2625 = vmax.xlane.f32.xlu0 %v2624
        %v2626 = vpop.xlane.xlu0 %2625
        %v2627 = vsub.f32 %v2613, %v2623
        %v2628 = vsub.f32 %v2618, %v2626
        %v2629 = vmul.f32 %v2627, 1.442695
        %v2630 = vpow.pop %v2629
        %v2631 = vmul.f32 %v2628, 1.442695
        %v2632 = vpow.pop %v2631
        %v2633 = vsel %vm474, %v2630, 0.0
        %2634 = vadd.xlane.f32.xlu0 %v2633
        %v2635 = vpop.xlane.xlu0 %2634
        %v2636 = vsel %vm474, %v2632, 0.0
        %2637 = vadd.xlane.f32.xlu0 %v2636
        %v2638 = vpop.xlane.xlu0 %2637
        %v2639 = vrcp.pop %v2635
        %v2640 = vrcp.pop %v2638
        %v2641 = vmul.f32 %v2630, %v2639
        %v2642 = vmul.f32 %v2632, %v2640
        %2643 = vrot.lane.b32.xlu0 %v1926, 80
        %v2644 = vpop.permute.xlu0 %2643
        %2645 = vrot.lane.b32.xlu0 %v1930, 80
        %v2646 = vpop.permute.xlu0 %2645
        %v2650 = vsel %vm474, %v2641, 0
        %v2653 = vsel %vm474, %v2642, 0
        %2655 = vmatprep.subr.mxu0 0.0
        %2656 = vmatpush1.msra.mxu0 %v2644
        %2657 = vmatprep.subr.mxu0 0.0
        %2658 = vmatpush1.msra.mxu0 %v2646
        %2659 = vmatprep.subr.mxu0 0.0
        %2660 = vmatpush1.msra.mxu0 0.0
        %2661 = vmatprep.subr.mxu0 0.0
        %2662 = vmatpush1.msra.mxu0 0.0
        %2663 = vmatprep.subr.mxu0 0.0
        %2664 = vmatpush1.msra.mxu0 0.0
        %2665 = vmatprep.subr.mxu0 0.0
        %2666 = vmatpush1.msra.mxu0 0.0
        %2667 = vmatprep.subr.mxu0 0.0
        %2668 = vmatpush1.msra.mxu0 0.0
        %2669 = vmatprep.subr.mxu0 0.0
        %2670 = vmatpush1.msra.mxu0 0.0
        %2671 = vmatprep.subr.mxu0 0.0
        %2672 = vmatpush1.msra.mxu0 0.0
        %2673 = vmatprep.subr.mxu0 0.0
        %2674 = vmatpush1.msra.mxu0 0.0
        %2675 = vmatprep.subr.mxu0 0.0
        %2676 = vmatpush1.msra.mxu0 0.0
        %2677 = vmatprep.subr.mxu0 0.0
        %2678 = vmatpush1.msra.mxu0 0.0
        %2679 = vmatprep.subr.mxu0 0.0
        %2680 = vmatpush1.msra.mxu0 0.0
        %2681 = vmatprep.subr.mxu0 0.0
        %2682 = vmatpush1.msra.mxu0 0.0
        %2683 = vmatprep.subr.mxu0 0.0
        %2684 = vmatpush1.msra.mxu0 0.0
        %2685 = vmatprep.subr.mxu0 0.0
        %2686 = vmatpush1.msra.mxu0 0.0
        %2687 = vmatprep.subr.mxu0 0.0
        %2688 = vmatpush1.msra.mxu0 0.0
        %2689 = vmatprep.subr.mxu0 0.0
        %2690 = vmatpush1.msra.mxu0 0.0
        %2691 = vmatprep.subr.mxu0 0.0
        %2692 = vmatpush1.msra.mxu0 0.0
        %2693 = vmatprep.subr.mxu0 0.0
        %2694 = vmatpush1.msra.mxu0 0.0
        %2695 = vmatprep.subr.mxu0 0.0
        %2696 = vmatpush1.msra.mxu0 0.0
        %2697 = vmatprep.subr.mxu0 0.0
        %2698 = vmatpush1.msra.mxu0 0.0
        %2699 = vmatprep.subr.mxu0 0.0
        %2700 = vmatpush1.msra.mxu0 0.0
        %2701 = vmatprep.subr.mxu0 0.0
        %2702 = vmatpush1.msra.mxu0 0.0
        %2703 = vmatprep.subr.mxu0 0.0
        %2704 = vmatpush1.msra.mxu0 0.0
        %2705 = vmatprep.subr.mxu0 0.0
        %2706 = vmatpush1.msra.mxu0 0.0
        %2707 = vmatprep.subr.mxu0 0.0
        %2708 = vmatpush1.msra.mxu0 0.0
        %2709 = vmatprep.subr.mxu0 0.0
        %2710 = vmatpush1.msra.mxu0 0.0
        %2711 = vmatprep.subr.mxu0 0.0
        %2712 = vmatpush1.msra.mxu0 0.0
        %2713 = vmatprep.subr.mxu0 0.0
        %2714 = vmatpush1.msra.mxu0 0.0
        %2715 = vmatprep.subr.mxu0 0.0
        %2716 = vmatpush1.msra.mxu0 0.0
        %2717 = vmatprep.subr.mxu0 0.0
        %2718 = vmatpush1.msra.mxu0 0.0
        %2719 = vmatprep.mubr.f32.mxu0 0.0
        %2720 = vmatmul.mubr.f32.gmra.mrb[0].mxu0 %v2650
        %v2721 = vpop.f32.mrb[0].mxu0
        %v2722 = vadd.f32 0.0, %v2721
        %v2723 = vpop.f32.mrb[0].mxu0
        %2724 = vmatprep.mubr.f32.mxu0 0.0
        %2725 = vmatmul.mubr.f32.gmra.mrb[0].mxu0 %v2653
        %v2726 = vpop.f32.mrb[0].mxu0
        %v2727 = vadd.f32 0.0, %v2726
        %v2728 = vpop.f32.mrb[0].mxu0
        %2729 = vdwg.mxu0
        %2732 = vrot.lane.b32.xlu0 %v2322, 16
        %v2733 = vpop.permute.xlu0 %2732
        %2734 = vrot.lane.b32.xlu0 %v2327, 16
        %v2735 = vpop.permute.xlu0 %2734
        %2740 = vrot.lane.b32.xlu0 %v2522, 32
        %v2741 = vpop.permute.xlu0 %2740
        %2742 = vrot.lane.b32.xlu0 %v2527, 32
        %v2743 = vpop.permute.xlu0 %2742
        %2748 = vrot.lane.b32.xlu0 %v2722, 48
        %v2749 = vpop.permute.xlu0 %2748
        %2750 = vrot.lane.b32.xlu0 %v2727, 48
        %v2751 = vpop.permute.xlu0 %2750
        %v2754 = vsel %vm474, %v2120, %v2733
        %v2755 = vsel %vm474, %v2125, %v2735
        %v2756 = vsel %vm1291, %v2754, %v2741
        %v2757 = vsel %vm1291, %v2755, %v2743
        %v2758 = vsel %vm1294, %v2756, %v2749
        %v2759 = vsel %vm1294, %v2757, %v2751
        %v2760 = vpack.c.bf16 %v2759, %v2758
        %s2761 = scalar_lea.vmem %s3, 32
        %v2762 = vld [vmem:[%s2761] sm:$0xf]
        %v2763 = vld [vmem:[%s2761 + $0x4] sm:$0xf]
        %v2764 = vld [vmem:[%s2761 + $0x8] sm:$0xf]
        %v2765 = vld [vmem:[%s2761 + $0xc] sm:$0xf]
        %v2766 = vld [vmem:[%s2761 + $0x10] sm:$0xf]
        %v2767 = vld [vmem:[%s2761 + $0x14] sm:$0xf]
        %v2768 = vld [vmem:[%s2761 + $0x18] sm:$0xf]
        %v2769 = vld [vmem:[%s2761 + $0x1c] sm:$0xf]
        %v2771 = vlaneseq
        %v2772 = vshrl.u32 %v2771, 7
        %v2773 = vsub.s32 0, %v2772
        %v2774 = vrot.slane %v1777, %v2773
        %v2784 = vunpack.c.l.b16 %v2762
        %v2785 = vunpack.c.l.b16 %v2763
        %v2786 = vunpack.c.l.b16 %v2764
        %v2787 = vunpack.c.l.b16 %v2765
        %v2788 = vunpack.c.l.b16 %v2766
        %v2789 = vunpack.c.l.b16 %v2767
        %v2790 = vunpack.c.l.b16 %v2768
        %v2791 = vunpack.c.l.b16 %v2769
        %v2792 = vpack.c.b16 %v2785, %v2784
        %v2793 = vpack.c.b16 %v2787, %v2786
        %v2794 = vpack.c.b16 %v2789, %v2788
        %v2795 = vpack.c.b16 %v2791, %v2790
        %v2801 = vsel %vm315, %v2760, 0
        %2803 = vmatprep.subr.bf16.mxu0 0
        %2804 = vmatpush1.bf16.msra.mxu0 %v2792
        %2805 = vmatprep.subr.bf16.mxu0 0
        %2806 = vmatpush1.bf16.msra.mxu0 %v2793
        %2807 = vmatprep.subr.bf16.mxu0 0
        %2808 = vmatpush1.bf16.msra.mxu0 %v2794
        %2809 = vmatprep.subr.bf16.mxu0 0
        %2810 = vmatpush1.bf16.msra.mxu0 %v2795
        %2811 = vmatprep.subr.bf16.mxu0 0
        %2812 = vmatpush1.bf16.msra.mxu0 0
        %2813 = vmatprep.subr.bf16.mxu0 0
        %2814 = vmatpush1.bf16.msra.mxu0 0
        %2815 = vmatprep.subr.bf16.mxu0 0
        %2816 = vmatpush1.bf16.msra.mxu0 0
        %2817 = vmatprep.subr.bf16.mxu0 0
        %2818 = vmatpush1.bf16.msra.mxu0 0
        %2819 = vmatprep.subr.bf16.mxu0 0
        %2820 = vmatpush1.bf16.msra.mxu0 0
        %2821 = vmatprep.subr.bf16.mxu0 0
        %2822 = vmatpush1.bf16.msra.mxu0 0
        %2823 = vmatprep.subr.bf16.mxu0 0
        %2824 = vmatpush1.bf16.msra.mxu0 0
        %2825 = vmatprep.subr.bf16.mxu0 0
        %2826 = vmatpush1.bf16.msra.mxu0 0
        %2827 = vmatprep.subr.bf16.mxu0 0
        %2828 = vmatpush1.bf16.msra.mxu0 0
        %2829 = vmatprep.subr.bf16.mxu0 0
        %2830 = vmatpush1.bf16.msra.mxu0 0
        %2831 = vmatprep.subr.bf16.mxu0 0
        %2832 = vmatpush1.bf16.msra.mxu0 0
        %2833 = vmatprep.subr.bf16.mxu0 0
        %2834 = vmatpush1.bf16.msra.mxu0 0
        %2835 = vmatprep.mubr.bf16.mxu0 0
        %2836 = vmatmul.mubr.bf16.gmra.mrb[0].mxu0 %v2801
        %v2837 = vpop.f32.mrb[0].mxu0
        %v2838 = vadd.f32 %v2774, %v2837
        %v2839 = vpop.f32.mrb[0].mxu0
        %v2840 = vpop.f32.mrb[0].mxu0
        %v2841 = vadd.f32 %v2774, %v2840
        %v2842 = vpop.f32.mrb[0].mxu0
        %2843 = vdwg.mxu0
        %v2845 = vlaneseq
        %v2846 = vshrl.u32 %v2845, 7
        %v2847 = vsub.s32 0, %v2846
        %v2848 = vrot.slane %v1767, %v2847
        %v2850 = vmul.f32 %v2848, %v2838
        %v2851 = vmul.f32 %v2848, %v2841
        %v2852 = vadd.f32 %v1760, %v2850
        %v2853 = vadd.f32 %v1761, %v2851
        %v2854 = vsel %vm315, %v2852, 0.0
        %2855 = vadd.xlane.f32.xlu0 %v2854
        %v2856 = vpop.xlane.xlu0 %2855
        %v2857 = vsel %vm315, %v2853, 0.0
        %2858 = vadd.xlane.f32.xlu0 %v2857
        %v2859 = vpop.xlane.xlu0 %2858
        %v2860 = vmul.f32 %v2856, %v322
        %v2861 = vmul.f32 %v2859, %v322
        %v2862 = vsub.f32 %v2852, %v2860
        %v2863 = vsub.f32 %v2853, %v2861
        %v2864 = vmul.f32 %v2862, %v2862
        %v2865 = vmul.f32 %v2863, %v2863
        %v2866 = vsel %vm315, %v2864, 0.0
        %2867 = vadd.xlane.f32.xlu0 %v2866
        %v2868 = vpop.xlane.xlu0 %2867
        %v2869 = vsel %vm315, %v2865, 0.0
        %2870 = vadd.xlane.f32.xlu0 %v2869
        %v2871 = vpop.xlane.xlu0 %2870
        %v2872 = vmul.f32 %v2868, %v322
        %v2873 = vmul.f32 %v2871, %v322
        %v2874 = vadd.f32 %v2872, 1e-06
        %v2875 = vadd.f32 %v2873, 1e-06
        %v2876 = vrsqrt.pop %v2874
        %v2877 = vrsqrt.pop %v2875
        %v2878 = vmul.f32 %v2862, %v2876
        %v2879 = vmul.f32 %v2863, %v2877
        %v2880 = vadd.f32 %v1771, 1.0
        %v2882 = vlaneseq
        %v2883 = vshrl.u32 %v2882, 7
        %v2884 = vsub.s32 0, %v2883
        %v2885 = vrot.slane %v2880, %v2884
        %v2887 = vmul.f32 %v2878, %v2885
        %v2888 = vmul.f32 %v2879, %v2885
        %v2890 = vlaneseq
        %v2891 = vshrl.u32 %v2890, 7
        %v2892 = vsub.s32 0, %v2891
        %v2893 = vrot.slane %v1769, %v2892
        %v2895 = vadd.f32 %v2887, %v2893
        %v2896 = vadd.f32 %v2888, %v2893
        %v2897 = vpack.c.bf16 %v2896, %v2895
        %s2898 = scalar_lea.vmem %s4, 64
        %v2899 = vld [vmem:[%s2898] sm:$0xff]
        %v2900 = vld [vmem:[%s2898 + $0x8] sm:$0xff]
        %v2901 = vld [vmem:[%s2898 + $0x10] sm:$0xff]
        %v2902 = vld [vmem:[%s2898 + $0x18] sm:$0xff]
        %v2903 = vld [vmem:[%s2898 + $0x20] sm:$0xff]
        %v2904 = vld [vmem:[%s2898 + $0x28] sm:$0xff]
        %v2905 = vld [vmem:[%s2898 + $0x30] sm:$0xff]
        %v2906 = vld [vmem:[%s2898 + $0x38] sm:$0xff]
        %v2908 = vlaneseq
        %v2909 = vshrl.u32 %v2908, 7
        %v2910 = vsub.s32 0, %v2909
        %v2911 = vrot.slane %v1779, %v2910
        %v2912 = vlaneseq
        %v2913 = vshrl.u32 %v2912, 7
        %v2914 = vsub.s32 1, %v2913
        %v2915 = vrot.slane %v1779, %v2914
        %v2926 = vunpack.c.l.b16 %v2899
        %v2927 = vunpack.c.h.b16 %v2899
        %v2928 = vunpack.c.l.b16 %v2900
        %v2929 = vunpack.c.h.b16 %v2900
        %v2930 = vunpack.c.l.b16 %v2901
        %v2931 = vunpack.c.h.b16 %v2901
        %v2932 = vunpack.c.l.b16 %v2902
        %v2933 = vunpack.c.h.b16 %v2902
        %v2934 = vunpack.c.l.b16 %v2903
        %v2935 = vunpack.c.h.b16 %v2903
        %v2936 = vunpack.c.l.b16 %v2904
        %v2937 = vunpack.c.h.b16 %v2904
        %v2938 = vunpack.c.l.b16 %v2905
        %v2939 = vunpack.c.h.b16 %v2905
        %v2940 = vunpack.c.l.b16 %v2906
        %v2941 = vunpack.c.h.b16 %v2906
        %v2942 = vpack.c.b16 %v2928, %v2926
        %v2943 = vpack.c.b16 %v2929, %v2927
        %v2944 = vpack.c.b16 %v2932, %v2930
        %v2945 = vpack.c.b16 %v2933, %v2931
        %v2946 = vpack.c.b16 %v2936, %v2934
        %v2947 = vpack.c.b16 %v2937, %v2935
        %v2948 = vpack.c.b16 %v2940, %v2938
        %v2949 = vpack.c.b16 %v2941, %v2939
        %v2959 = vsel %vm315, %v2897, 0
        %2961 = vmatprep.subr.bf16.mxu0 %v2943
        %2962 = vmatpush1.bf16.msra.mxu0 %v2942
        %2963 = vmatprep.subr.bf16.mxu0 %v2945
        %2964 = vmatpush1.bf16.msra.mxu0 %v2944
        %2965 = vmatprep.subr.bf16.mxu0 %v2947
        %2966 = vmatpush1.bf16.msra.mxu0 %v2946
        %2967 = vmatprep.subr.bf16.mxu0 %v2949
        %2968 = vmatpush1.bf16.msra.mxu0 %v2948
        %2969 = vmatprep.subr.bf16.mxu0 0
        %2970 = vmatpush1.bf16.msra.mxu0 0
        %2971 = vmatprep.subr.bf16.mxu0 0
        %2972 = vmatpush1.bf16.msra.mxu0 0
        %2973 = vmatprep.subr.bf16.mxu0 0
        %2974 = vmatpush1.bf16.msra.mxu0 0
        %2975 = vmatprep.subr.bf16.mxu0 0
        %2976 = vmatpush1.bf16.msra.mxu0 0
        %2977 = vmatprep.subr.bf16.mxu0 0
        %2978 = vmatpush1.bf16.msra.mxu0 0
        %2979 = vmatprep.subr.bf16.mxu0 0
        %2980 = vmatpush1.bf16.msra.mxu0 0
        %2981 = vmatprep.subr.bf16.mxu0 0
        %2982 = vmatpush1.bf16.msra.mxu0 0
        %2983 = vmatprep.subr.bf16.mxu0 0
        %2984 = vmatpush1.bf16.msra.mxu0 0
        %2985 = vmatprep.subr.bf16.mxu0 0
        %2986 = vmatpush1.bf16.msra.mxu0 0
        %2987 = vmatprep.subr.bf16.mxu0 0
        %2988 = vmatpush1.bf16.msra.mxu0 0
        %2989 = vmatprep.subr.bf16.mxu0 0
        %2990 = vmatpush1.bf16.msra.mxu0 0
        %2991 = vmatprep.subr.bf16.mxu0 0
        %2992 = vmatpush1.bf16.msra.mxu0 0
        %2993 = vmatprep.mubr.bf16.mxu0 0
        %2994 = vmatmul.mubr.bf16.gmra.mrb[0].mxu0 %v2959
        %v2995 = vpop.f32.mrb[0].mxu0
        %v2996 = vadd.f32 %v2911, %v2995
        %v2997 = vpop.f32.mrb[0].mxu0
        %v2998 = vadd.f32 %v2915, %v2997
        %v2999 = vpop.f32.mrb[0].mxu0
        %v3000 = vadd.f32 %v2911, %v2999
        %v3001 = vpop.f32.mrb[0].mxu0
        %v3002 = vadd.f32 %v2915, %v3001
        %3003 = vdwg.mxu0
        %v3004 = vmul.f32 %v2996, 0.5
        %v3005 = vmul.f32 %v2998, 0.5
        %v3006 = vmul.f32 %v3000, 0.5
        %v3007 = vmul.f32 %v3002, 0.5
        %v3008 = vmul.f32 %v2996, 0.044715
        %v3009 = vmul.f32 %v2998, 0.044715
        %v3010 = vmul.f32 %v3000, 0.044715
        %v3011 = vmul.f32 %v3002, 0.044715
        %v3012 = vmul.f32 %v3008, %v2996
        %v3013 = vmul.f32 %v3009, %v2998
        %v3014 = vmul.f32 %v3010, %v3000
        %v3015 = vmul.f32 %v3011, %v3002
        %v3016 = vmul.f32 %v3012, %v2996
        %v3017 = vmul.f32 %v3013, %v2998
        %v3018 = vmul.f32 %v3014, %v3000
        %v3019 = vmul.f32 %v3015, %v3002
        %v3020 = vadd.f32 %v2996, %v3016
        %v3021 = vadd.f32 %v2998, %v3017
        %v3022 = vadd.f32 %v3000, %v3018
        %v3023 = vadd.f32 %v3002, %v3019
        %v3024 = vmul.f32 %v3020, 0.7978846
        %v3025 = vmul.f32 %v3021, 0.7978846
        %v3026 = vmul.f32 %v3022, 0.7978846
        %v3027 = vmul.f32 %v3023, 0.7978846
        %v3028 = vtanh.pop %v3024
        %v3029 = vtanh.pop %v3025
        %v3030 = vtanh.pop %v3026
        %v3031 = vtanh.pop %v3027
        %v3032 = vadd.f32 %v3028, 1.0
        %v3033 = vadd.f32 %v3029, 1.0
        %v3034 = vadd.f32 %v3030, 1.0
        %v3035 = vadd.f32 %v3031, 1.0
        %v3036 = vmul.f32 %v3004, %v3032
        %v3037 = vmul.f32 %v3005, %v3033
        %v3038 = vmul.f32 %v3006, %v3034
        %v3039 = vmul.f32 %v3007, %v3035
        %v3040 = vpack.c.bf16 %v3038, %v3036
        %v3041 = vpack.c.bf16 %v3039, %v3037
        %s3042 = scalar_lea.vmem %s5, 128
        %v3043 = vld [vmem:[%s3042] sm:$0xf]
        %v3044 = vld [vmem:[%s3042 + $0x4] sm:$0xf]
        %v3045 = vld [vmem:[%s3042 + $0x8] sm:$0xf]
        %v3046 = vld [vmem:[%s3042 + $0xc] sm:$0xf]
        %v3047 = vld [vmem:[%s3042 + $0x10] sm:$0xf]
        %v3048 = vld [vmem:[%s3042 + $0x14] sm:$0xf]
        %v3049 = vld [vmem:[%s3042 + $0x18] sm:$0xf]
        %v3050 = vld [vmem:[%s3042 + $0x1c] sm:$0xf]
        %v3051 = vld [vmem:[%s3042 + $0x20] sm:$0xf]
        %v3052 = vld [vmem:[%s3042 + $0x24] sm:$0xf]
        %v3053 = vld [vmem:[%s3042 + $0x28] sm:$0xf]
        %v3054 = vld [vmem:[%s3042 + $0x2c] sm:$0xf]
        %v3055 = vld [vmem:[%s3042 + $0x30] sm:$0xf]
        %v3056 = vld [vmem:[%s3042 + $0x34] sm:$0xf]
        %v3057 = vld [vmem:[%s3042 + $0x38] sm:$0xf]
        %v3058 = vld [vmem:[%s3042 + $0x3c] sm:$0xf]
        %v3059 = vld [vmem:[%s3042 + $0x40] sm:$0xf]
        %v3060 = vld [vmem:[%s3042 + $0x44] sm:$0xf]
        %v3061 = vld [vmem:[%s3042 + $0x48] sm:$0xf]
        %v3062 = vld [vmem:[%s3042 + $0x4c] sm:$0xf]
        %v3063 = vld [vmem:[%s3042 + $0x50] sm:$0xf]
        %v3064 = vld [vmem:[%s3042 + $0x54] sm:$0xf]
        %v3065 = vld [vmem:[%s3042 + $0x58] sm:$0xf]
        %v3066 = vld [vmem:[%s3042 + $0x5c] sm:$0xf]
        %v3067 = vld [vmem:[%s3042 + $0x60] sm:$0xf]
        %v3068 = vld [vmem:[%s3042 + $0x64] sm:$0xf]
        %v3069 = vld [vmem:[%s3042 + $0x68] sm:$0xf]
        %v3070 = vld [vmem:[%s3042 + $0x6c] sm:$0xf]
        %v3071 = vld [vmem:[%s3042 + $0x70] sm:$0xf]
        %v3072 = vld [vmem:[%s3042 + $0x74] sm:$0xf]
        %v3073 = vld [vmem:[%s3042 + $0x78] sm:$0xf]
        %v3074 = vld [vmem:[%s3042 + $0x7c] sm:$0xf]
        %v3076 = vlaneseq
        %v3077 = vshrl.u32 %v3076, 7
        %v3078 = vsub.s32 0, %v3077
        %v3079 = vrot.slane %v1781, %v3078
        %v3113 = vunpack.c.l.b16 %v3043
        %v3114 = vunpack.c.l.b16 %v3044
        %v3115 = vunpack.c.l.b16 %v3045
        %v3116 = vunpack.c.l.b16 %v3046
        %v3117 = vunpack.c.l.b16 %v3047
        %v3118 = vunpack.c.l.b16 %v3048
        %v3119 = vunpack.c.l.b16 %v3049
        %v3120 = vunpack.c.l.b16 %v3050
        %v3121 = vunpack.c.l.b16 %v3051
        %v3122 = vunpack.c.l.b16 %v3052
        %v3123 = vunpack.c.l.b16 %v3053
        %v3124 = vunpack.c.l.b16 %v3054
        %v3125 = vunpack.c.l.b16 %v3055
        %v3126 = vunpack.c.l.b16 %v3056
        %v3127 = vunpack.c.l.b16 %v3057
        %v3128 = vunpack.c.l.b16 %v3058
        %v3129 = vunpack.c.l.b16 %v3059
        %v3130 = vunpack.c.l.b16 %v3060
        %v3131 = vunpack.c.l.b16 %v3061
        %v3132 = vunpack.c.l.b16 %v3062
        %v3133 = vunpack.c.l.b16 %v3063
        %v3134 = vunpack.c.l.b16 %v3064
        %v3135 = vunpack.c.l.b16 %v3065
        %v3136 = vunpack.c.l.b16 %v3066
        %v3137 = vunpack.c.l.b16 %v3067
        %v3138 = vunpack.c.l.b16 %v3068
        %v3139 = vunpack.c.l.b16 %v3069
        %v3140 = vunpack.c.l.b16 %v3070
        %v3141 = vunpack.c.l.b16 %v3071
        %v3142 = vunpack.c.l.b16 %v3072
        %v3143 = vunpack.c.l.b16 %v3073
        %v3144 = vunpack.c.l.b16 %v3074
        %v3145 = vpack.c.b16 %v3114, %v3113
        %v3146 = vpack.c.b16 %v3116, %v3115
        %v3147 = vpack.c.b16 %v3118, %v3117
        %v3148 = vpack.c.b16 %v3120, %v3119
        %v3149 = vpack.c.b16 %v3122, %v3121
        %v3150 = vpack.c.b16 %v3124, %v3123
        %v3151 = vpack.c.b16 %v3126, %v3125
        %v3152 = vpack.c.b16 %v3128, %v3127
        %v3153 = vpack.c.b16 %v3130, %v3129
        %v3154 = vpack.c.b16 %v3132, %v3131
        %v3155 = vpack.c.b16 %v3134, %v3133
        %v3156 = vpack.c.b16 %v3136, %v3135
        %v3157 = vpack.c.b16 %v3138, %v3137
        %v3158 = vpack.c.b16 %v3140, %v3139
        %v3159 = vpack.c.b16 %v3142, %v3141
        %v3160 = vpack.c.b16 %v3144, %v3143
        %3177 = vmatprep.subr.bf16.mxu0 0
        %3178 = vmatpush1.bf16.msra.mxu0 %v3145
        %3179 = vmatprep.subr.bf16.mxu0 0
        %3180 = vmatpush1.bf16.msra.mxu0 %v3146
        %3181 = vmatprep.subr.bf16.mxu0 0
        %3182 = vmatpush1.bf16.msra.mxu0 %v3147
        %3183 = vmatprep.subr.bf16.mxu0 0
        %3184 = vmatpush1.bf16.msra.mxu0 %v3148
        %3185 = vmatprep.subr.bf16.mxu0 0
        %3186 = vmatpush1.bf16.msra.mxu0 %v3149
        %3187 = vmatprep.subr.bf16.mxu0 0
        %3188 = vmatpush1.bf16.msra.mxu0 %v3150
        %3189 = vmatprep.subr.bf16.mxu0 0
        %3190 = vmatpush1.bf16.msra.mxu0 %v3151
        %3191 = vmatprep.subr.bf16.mxu0 0
        %3192 = vmatpush1.bf16.msra.mxu0 %v3152
        %3193 = vmatprep.subr.bf16.mxu0 0
        %3194 = vmatpush1.bf16.msra.mxu0 %v3153
        %3195 = vmatprep.subr.bf16.mxu0 0
        %3196 = vmatpush1.bf16.msra.mxu0 %v3154
        %3197 = vmatprep.subr.bf16.mxu0 0
        %3198 = vmatpush1.bf16.msra.mxu0 %v3155
        %3199 = vmatprep.subr.bf16.mxu0 0
        %3200 = vmatpush1.bf16.msra.mxu0 %v3156
        %3201 = vmatprep.subr.bf16.mxu0 0
        %3202 = vmatpush1.bf16.msra.mxu0 %v3157
        %3203 = vmatprep.subr.bf16.mxu0 0
        %3204 = vmatpush1.bf16.msra.mxu0 %v3158
        %3205 = vmatprep.subr.bf16.mxu0 0
        %3206 = vmatpush1.bf16.msra.mxu0 %v3159
        %3207 = vmatprep.subr.bf16.mxu0 0
        %3208 = vmatpush1.bf16.msra.mxu0 %v3160
        %3209 = vmatprep.mubr.bf16.mxu0 %v3041
        %3210 = vmatmul.mubr.bf16.gmra.mrb[0].mxu0 %v3040
        %v3211 = vpop.f32.mrb[0].mxu0
        %v3212 = vadd.f32 %v3079, %v3211
        %v3213 = vpop.f32.mrb[0].mxu0
        %v3214 = vpop.f32.mrb[0].mxu0
        %v3215 = vadd.f32 %v3079, %v3214
        %v3216 = vpop.f32.mrb[0].mxu0
        %3217 = vdwg.mxu0
        %v3219 = vlaneseq
        %v3220 = vshrl.u32 %v3219, 7
        %v3221 = vsub.s32 0, %v3220
        %v3222 = vrot.slane %v1773, %v3221
        %v3224 = vmul.f32 %v3222, %v3212
        %v3225 = vmul.f32 %v3222, %v3215
        %v3226 = vadd.f32 %v2852, %v3224
        %v3227 = vadd.f32 %v2853, %v3225
        %3228 = vst.msk [vmem:[%s284] sm:$0xff] %vm315, %v3226
        %3229 = vst.msk [vmem:[%s284 + $0x8] sm:$0xff] %vm315, %v3227
        %s3230 = sand.u32 %s186, 1
        %s3231 = scalar_lea.sflag [#allocation3], %s3230
        %s3232 = sand.u32 %s186, 1
        %s3233 = smul.addr %s3232, 16
        %s3234 = scalar_lea.vmem [#allocation2], %s3233
        // Predicated region
        $region49: #{_lambda_.1} parent=47 // pred_check
          %p3235 = pneg %p196
        $region50: #{_lambda_.1} parent=47 // pred_check_branch
          %3237 = sbr.rel (%p3235) target = $region52
        $region51: #{_lambda_.1} parent=47 // pred_region
          %s3239 = ssub.s32 256, 256
          %3240 = vsyncadd %s3231, %s3239
          %s3241 = smul.addr %s21, 2
          %s3242 = smul.addr %s3241, 128
          %s3243 = scalar_lea.hbm %s7, %s3242
          %s3244 = sshll.u32 %s3234, 4
          %s3245 = int_to_ptr.vmem [resolvable:$true] %s3244
          %3250 = dma.vmem_to_hbm [thread:$0]  %s3245, 256, %s3243, %s3231, 128, 128, 8
        $region52: #{_lambda_.1} parent=47 // pred_fallthru
          _
      $region48: #{_lambda_.1} parent=5 // pred_fallthru
        _
      %p3251 = scmp.le.s32.totalorder 2, %s16
      // Predicated region
      $region53: #{_lambda_.1} parent=5 // pred_check
        %p3252 = pneg %p3251
      $region54: #{_lambda_.1} parent=5 // pred_check_branch
        %3254 = sbr.rel (%p3252) target = $region56
      $region55: #{_lambda_.1} parent=5 // pred_region
        %s3255 = ssub.s32 %s16, 2
        // Predicated region
        $region57: #{_lambda_.1} parent=55 // pred_check
          %p3256 = pneg %p202
        $region58: #{_lambda_.1} parent=55 // pred_check_branch
          %3258 = sbr.rel (%p3256) target = $region60
        $region59: #{_lambda_.1} parent=55 // pred_region
          %s3259 = sand.u32 %s187, 1
          %s3260 = scalar_lea.sflag [#allocation3], %s3259
          %s3261 = sand.u32 %s187, 1
          %s3262 = smul.addr %s3261, 16
          %s3263 = scalar_lea.vmem [#allocation2], %s3262
          %3264 = dma.done %s3260, 256
        $region60: #{_lambda_.1} parent=55 // pred_fallthru
          _
      $region56: #{_lambda_.1} parent=5 // pred_fallthru
        _
    $region6: #{_lambda_.1} parent=1 // loop_footer
      %s20 = sadd.s32 1, %s16
    $region7: #{_lambda_.1} parent=1 // loop_footer_branch
      %15 = sbr.rel target = $region3
    $region8: #{_lambda_.1} parent=1 // loop_exit
      _
    %3265 = vsyncpa [#allocation3], 1
    %s3266 = scalar_lea.sflag [#allocation3], 1
    %3267 = vsyncpa %s3266, 1

</llo_original>
